<compile_context>
chip_gen: v7x
topology: tpu7x:2x2x1
jax: 0.10.0
libtpu: 0.0.40
codegen_flags: <defaults>
</compile_context>

<pallas_src>
import functools
import math

import jax
import jax.numpy as jnp
import numpy as np
from jax.experimental import pallas as pl
from jax.experimental.pallas import tpu as pltpu


# --------------------------------------------------------------------------
# One-time cached helpers (no per-call host work proportional to L^2).
# --------------------------------------------------------------------------
@functools.lru_cache(maxsize=None)
def _roll_moves_data_forward() -> bool:
    """True if pltpu.roll(x, k, ax)[..., i] == x[..., i - k] (jnp.roll convention)."""
    def probe(x_ref, o_ref):
        o_ref[...] = pltpu.roll(x_ref[...], 1, 1)

    try:
        x = jnp.broadcast_to(jnp.arange(128, dtype=jnp.float32), (8, 128))
        out = pl.pallas_call(
            probe, out_shape=jax.ShapeDtypeStruct((8, 128), jnp.float32))(x)
        return bool(out[0, 0] == 127.0)
    except Exception:
        # Fall back to the jnp.roll convention (what current jax implements).
        return True


@functools.lru_cache(maxsize=None)
def _dw_tap_shifts(H, W):
    """Lane-roll amount per 3x3 tap so that shifted[l] = src[l + dh*W + dw]."""
    L = H * W
    forward = _roll_moves_data_forward()
    shifts = []
    for tap in range(9):
        dh, dw = tap // 3 - 1, tap % 3 - 1
        s = dh * W + dw
        shifts.append(((-s) % L) if forward else (s % L))
    return tuple(shifts)


@functools.lru_cache(maxsize=None)
def _dw_tap_masks(H, W):
    """(9, 1, L) 0/1 validity masks for the 3x3 depthwise conv taps."""
    L = H * W
    l = np.arange(L)
    hh = l // W
    ww = l % W
    masks = np.zeros((9, 1, L), dtype=np.float32)
    for tap in range(9):
        dh, dw = tap // 3 - 1, tap % 3 - 1
        valid = ((hh + dh >= 0) & (hh + dh < H) &
                 (ww + dw >= 0) & (ww + dw < W))
        masks[tap, 0] = valid.astype(np.float32)
    return jnp.asarray(masks)


# --------------------------------------------------------------------------
# Kernel: everything fused per batch element on a 128-lane slice.
# --------------------------------------------------------------------------
def hsmssd_kernel(x_ref, coeff_ref, w_bcdt_ref, a_ref, w_hz_ref, w_out_ref,
                  d_ref, y_ref, h_ref, *, S, d_inner, L, BB, shifts):
    w_bcdt = w_bcdt_ref[...]               # (3S, d_model) bf16
    a_par = a_ref[...]                      # (S, 1) f32
    w_hz = w_hz_ref[...]                    # (2*d_inner, d_model) bf16
    w_out = w_out_ref[...]                  # (d_model, d_inner) bf16
    d_val = d_ref[0, 0]                     # scalar D (SMEM, f32)

    for bb in range(BB):
        x_b = x_ref[bb].astype(jnp.bfloat16)                 # (d_model, L)

        # ---- bc_dt_proj: 1x1 Conv1d == channel matmul
        bc = jnp.dot(w_bcdt, x_b,
                     preferred_element_type=jnp.float32)     # (3S, L) f32

        # ---- depthwise 3x3 conv (padding=1, groups=3S) as 8 lane rolls +
        #      FMAs against coeff[tap] = weight[tap] * boundary mask.
        #      Center tap (dh=dw=0) is the identity (mask == 1 everywhere).
        acc = coeff_ref[4] * bc
        for tap in range(9):
            if tap == 4:
                continue
            shifted = pltpu.roll(bc, shifts[tap], 1)          # XLU lane roll
            acc = acc + coeff_ref[tap] * shifted              # (3S, L)

        Bm = acc[0:S]                                          # (S, L)
        Cm = acc[S:2 * S]                                      # (S, L)
        dt = acc[2 * S:3 * S]                                  # (S, L)

        # ---- softmax over L, AB, state contraction h_b = x_b @ AB^T
        logits = dt + a_par
        mx = jnp.max(logits, axis=-1, keepdims=True)
        e = jnp.exp(logits - mx)
        A = e * pl.reciprocal(jnp.sum(e, axis=-1, keepdims=True), approx=True)
        AB = (A * Bm).astype(jnp.bfloat16)                     # (S, L)
        h_b = jax.lax.dot_general(x_b, AB, (((1,), (1,)), ((), ())),
                                  preferred_element_type=jnp.float32)  # (d_model, S)

        # ---- hz_proj / SiLU gate / out_proj
        hz = jnp.dot(w_hz, h_b.astype(jnp.bfloat16),
                     preferred_element_type=jnp.float32)       # (2*d_inner, S)
        h1 = hz[:d_inner]
        z = hz[d_inner:]
        sig = pl.reciprocal(1.0 + jnp.exp(-z), approx=True)
        gated = (h1 * (z * sig + d_val)).astype(jnp.bfloat16)  # h1*silu(z)+h1*D
        h_out = jnp.dot(w_out, gated,
                        preferred_element_type=jnp.float32)    # (d_model, S)
        h_ref[bb] = h_out.astype(h_ref.dtype)

        # ---- y_b = h_out @ C  (lane-dense 128-wide store)
        y_b = jnp.dot(h_out.astype(jnp.bfloat16), Cm.astype(jnp.bfloat16),
                      preferred_element_type=jnp.float32)      # (d_model, L)
        y_ref[bb] = y_b.astype(y_ref.dtype)


# --------------------------------------------------------------------------
# Wrapper
# --------------------------------------------------------------------------
def hsmssd_forward(x, params, H, W, *, state_dim, d_inner, block_batch=4,
                   y_dtype=jnp.bfloat16):
    w_bcdt, dwk9, a_par, w_hz, w_out, d_scalar = params
    B_, d_model, L = x.shape
    S = state_dim
    assert L == H * W
    if L % 128 != 0:
        # Kernel is tuned for lane-dense per-image slices (L multiple of 128).
        raise NotImplementedError("hsmssd_forward requires H*W % 128 == 0")

    BB = math.gcd(B_, block_batch)        # batch elements per grid step
    grid = B_ // BB

    # Precompute coeff[tap] = dw_weight[:, tap] * boundary mask  -> (9, 3S, L)
    masks = _dw_tap_masks(H, W)                                  # (9, 1, L)
    coeff = (dwk9.T[:, :, None].astype(jnp.float32) * masks)     # (9, 3S, L)
    shifts = _dw_tap_shifts(H, W)

    kernel = functools.partial(hsmssd_kernel, S=S, d_inner=d_inner, L=L,
                               BB=BB, shifts=shifts)

    y, h = pl.pallas_call(
        kernel,
        out_shape=(
            jax.ShapeDtypeStruct((B_, d_model, L), y_dtype),
            jax.ShapeDtypeStruct((B_, d_model, S), jnp.float32),
        ),
        grid_spec=pltpu.PrefetchScalarGridSpec(
            num_scalar_prefetch=0,
            grid=(grid,),
            in_specs=[
                pl.BlockSpec((BB, d_model, L), lambda i: (i, 0, 0)),     # x
                pl.BlockSpec((9, 3 * S, L), lambda i: (0, 0, 0)),        # coeff
                pl.BlockSpec((3 * S, d_model), lambda i: (0, 0)),        # bc_dt_proj W
                pl.BlockSpec((S, 1), lambda i: (0, 0)),                  # A param
                pl.BlockSpec((2 * d_inner, d_model), lambda i: (0, 0)),  # hz_proj W
                pl.BlockSpec((d_model, d_inner), lambda i: (0, 0)),      # out_proj W
                pl.BlockSpec(memory_space=pltpu.MemorySpace.SMEM),       # D scalar
            ],
            out_specs=[
                pl.BlockSpec((BB, d_model, L), lambda i: (i, 0, 0)),     # y
                pl.BlockSpec((BB, d_model, S), lambda i: (i, 0, 0)),     # h
            ],
        ),
        compiler_params=pltpu.CompilerParams(
            dimension_semantics=("parallel",),
            vmem_limit_bytes=32 * 1024 * 1024,
        ),
    )(x.astype(jnp.float32), coeff,
      w_bcdt.astype(jnp.bfloat16),
      a_par.reshape(S, 1).astype(jnp.float32),
      w_hz.astype(jnp.bfloat16),
      w_out.astype(jnp.bfloat16),
      d_scalar.reshape(1, 1).astype(jnp.float32))

    y = y.reshape(B_, d_model, H, W)    # free reshape, no transpose
    return y, h


# --------------------------------------------------------------------------
# Pure-JAX reference (f32) matching the PyTorch module semantics
# --------------------------------------------------------------------------
def reference(x, params, H, W, *, state_dim, d_inner):
    w_bcdt, dwk33, a_par, w_hz, w_out, d_scalar = params
    B_, d_model, L = x.shape
    S = state_dim
    bc_pre = jnp.einsum('cd,bdl->bcl', w_bcdt, x)
    bc_img = bc_pre.reshape(B_, 3 * S, H, W)
    bc_conv = jax.lax.conv_general_dilated(
        bc_img, dwk33.reshape(3 * S, 1, 3, 3), window_strides=(1, 1),
        padding=((1, 1), (1, 1)),
        dimension_numbers=('NCHW', 'OIHW', 'NCHW'),
        feature_group_count=3 * S)
    bc = bc_conv.reshape(B_, 3 * S, L)
    Bm, Cm, dt = bc[:, :S], bc[:, S:2 * S], bc[:, 2 * S:]
    A = jax.nn.softmax(dt + a_par.reshape(1, S, 1), axis=-1)
    AB = A * Bm
    h = jnp.einsum('bdl,bsl->bds', x, AB)
    hz = jnp.einsum('ed,bds->bes', w_hz, h)
    h1, z = hz[:, :d_inner], hz[:, d_inner:]
    gated = h1 * jax.nn.silu(z) + h1 * d_scalar[0]
    h_out = jnp.einsum('de,bes->bds', w_out, gated)
    y = jnp.einsum('bds,bsl->bdl', h_out, Cm)
    return y.reshape(B_, d_model, H, W), h_out


if __name__ == "__main__":
    # Module config (small, deterministic)
    d_model = 32
    ssd_expand = 1.0
    d_inner = int(ssd_expand * d_model)
    state_dim = 16
    A_init_range = (1.0, 16.0)
    batch, H, W = 16, 8, 16          # L = 128 -> lane-dense per-image slices
    L = H * W

    key = jax.random.PRNGKey(0)
    k0, k1, k2, k3, k4, k5 = jax.random.split(key, 6)

    # Parameters (PyTorch __init__ shapes; 1x1-conv kernel dims squeezed)
    w_bcdt = 0.25 * jax.random.normal(k0, (3 * state_dim, d_model), jnp.float32)
    dwk33 = 0.25 * jax.random.normal(k1, (3 * state_dim, 3, 3), jnp.float32)
    w_hz = 0.25 * jax.random.normal(k2, (2 * d_inner, d_model), jnp.float32)
    w_out = 0.25 * jax.random.normal(k3, (d_model, d_inner), jnp.float32)
    a_par = jax.random.uniform(k4, (state_dim,), jnp.float32,
                               minval=A_init_range[0], maxval=A_init_range[1])
    d_scalar = jnp.ones((1,), jnp.float32)

    # Input: (B, d_model, L) with L = H*W (channels-first Conv1d layout)
    x = jax.random.normal(k5, (batch, d_model, L), jnp.float32)

    kernel_params = (w_bcdt, dwk33.reshape(3 * state_dim, 9), a_par,
                     w_hz, w_out, d_scalar)
    y, h = hsmssd_forward(x, kernel_params, H, W,
                          state_dim=state_dim, d_inner=d_inner, block_batch=4)
    jax.block_until_ready((y, h))

    # Correctness check against the pure-JAX f32 reference (kernel matmuls run
    # in bf16 with f32 accumulation and y is stored bf16, so compare with a
    # relative-L2 metric).
    ref_params = (w_bcdt, dwk33, a_par, w_hz, w_out, d_scalar)
    y_ref, h_ref = reference(x, ref_params, H, W,
                             state_dim=state_dim, d_inner=d_inner)
    assert y.shape == (batch, d_model, H, W)
    assert h.shape == (batch, d_model, state_dim)

    def rel_l2(a, b):
        a = a.astype(jnp.float32)
        b = b.astype(jnp.float32)
        return float(jnp.linalg.norm((a - b).ravel()) /
                     (jnp.linalg.norm(b.ravel()) + 1e-8))

    y_err = rel_l2(y, y_ref)
    h_err = rel_l2(h, h_ref)
    assert y_err < 5e-2, f"y mismatch (rel l2 = {y_err})"
    assert h_err < 5e-2, f"h mismatch (rel l2 = {h_err})"

    print("KERNEL_OK")
</pallas_src>

<mosaic_0001>
module attributes {stable_mosaic.version = 11 : i64} {
  func.func @probe(%arg0: memref<8x128xf32, #tpu.memory_space<vmem>>, %arg1: memref<8x128xf32, #tpu.memory_space<vmem>>) attributes {dimension_semantics = [], scalar_prefetch = 0 : i64, scratch_operands = 0 : i64, tpu.core_type = #tpu.core_type<tc>} {
    %c0 = arith.constant 0 : index
    %c0_0 = arith.constant 0 : index
    %0 = vector.load %arg0[%c0, %c0_0] : memref<8x128xf32, #tpu.memory_space<vmem>>, vector<8x128xf32>
    %c1_i32 = arith.constant 1 : i32
    %1 = tpu.dynamic_rotate %0 by %c1_i32 dim 1 : vector<8x128xf32>, i32 -> vector<8x128xf32>
    %c0_1 = arith.constant 0 : index
    %c0_2 = arith.constant 0 : index
    %2 = vector.load %arg1[%c0_1, %c0_2] : memref<8x128xf32, #tpu.memory_space<vmem>>, vector<8x128xf32>
    tpu.vector_store %arg1[%c0_1, %c0_2], %1 {strides = array<i32>} : memref<8x128xf32, #tpu.memory_space<vmem>>, vector<8x128xf32>,
    return
  }
}

module attributes {stable_mosaic.version = 11 : i64} {
  func.func @hsmssd_kernel(%arg0: i32, %arg1: memref<4x32x128xf32, #tpu.memory_space<vmem>>, %arg2: memref<9x48x128xf32, #tpu.memory_space<vmem>>, %arg3: memref<48x32xbf16, #tpu.memory_space<vmem>>, %arg4: memref<16x1xf32, #tpu.memory_space<vmem>>, %arg5: memref<64x32xbf16, #tpu.memory_space<vmem>>, %arg6: memref<32x32xbf16, #tpu.memory_space<vmem>>, %arg7: memref<1x1xf32, #tpu.memory_space<smem>>, %arg8: memref<4x32x128xbf16, #tpu.memory_space<vmem>>, %arg9: memref<4x32x16xf32, #tpu.memory_space<vmem>>) attributes {dimension_semantics = [#tpu.dimension_semantics<parallel>], iteration_bounds = array<i64: 4>, scalar_prefetch = 0 : i64, scratch_operands = 0 : i64, tpu.core_type = #tpu.core_type<tc>, window_params = [{transform_indices = @transform_0, window_bounds = array<i64: 4, 32, 128>}, {pipeline_mode = #tpu.pipeline_mode<synchronous>, transform_indices = @transform_1, window_bounds = array<i64: 9, 48, 128>}, {pipeline_mode = #tpu.pipeline_mode<synchronous>, transform_indices = @transform_2, window_bounds = array<i64: 48, 32>}, {pipeline_mode = #tpu.pipeline_mode<synchronous>, transform_indices = @transform_3, window_bounds = array<i64: 16, 1>}, {pipeline_mode = #tpu.pipeline_mode<synchronous>, transform_indices = @transform_4, window_bounds = array<i64: 64, 32>}, {pipeline_mode = #tpu.pipeline_mode<synchronous>, transform_indices = @transform_5, window_bounds = array<i64: 32, 32>}, {transform_indices = @transform_6, window_bounds = array<i64: 1, 1>}, {transform_indices = @transform_7, window_bounds = array<i64: 4, 32, 128>}, {transform_indices = @transform_8, window_bounds = array<i64: 4, 32, 16>}]} {
    %c0 = arith.constant 0 : index
    %c0_0 = arith.constant 0 : index
    %0 = vector.load %arg3[%c0, %c0_0] : memref<48x32xbf16, #tpu.memory_space<vmem>>, vector<48x32xbf16>
    %c0_1 = arith.constant 0 : index
    %c0_2 = arith.constant 0 : index
    %1 = vector.load %arg4[%c0_1, %c0_2] : memref<16x1xf32, #tpu.memory_space<vmem>>, vector<16x1xf32>
    %c0_3 = arith.constant 0 : index
    %c0_4 = arith.constant 0 : index
    %2 = vector.load %arg5[%c0_3, %c0_4] : memref<64x32xbf16, #tpu.memory_space<vmem>>, vector<64x32xbf16>
    %c0_5 = arith.constant 0 : index
    %c0_6 = arith.constant 0 : index
    %3 = vector.load %arg6[%c0_5, %c0_6] : memref<32x32xbf16, #tpu.memory_space<vmem>>, vector<32x32xbf16>
    %c0_7 = arith.constant 0 : index
    %c0_8 = arith.constant 0 : index
    %4 = memref.load %arg7[%c0_7, %c0_8] : memref<1x1xf32, #tpu.memory_space<smem>>
    %c0_9 = arith.constant 0 : index
    %c0_10 = arith.constant 0 : index
    %c0_11 = arith.constant 0 : index
    %5 = vector.load %arg1[%c0_9, %c0_10, %c0_11] : memref<4x32x128xf32, #tpu.memory_space<vmem>>, vector<1x32x128xf32>
    %6 = vector.shape_cast %5 : vector<1x32x128xf32> to vector<32x128xf32>
    %7 = arith.truncf %6 : vector<32x128xf32> to vector<32x128xbf16>
    %cst = arith.constant dense<0.000000e+00> : vector<48x128xf32>
    %8 = tpu.matmul %0, %7, %cst {dimension_numbers = #tpu.dot_dimension_numbers<[1], [0], [0], [1], [0, 0, 1, 1], [], []>} : vector<48x32xbf16>, vector<32x128xbf16>, vector<48x128xf32> -> vector<48x128xf32>
    %c4 = arith.constant 4 : index
    %c0_12 = arith.constant 0 : index
    %c0_13 = arith.constant 0 : index
    %9 = vector.load %arg2[%c4, %c0_12, %c0_13] : memref<9x48x128xf32, #tpu.memory_space<vmem>>, vector<1x48x128xf32>
    %10 = vector.shape_cast %9 : vector<1x48x128xf32> to vector<48x128xf32>
    %11 = arith.mulf %10, %8 : vector<48x128xf32>
    %c17_i32 = arith.constant 17 : i32
    %12 = tpu.dynamic_rotate %8 by %c17_i32 dim 1 : vector<48x128xf32>, i32 -> vector<48x128xf32>
    %c0_14 = arith.constant 0 : index
    %c0_15 = arith.constant 0 : index
    %c0_16 = arith.constant 0 : index
    %13 = vector.load %arg2[%c0_14, %c0_15, %c0_16] : memref<9x48x128xf32, #tpu.memory_space<vmem>>, vector<1x48x128xf32>
    %14 = vector.shape_cast %13 : vector<1x48x128xf32> to vector<48x128xf32>
    %15 = arith.mulf %14, %12 : vector<48x128xf32>
    %16 = arith.addf %11, %15 : vector<48x128xf32>
    %c16_i32 = arith.constant 16 : i32
    %17 = tpu.dynamic_rotate %8 by %c16_i32 dim 1 : vector<48x128xf32>, i32 -> vector<48x128xf32>
    %c1 = arith.constant 1 : index
    %c0_17 = arith.constant 0 : index
    %c0_18 = arith.constant 0 : index
    %18 = vector.load %arg2[%c1, %c0_17, %c0_18] : memref<9x48x128xf32, #tpu.memory_space<vmem>>, vector<1x48x128xf32>
    %19 = vector.shape_cast %18 : vector<1x48x128xf32> to vector<48x128xf32>
    %20 = arith.mulf %19, %17 : vector<48x128xf32>
    %21 = arith.addf %16, %20 : vector<48x128xf32>
    %c15_i32 = arith.constant 15 : i32
    %22 = tpu.dynamic_rotate %8 by %c15_i32 dim 1 : vector<48x128xf32>, i32 -> vector<48x128xf32>
    %c2 = arith.constant 2 : index
    %c0_19 = arith.constant 0 : index
    %c0_20 = arith.constant 0 : index
    %23 = vector.load %arg2[%c2, %c0_19, %c0_20] : memref<9x48x128xf32, #tpu.memory_space<vmem>>, vector<1x48x128xf32>
    %24 = vector.shape_cast %23 : vector<1x48x128xf32> to vector<48x128xf32>
    %25 = arith.mulf %24, %22 : vector<48x128xf32>
    %26 = arith.addf %21, %25 : vector<48x128xf32>
    %c1_i32 = arith.constant 1 : i32
    %27 = tpu.dynamic_rotate %8 by %c1_i32 dim 1 : vector<48x128xf32>, i32 -> vector<48x128xf32>
    %c3 = arith.constant 3 : index
    %c0_21 = arith.constant 0 : index
    %c0_22 = arith.constant 0 : index
    %28 = vector.load %arg2[%c3, %c0_21, %c0_22] : memref<9x48x128xf32, #tpu.memory_space<vmem>>, vector<1x48x128xf32>
    %29 = vector.shape_cast %28 : vector<1x48x128xf32> to vector<48x128xf32>
    %30 = arith.mulf %29, %27 : vector<48x128xf32>
    %31 = arith.addf %26, %30 : vector<48x128xf32>
    %c127_i32 = arith.constant 127 : i32
    %32 = tpu.dynamic_rotate %8 by %c127_i32 dim 1 : vector<48x128xf32>, i32 -> vector<48x128xf32>
    %c5 = arith.constant 5 : index
    %c0_23 = arith.constant 0 : index
    %c0_24 = arith.constant 0 : index
    %33 = vector.load %arg2[%c5, %c0_23, %c0_24] : memref<9x48x128xf32, #tpu.memory_space<vmem>>, vector<1x48x128xf32>
    %34 = vector.shape_cast %33 : vector<1x48x128xf32> to vector<48x128xf32>
    %35 = arith.mulf %34, %32 : vector<48x128xf32>
    %36 = arith.addf %31, %35 : vector<48x128xf32>
    %c113_i32 = arith.constant 113 : i32
    %37 = tpu.dynamic_rotate %8 by %c113_i32 dim 1 : vector<48x128xf32>, i32 -> vector<48x128xf32>
    %c6 = arith.constant 6 : index
    %c0_25 = arith.constant 0 : index
    %c0_26 = arith.constant 0 : index
    %38 = vector.load %arg2[%c6, %c0_25, %c0_26] : memref<9x48x128xf32, #tpu.memory_space<vmem>>, vector<1x48x128xf32>
    %39 = vector.shape_cast %38 : vector<1x48x128xf32> to vector<48x128xf32>
    %40 = arith.mulf %39, %37 : vector<48x128xf32>
    %41 = arith.addf %36, %40 : vector<48x128xf32>
    %c112_i32 = arith.constant 112 : i32
    %42 = tpu.dynamic_rotate %8 by %c112_i32 dim 1 : vector<48x128xf32>, i32 -> vector<48x128xf32>
    %c7 = arith.constant 7 : index
    %c0_27 = arith.constant 0 : index
    %c0_28 = arith.constant 0 : index
    %43 = vector.load %arg2[%c7, %c0_27, %c0_28] : memref<9x48x128xf32, #tpu.memory_space<vmem>>, vector<1x48x128xf32>
    %44 = vector.shape_cast %43 : vector<1x48x128xf32> to vector<48x128xf32>
    %45 = arith.mulf %44, %42 : vector<48x128xf32>
    %46 = arith.addf %41, %45 : vector<48x128xf32>
    %c111_i32 = arith.constant 111 : i32
    %47 = tpu.dynamic_rotate %8 by %c111_i32 dim 1 : vector<48x128xf32>, i32 -> vector<48x128xf32>
    %c8 = arith.constant 8 : index
    %c0_29 = arith.constant 0 : index
    %c0_30 = arith.constant 0 : index
    %48 = vector.load %arg2[%c8, %c0_29, %c0_30] : memref<9x48x128xf32, #tpu.memory_space<vmem>>, vector<1x48x128xf32>
    %49 = vector.shape_cast %48 : vector<1x48x128xf32> to vector<48x128xf32>
    %50 = arith.mulf %49, %47 : vector<48x128xf32>
    %51 = arith.addf %46, %50 : vector<48x128xf32>
    %52 = vector.extract_strided_slice %51 {offsets = [0, 0], sizes = [16, 128], strides = [1, 1]} : vector<48x128xf32> to vector<16x128xf32>
    %53 = vector.extract_strided_slice %51 {offsets = [16, 0], sizes = [16, 128], strides = [1, 1]} : vector<48x128xf32> to vector<16x128xf32>
    %54 = vector.extract_strided_slice %51 {offsets = [32, 0], sizes = [16, 128], strides = [1, 1]} : vector<48x128xf32> to vector<16x128xf32>
    %55 = vector.broadcast %1 : vector<16x1xf32> to vector<16x128xf32>
    %56 = arith.addf %54, %55 : vector<16x128xf32>
    %cst_31 = arith.constant dense<0xFF800000> : vector<16xf32>
    %57 = vector.multi_reduction <maximumf>, %56, %cst_31 [1] : vector<16x128xf32> to vector<16xf32>
    %58 = vector.shape_cast %57 : vector<16xf32> to vector<16x1xf32>
    %59 = vector.broadcast %58 : vector<16x1xf32> to vector<16x128xf32>
    %60 = arith.subf %56, %59 : vector<16x128xf32>
    %61 = math.exp %60 : vector<16x128xf32>
    %cst_32 = arith.constant dense<0.000000e+00> : vector<16xf32>
    %62 = vector.multi_reduction <add>, %61, %cst_32 [1] : vector<16x128xf32> to vector<16xf32>
    %63 = vector.shape_cast %62 : vector<16xf32> to vector<16x1xf32>
    %64 = tpu.reciprocal %63 {approx = true} : vector<16x1xf32> -> vector<16x1xf32>
    %65 = vector.broadcast %64 : vector<16x1xf32> to vector<16x128xf32>
    %66 = arith.mulf %61, %65 : vector<16x128xf32>
    %67 = arith.mulf %66, %52 : vector<16x128xf32>
    %68 = arith.truncf %67 : vector<16x128xf32> to vector<16x128xbf16>
    %cst_33 = arith.constant dense<0.000000e+00> : vector<32x16xf32>
    %69 = tpu.matmul %7, %68, %cst_33 {dimension_numbers = #tpu.dot_dimension_numbers<[1], [1], [0], [0], [0, 0, 1, 0], [], []>} : vector<32x128xbf16>, vector<16x128xbf16>, vector<32x16xf32> -> vector<32x16xf32>
    %70 = arith.truncf %69 : vector<32x16xf32> to vector<32x16xbf16>
    %cst_34 = arith.constant dense<0.000000e+00> : vector<64x16xf32>
    %71 = tpu.matmul %2, %70, %cst_34 {dimension_numbers = #tpu.dot_dimension_numbers<[1], [0], [0], [1], [0, 0, 1, 1], [], []>} : vector<64x32xbf16>, vector<32x16xbf16>, vector<64x16xf32> -> vector<64x16xf32>
    %72 = vector.extract_strided_slice %71 {offsets = [0, 0], sizes = [32, 16], strides = [1, 1]} : vector<64x16xf32> to vector<32x16xf32>
    %73 = vector.extract_strided_slice %71 {offsets = [32, 0], sizes = [32, 16], strides = [1, 1]} : vector<64x16xf32> to vector<32x16xf32>
    %cst_35 = arith.constant 0.000000e+00 : f32
    %74 = vector.broadcast %cst_35 : f32 to vector<32x16xf32>
    %75 = arith.subf %74, %73 : vector<32x16xf32>
    %76 = math.exp %75 : vector<32x16xf32>
    %cst_36 = arith.constant 1.000000e+00 : f32
    %77 = vector.broadcast %cst_36 : f32 to vector<32x16xf32>
    %78 = arith.addf %77, %76 : vector<32x16xf32>
    %79 = tpu.reciprocal %78 {approx = true} : vector<32x16xf32> -> vector<32x16xf32>
    %80 = arith.mulf %73, %79 : vector<32x16xf32>
    %81 = vector.broadcast %4 : f32 to vector<32x16xf32>
    %82 = arith.addf %80, %81 : vector<32x16xf32>
    %83 = arith.mulf %72, %82 : vector<32x16xf32>
    %84 = arith.truncf %83 : vector<32x16xf32> to vector<32x16xbf16>
    %cst_37 = arith.constant dense<0.000000e+00> : vector<32x16xf32>
    %85 = tpu.matmul %3, %84, %cst_37 {dimension_numbers = #tpu.dot_dimension_numbers<[1], [0], [0], [1], [0, 0, 1, 1], [], []>} : vector<32x32xbf16>, vector<32x16xbf16>, vector<32x16xf32> -> vector<32x16xf32>
    %c0_38 = arith.constant 0 : index
    %c0_39 = arith.constant 0 : index
    %c0_40 = arith.constant 0 : index
    %86 = vector.load %arg9[%c0_38, %c0_39, %c0_40] : memref<4x32x16xf32, #tpu.memory_space<vmem>>, vector<1x32x16xf32>
    %87 = vector.shape_cast %86 : vector<1x32x16xf32> to vector<32x16xf32>
    %88 = vector.shape_cast %85 : vector<32x16xf32> to vector<1x32x16xf32>
    tpu.vector_store %arg9[%c0_38, %c0_39, %c0_40], %88 {strides = array<i32>} : memref<4x32x16xf32, #tpu.memory_space<vmem>>, vector<1x32x16xf32>,
    %89 = arith.truncf %85 : vector<32x16xf32> to vector<32x16xbf16>
    %90 = arith.truncf %53 : vector<16x128xf32> to vector<16x128xbf16>
    %cst_41 = arith.constant dense<0.000000e+00> : vector<32x128xf32>
    %91 = tpu.matmul %89, %90, %cst_41 {dimension_numbers = #tpu.dot_dimension_numbers<[1], [0], [0], [1], [0, 0, 1, 1], [], []>} : vector<32x16xbf16>, vector<16x128xbf16>, vector<32x128xf32> -> vector<32x128xf32>
    %92 = arith.truncf %91 : vector<32x128xf32> to vector<32x128xbf16>
    %c0_42 = arith.constant 0 : index
    %c0_43 = arith.constant 0 : index
    %c0_44 = arith.constant 0 : index
    %93 = vector.load %arg8[%c0_42, %c0_43, %c0_44] : memref<4x32x128xbf16, #tpu.memory_space<vmem>>, vector<1x32x128xbf16>
    %94 = vector.shape_cast %93 : vector<1x32x128xbf16> to vector<32x128xbf16>
    %95 = vector.shape_cast %92 : vector<32x128xbf16> to vector<1x32x128xbf16>
    tpu.vector_store %arg8[%c0_42, %c0_43, %c0_44], %95 {strides = array<i32>} : memref<4x32x128xbf16, #tpu.memory_space<vmem>>, vector<1x32x128xbf16>,
    %c1_45 = arith.constant 1 : index
    %c0_46 = arith.constant 0 : index
    %c0_47 = arith.constant 0 : index
    %96 = vector.load %arg1[%c1_45, %c0_46, %c0_47] : memref<4x32x128xf32, #tpu.memory_space<vmem>>, vector<1x32x128xf32>
    %97 = vector.shape_cast %96 : vector<1x32x128xf32> to vector<32x128xf32>
    %98 = arith.truncf %97 : vector<32x128xf32> to vector<32x128xbf16>
    %cst_48 = arith.constant dense<0.000000e+00> : vector<48x128xf32>
    %99 = tpu.matmul %0, %98, %cst_48 {dimension_numbers = #tpu.dot_dimension_numbers<[1], [0], [0], [1], [0, 0, 1, 1], [], []>} : vector<48x32xbf16>, vector<32x128xbf16>, vector<48x128xf32> -> vector<48x128xf32>
    %c4_49 = arith.constant 4 : index
    %c0_50 = arith.constant 0 : index
    %c0_51 = arith.constant 0 : index
    %100 = vector.load %arg2[%c4_49, %c0_50, %c0_51] : memref<9x48x128xf32, #tpu.memory_space<vmem>>, vector<1x48x128xf32>
    %101 = vector.shape_cast %100 : vector<1x48x128xf32> to vector<48x128xf32>
    %102 = arith.mulf %101, %99 : vector<48x128xf32>
    %c17_i32_52 = arith.constant 17 : i32
    %103 = tpu.dynamic_rotate %99 by %c17_i32_52 dim 1 : vector<48x128xf32>, i32 -> vector<48x128xf32>
    %c0_53 = arith.constant 0 : index
    %c0_54 = arith.constant 0 : index
    %c0_55 = arith.constant 0 : index
    %104 = vector.load %arg2[%c0_53, %c0_54, %c0_55] : memref<9x48x128xf32, #tpu.memory_space<vmem>>, vector<1x48x128xf32>
    %105 = vector.shape_cast %104 : vector<1x48x128xf32> to vector<48x128xf32>
    %106 = arith.mulf %105, %103 : vector<48x128xf32>
    %107 = arith.addf %102, %106 : vector<48x128xf32>
    %c16_i32_56 = arith.constant 16 : i32
    %108 = tpu.dynamic_rotate %99 by %c16_i32_56 dim 1 : vector<48x128xf32>, i32 -> vector<48x128xf32>
    %c1_57 = arith.constant 1 : index
    %c0_58 = arith.constant 0 : index
    %c0_59 = arith.constant 0 : index
    %109 = vector.load %arg2[%c1_57, %c0_58, %c0_59] : memref<9x48x128xf32, #tpu.memory_space<vmem>>, vector<1x48x128xf32>
    %110 = vector.shape_cast %109 : vector<1x48x128xf32> to vector<48x128xf32>
    %111 = arith.mulf %110, %108 : vector<48x128xf32>
    %112 = arith.addf %107, %111 : vector<48x128xf32>
    %c15_i32_60 = arith.constant 15 : i32
    %113 = tpu.dynamic_rotate %99 by %c15_i32_60 dim 1 : vector<48x128xf32>, i32 -> vector<48x128xf32>
    %c2_61 = arith.constant 2 : index
    %c0_62 = arith.constant 0 : index
    %c0_63 = arith.constant 0 : index
    %114 = vector.load %arg2[%c2_61, %c0_62, %c0_63] : memref<9x48x128xf32, #tpu.memory_space<vmem>>, vector<1x48x128xf32>
    %115 = vector.shape_cast %114 : vector<1x48x128xf32> to vector<48x128xf32>
    %116 = arith.mulf %115, %113 : vector<48x128xf32>
    %117 = arith.addf %112, %116 : vector<48x128xf32>
    %c1_i32_64 = arith.constant 1 : i32
    %118 = tpu.dynamic_rotate %99 by %c1_i32_64 dim 1 : vector<48x128xf32>, i32 -> vector<48x128xf32>
    %c3_65 = arith.constant 3 : index
    %c0_66 = arith.constant 0 : index
    %c0_67 = arith.constant 0 : index
    %119 = vector.load %arg2[%c3_65, %c0_66, %c0_67] : memref<9x48x128xf32, #tpu.memory_space<vmem>>, vector<1x48x128xf32>
    %120 = vector.shape_cast %119 : vector<1x48x128xf32> to vector<48x128xf32>
    %121 = arith.mulf %120, %118 : vector<48x128xf32>
    %122 = arith.addf %117, %121 : vector<48x128xf32>
    %c127_i32_68 = arith.constant 127 : i32
    %123 = tpu.dynamic_rotate %99 by %c127_i32_68 dim 1 : vector<48x128xf32>, i32 -> vector<48x128xf32>
    %c5_69 = arith.constant 5 : index
    %c0_70 = arith.constant 0 : index
    %c0_71 = arith.constant 0 : index
    %124 = vector.load %arg2[%c5_69, %c0_70, %c0_71] : memref<9x48x128xf32, #tpu.memory_space<vmem>>, vector<1x48x128xf32>
    %125 = vector.shape_cast %124 : vector<1x48x128xf32> to vector<48x128xf32>
    %126 = arith.mulf %125, %123 : vector<48x128xf32>
    %127 = arith.addf %122, %126 : vector<48x128xf32>
    %c113_i32_72 = arith.constant 113 : i32
    %128 = tpu.dynamic_rotate %99 by %c113_i32_72 dim 1 : vector<48x128xf32>, i32 -> vector<48x128xf32>
    %c6_73 = arith.constant 6 : index
    %c0_74 = arith.constant 0 : index
    %c0_75 = arith.constant 0 : index
    %129 = vector.load %arg2[%c6_73, %c0_74, %c0_75] : memref<9x48x128xf32, #tpu.memory_space<vmem>>, vector<1x48x128xf32>
    %130 = vector.shape_cast %129 : vector<1x48x128xf32> to vector<48x128xf32>
    %131 = arith.mulf %130, %128 : vector<48x128xf32>
    %132 = arith.addf %127, %131 : vector<48x128xf32>
    %c112_i32_76 = arith.constant 112 : i32
    %133 = tpu.dynamic_rotate %99 by %c112_i32_76 dim 1 : vector<48x128xf32>, i32 -> vector<48x128xf32>
    %c7_77 = arith.constant 7 : index
    %c0_78 = arith.constant 0 : index
    %c0_79 = arith.constant 0 : index
    %134 = vector.load %arg2[%c7_77, %c0_78, %c0_79] : memref<9x48x128xf32, #tpu.memory_space<vmem>>, vector<1x48x128xf32>
    %135 = vector.shape_cast %134 : vector<1x48x128xf32> to vector<48x128xf32>
    %136 = arith.mulf %135, %133 : vector<48x128xf32>
    %137 = arith.addf %132, %136 : vector<48x128xf32>
    %c111_i32_80 = arith.constant 111 : i32
    %138 = tpu.dynamic_rotate %99 by %c111_i32_80 dim 1 : vector<48x128xf32>, i32 -> vector<48x128xf32>
    %c8_81 = arith.constant 8 : index
    %c0_82 = arith.constant 0 : index
    %c0_83 = arith.constant 0 : index
    %139 = vector.load %arg2[%c8_81, %c0_82, %c0_83] : memref<9x48x128xf32, #tpu.memory_space<vmem>>, vector<1x48x128xf32>
    %140 = vector.shape_cast %139 : vector<1x48x128xf32> to vector<48x128xf32>
    %141 = arith.mulf %140, %138 : vector<48x128xf32>
    %142 = arith.addf %137, %141 : vector<48x128xf32>
    %143 = vector.extract_strided_slice %142 {offsets = [0, 0], sizes = [16, 128], strides = [1, 1]} : vector<48x128xf32> to vector<16x128xf32>
    %144 = vector.extract_strided_slice %142 {offsets = [16, 0], sizes = [16, 128], strides = [1, 1]} : vector<48x128xf32> to vector<16x128xf32>
    %145 = vector.extract_strided_slice %142 {offsets = [32, 0], sizes = [16, 128], strides = [1, 1]} : vector<48x128xf32> to vector<16x128xf32>
    %146 = vector.broadcast %1 : vector<16x1xf32> to vector<16x128xf32>
    %147 = arith.addf %145, %146 : vector<16x128xf32>
    %cst_84 = arith.constant dense<0xFF800000> : vector<16xf32>
    %148 = vector.multi_reduction <maximumf>, %147, %cst_84 [1] : vector<16x128xf32> to vector<16xf32>
    %149 = vector.shape_cast %148 : vector<16xf32> to vector<16x1xf32>
    %150 = vector.broadcast %149 : vector<16x1xf32> to vector<16x128xf32>
    %151 = arith.subf %147, %150 : vector<16x128xf32>
    %152 = math.exp %151 : vector<16x128xf32>
    %cst_85 = arith.constant dense<0.000000e+00> : vector<16xf32>
    %153 = vector.multi_reduction <add>, %152, %cst_85 [1] : vector<16x128xf32> to vector<16xf32>
    %154 = vector.shape_cast %153 : vector<16xf32> to vector<16x1xf32>
    %155 = tpu.reciprocal %154 {approx = true} : vector<16x1xf32> -> vector<16x1xf32>
    %156 = vector.broadcast %155 : vector<16x1xf32> to vector<16x128xf32>
    %157 = arith.mulf %152, %156 : vector<16x128xf32>
    %158 = arith.mulf %157, %143 : vector<16x128xf32>
    %159 = arith.truncf %158 : vector<16x128xf32> to vector<16x128xbf16>
    %cst_86 = arith.constant dense<0.000000e+00> : vector<32x16xf32>
    %160 = tpu.matmul %98, %159, %cst_86 {dimension_numbers = #tpu.dot_dimension_numbers<[1], [1], [0], [0], [0, 0, 1, 0], [], []>} : vector<32x128xbf16>, vector<16x128xbf16>, vector<32x16xf32> -> vector<32x16xf32>
    %161 = arith.truncf %160 : vector<32x16xf32> to vector<32x16xbf16>
    %cst_87 = arith.constant dense<0.000000e+00> : vector<64x16xf32>
    %162 = tpu.matmul %2, %161, %cst_87 {dimension_numbers = #tpu.dot_dimension_numbers<[1], [0], [0], [1], [0, 0, 1, 1], [], []>} : vector<64x32xbf16>, vector<32x16xbf16>, vector<64x16xf32> -> vector<64x16xf32>
    %163 = vector.extract_strided_slice %162 {offsets = [0, 0], sizes = [32, 16], strides = [1, 1]} : vector<64x16xf32> to vector<32x16xf32>
    %164 = vector.extract_strided_slice %162 {offsets = [32, 0], sizes = [32, 16], strides = [1, 1]} : vector<64x16xf32> to vector<32x16xf32>
    %cst_88 = arith.constant 0.000000e+00 : f32
    %165 = vector.broadcast %cst_88 : f32 to vector<32x16xf32>
    %166 = arith.subf %165, %164 : vector<32x16xf32>
    %167 = math.exp %166 : vector<32x16xf32>
    %cst_89 = arith.constant 1.000000e+00 : f32
    %168 = vector.broadcast %cst_89 : f32 to vector<32x16xf32>
    %169 = arith.addf %168, %167 : vector<32x16xf32>
    %170 = tpu.reciprocal %169 {approx = true} : vector<32x16xf32> -> vector<32x16xf32>
    %171 = arith.mulf %164, %170 : vector<32x16xf32>
    %172 = vector.broadcast %4 : f32 to vector<32x16xf32>
    %173 = arith.addf %171, %172 : vector<32x16xf32>
    %174 = arith.mulf %163, %173 : vector<32x16xf32>
    %175 = arith.truncf %174 : vector<32x16xf32> to vector<32x16xbf16>
    %cst_90 = arith.constant dense<0.000000e+00> : vector<32x16xf32>
    %176 = tpu.matmul %3, %175, %cst_90 {dimension_numbers = #tpu.dot_dimension_numbers<[1], [0], [0], [1], [0, 0, 1, 1], [], []>} : vector<32x32xbf16>, vector<32x16xbf16>, vector<32x16xf32> -> vector<32x16xf32>
    %c1_91 = arith.constant 1 : index
    %c0_92 = arith.constant 0 : index
    %c0_93 = arith.constant 0 : index
    %177 = vector.load %arg9[%c1_91, %c0_92, %c0_93] : memref<4x32x16xf32, #tpu.memory_space<vmem>>, vector<1x32x16xf32>
    %178 = vector.shape_cast %177 : vector<1x32x16xf32> to vector<32x16xf32>
    %179 = vector.shape_cast %176 : vector<32x16xf32> to vector<1x32x16xf32>
    tpu.vector_store %arg9[%c1_91, %c0_92, %c0_93], %179 {strides = array<i32>} : memref<4x32x16xf32, #tpu.memory_space<vmem>>, vector<1x32x16xf32>,
    %180 = arith.truncf %176 : vector<32x16xf32> to vector<32x16xbf16>
    %181 = arith.truncf %144 : vector<16x128xf32> to vector<16x128xbf16>
    %cst_94 = arith.constant dense<0.000000e+00> : vector<32x128xf32>
    %182 = tpu.matmul %180, %181, %cst_94 {dimension_numbers = #tpu.dot_dimension_numbers<[1], [0], [0], [1], [0, 0, 1, 1], [], []>} : vector<32x16xbf16>, vector<16x128xbf16>, vector<32x128xf32> -> vector<32x128xf32>
    %183 = arith.truncf %182 : vector<32x128xf32> to vector<32x128xbf16>
    %c1_95 = arith.constant 1 : index
    %c0_96 = arith.constant 0 : index
    %c0_97 = arith.constant 0 : index
    %184 = vector.load %arg8[%c1_95, %c0_96, %c0_97] : memref<4x32x128xbf16, #tpu.memory_space<vmem>>, vector<1x32x128xbf16>
    %185 = vector.shape_cast %184 : vector<1x32x128xbf16> to vector<32x128xbf16>
    %186 = vector.shape_cast %183 : vector<32x128xbf16> to vector<1x32x128xbf16>
    tpu.vector_store %arg8[%c1_95, %c0_96, %c0_97], %186 {strides = array<i32>} : memref<4x32x128xbf16, #tpu.memory_space<vmem>>, vector<1x32x128xbf16>,
    %c2_98 = arith.constant 2 : index
    %c0_99 = arith.constant 0 : index
    %c0_100 = arith.constant 0 : index
    %187 = vector.load %arg1[%c2_98, %c0_99, %c0_100] : memref<4x32x128xf32, #tpu.memory_space<vmem>>, vector<1x32x128xf32>
    %188 = vector.shape_cast %187 : vector<1x32x128xf32> to vector<32x128xf32>
    %189 = arith.truncf %188 : vector<32x128xf32> to vector<32x128xbf16>
    %cst_101 = arith.constant dense<0.000000e+00> : vector<48x128xf32>
    %190 = tpu.matmul %0, %189, %cst_101 {dimension_numbers = #tpu.dot_dimension_numbers<[1], [0], [0], [1], [0, 0, 1, 1], [], []>} : vector<48x32xbf16>, vector<32x128xbf16>, vector<48x128xf32> -> vector<48x128xf32>
    %c4_102 = arith.constant 4 : index
    %c0_103 = arith.constant 0 : index
    %c0_104 = arith.constant 0 : index
    %191 = vector.load %arg2[%c4_102, %c0_103, %c0_104] : memref<9x48x128xf32, #tpu.memory_space<vmem>>, vector<1x48x128xf32>
    %192 = vector.shape_cast %191 : vector<1x48x128xf32> to vector<48x128xf32>
    %193 = arith.mulf %192, %190 : vector<48x128xf32>
    %c17_i32_105 = arith.constant 17 : i32
    %194 = tpu.dynamic_rotate %190 by %c17_i32_105 dim 1 : vector<48x128xf32>, i32 -> vector<48x128xf32>
    %c0_106 = arith.constant 0 : index
    %c0_107 = arith.constant 0 : index
    %c0_108 = arith.constant 0 : index
    %195 = vector.load %arg2[%c0_106, %c0_107, %c0_108] : memref<9x48x128xf32, #tpu.memory_space<vmem>>, vector<1x48x128xf32>
    %196 = vector.shape_cast %195 : vector<1x48x128xf32> to vector<48x128xf32>
    %197 = arith.mulf %196, %194 : vector<48x128xf32>
    %198 = arith.addf %193, %197 : vector<48x128xf32>
    %c16_i32_109 = arith.constant 16 : i32
    %199 = tpu.dynamic_rotate %190 by %c16_i32_109 dim 1 : vector<48x128xf32>, i32 -> vector<48x128xf32>
    %c1_110 = arith.constant 1 : index
    %c0_111 = arith.constant 0 : index
    %c0_112 = arith.constant 0 : index
    %200 = vector.load %arg2[%c1_110, %c0_111, %c0_112] : memref<9x48x128xf32, #tpu.memory_space<vmem>>, vector<1x48x128xf32>
    %201 = vector.shape_cast %200 : vector<1x48x128xf32> to vector<48x128xf32>
    %202 = arith.mulf %201, %199 : vector<48x128xf32>
    %203 = arith.addf %198, %202 : vector<48x128xf32>
    %c15_i32_113 = arith.constant 15 : i32
    %204 = tpu.dynamic_rotate %190 by %c15_i32_113 dim 1 : vector<48x128xf32>, i32 -> vector<48x128xf32>
    %c2_114 = arith.constant 2 : index
    %c0_115 = arith.constant 0 : index
    %c0_116 = arith.constant 0 : index
    %205 = vector.load %arg2[%c2_114, %c0_115, %c0_116] : memref<9x48x128xf32, #tpu.memory_space<vmem>>, vector<1x48x128xf32>
    %206 = vector.shape_cast %205 : vector<1x48x128xf32> to vector<48x128xf32>
    %207 = arith.mulf %206, %204 : vector<48x128xf32>
    %208 = arith.addf %203, %207 : vector<48x128xf32>
    %c1_i32_117 = arith.constant 1 : i32
    %209 = tpu.dynamic_rotate %190 by %c1_i32_117 dim 1 : vector<48x128xf32>, i32 -> vector<48x128xf32>
    %c3_118 = arith.constant 3 : index
    %c0_119 = arith.constant 0 : index
    %c0_120 = arith.constant 0 : index
    %210 = vector.load %arg2[%c3_118, %c0_119, %c0_120] : memref<9x48x128xf32, #tpu.memory_space<vmem>>, vector<1x48x128xf32>
    %211 = vector.shape_cast %210 : vector<1x48x128xf32> to vector<48x128xf32>
    %212 = arith.mulf %211, %209 : vector<48x128xf32>
    %213 = arith.addf %208, %212 : vector<48x128xf32>
    %c127_i32_121 = arith.constant 127 : i32
    %214 = tpu.dynamic_rotate %190 by %c127_i32_121 dim 1 : vector<48x128xf32>, i32 -> vector<48x128xf32>
    %c5_122 = arith.constant 5 : index
    %c0_123 = arith.constant 0 : index
    %c0_124 = arith.constant 0 : index
    %215 = vector.load %arg2[%c5_122, %c0_123, %c0_124] : memref<9x48x128xf32, #tpu.memory_space<vmem>>, vector<1x48x128xf32>
    %216 = vector.shape_cast %215 : vector<1x48x128xf32> to vector<48x128xf32>
    %217 = arith.mulf %216, %214 : vector<48x128xf32>
    %218 = arith.addf %213, %217 : vector<48x128xf32>
    %c113_i32_125 = arith.constant 113 : i32
    %219 = tpu.dynamic_rotate %190 by %c113_i32_125 dim 1 : vector<48x128xf32>, i32 -> vector<48x128xf32>
    %c6_126 = arith.constant 6 : index
    %c0_127 = arith.constant 0 : index
    %c0_128 = arith.constant 0 : index
    %220 = vector.load %arg2[%c6_126, %c0_127, %c0_128] : memref<9x48x128xf32, #tpu.memory_space<vmem>>, vector<1x48x128xf32>
    %221 = vector.shape_cast %220 : vector<1x48x128xf32> to vector<48x128xf32>
    %222 = arith.mulf %221, %219 : vector<48x128xf32>
    %223 = arith.addf %218, %222 : vector<48x128xf32>
    %c112_i32_129 = arith.constant 112 : i32
    %224 = tpu.dynamic_rotate %190 by %c112_i32_129 dim 1 : vector<48x128xf32>, i32 -> vector<48x128xf32>
    %c7_130 = arith.constant 7 : index
    %c0_131 = arith.constant 0 : index
    %c0_132 = arith.constant 0 : index
    %225 = vector.load %arg2[%c7_130, %c0_131, %c0_132] : memref<9x48x128xf32, #tpu.memory_space<vmem>>, vector<1x48x128xf32>
    %226 = vector.shape_cast %225 : vector<1x48x128xf32> to vector<48x128xf32>
    %227 = arith.mulf %226, %224 : vector<48x128xf32>
    %228 = arith.addf %223, %227 : vector<48x128xf32>
    %c111_i32_133 = arith.constant 111 : i32
    %229 = tpu.dynamic_rotate %190 by %c111_i32_133 dim 1 : vector<48x128xf32>, i32 -> vector<48x128xf32>
    %c8_134 = arith.constant 8 : index
    %c0_135 = arith.constant 0 : index
    %c0_136 = arith.constant 0 : index
    %230 = vector.load %arg2[%c8_134, %c0_135, %c0_136] : memref<9x48x128xf32, #tpu.memory_space<vmem>>, vector<1x48x128xf32>
    %231 = vector.shape_cast %230 : vector<1x48x128xf32> to vector<48x128xf32>
    %232 = arith.mulf %231, %229 : vector<48x128xf32>
    %233 = arith.addf %228, %232 : vector<48x128xf32>
    %234 = vector.extract_strided_slice %233 {offsets = [0, 0], sizes = [16, 128], strides = [1, 1]} : vector<48x128xf32> to vector<16x128xf32>
    %235 = vector.extract_strided_slice %233 {offsets = [16, 0], sizes = [16, 128], strides = [1, 1]} : vector<48x128xf32> to vector<16x128xf32>
    %236 = vector.extract_strided_slice %233 {offsets = [32, 0], sizes = [16, 128], strides = [1, 1]} : vector<48x128xf32> to vector<16x128xf32>
    %237 = vector.broadcast %1 : vector<16x1xf32> to vector<16x128xf32>
    %238 = arith.addf %236, %237 : vector<16x128xf32>
    %cst_137 = arith.constant dense<0xFF800000> : vector<16xf32>
    %239 = vector.multi_reduction <maximumf>, %238, %cst_137 [1] : vector<16x128xf32> to vector<16xf32>
    %240 = vector.shape_cast %239 : vector<16xf32> to vector<16x1xf32>
    %241 = vector.broadcast %240 : vector<16x1xf32> to vector<16x128xf32>
    %242 = arith.subf %238, %241 : vector<16x128xf32>
    %243 = math.exp %242 : vector<16x128xf32>
    %cst_138 = arith.constant dense<0.000000e+00> : vector<16xf32>
    %244 = vector.multi_reduction <add>, %243, %cst_138 [1] : vector<16x128xf32> to vector<16xf32>
    %245 = vector.shape_cast %244 : vector<16xf32> to vector<16x1xf32>
    %246 = tpu.reciprocal %245 {approx = true} : vector<16x1xf32> -> vector<16x1xf32>
    %247 = vector.broadcast %246 : vector<16x1xf32> to vector<16x128xf32>
    %248 = arith.mulf %243, %247 : vector<16x128xf32>
    %249 = arith.mulf %248, %234 : vector<16x128xf32>
    %250 = arith.truncf %249 : vector<16x128xf32> to vector<16x128xbf16>
    %cst_139 = arith.constant dense<0.000000e+00> : vector<32x16xf32>
    %251 = tpu.matmul %189, %250, %cst_139 {dimension_numbers = #tpu.dot_dimension_numbers<[1], [1], [0], [0], [0, 0, 1, 0], [], []>} : vector<32x128xbf16>, vector<16x128xbf16>, vector<32x16xf32> -> vector<32x16xf32>
    %252 = arith.truncf %251 : vector<32x16xf32> to vector<32x16xbf16>
    %cst_140 = arith.constant dense<0.000000e+00> : vector<64x16xf32>
    %253 = tpu.matmul %2, %252, %cst_140 {dimension_numbers = #tpu.dot_dimension_numbers<[1], [0], [0], [1], [0, 0, 1, 1], [], []>} : vector<64x32xbf16>, vector<32x16xbf16>, vector<64x16xf32> -> vector<64x16xf32>
    %254 = vector.extract_strided_slice %253 {offsets = [0, 0], sizes = [32, 16], strides = [1, 1]} : vector<64x16xf32> to vector<32x16xf32>
    %255 = vector.extract_strided_slice %253 {offsets = [32, 0], sizes = [32, 16], strides = [1, 1]} : vector<64x16xf32> to vector<32x16xf32>
    %cst_141 = arith.constant 0.000000e+00 : f32
    %256 = vector.broadcast %cst_141 : f32 to vector<32x16xf32>
    %257 = arith.subf %256, %255 : vector<32x16xf32>
    %258 = math.exp %257 : vector<32x16xf32>
    %cst_142 = arith.constant 1.000000e+00 : f32
    %259 = vector.broadcast %cst_142 : f32 to vector<32x16xf32>
    %260 = arith.addf %259, %258 : vector<32x16xf32>
    %261 = tpu.reciprocal %260 {approx = true} : vector<32x16xf32> -> vector<32x16xf32>
    %262 = arith.mulf %255, %261 : vector<32x16xf32>
    %263 = vector.broadcast %4 : f32 to vector<32x16xf32>
    %264 = arith.addf %262, %263 : vector<32x16xf32>
    %265 = arith.mulf %254, %264 : vector<32x16xf32>
    %266 = arith.truncf %265 : vector<32x16xf32> to vector<32x16xbf16>
    %cst_143 = arith.constant dense<0.000000e+00> : vector<32x16xf32>
    %267 = tpu.matmul %3, %266, %cst_143 {dimension_numbers = #tpu.dot_dimension_numbers<[1], [0], [0], [1], [0, 0, 1, 1], [], []>} : vector<32x32xbf16>, vector<32x16xbf16>, vector<32x16xf32> -> vector<32x16xf32>
    %c2_144 = arith.constant 2 : index
    %c0_145 = arith.constant 0 : index
    %c0_146 = arith.constant 0 : index
    %268 = vector.load %arg9[%c2_144, %c0_145, %c0_146] : memref<4x32x16xf32, #tpu.memory_space<vmem>>, vector<1x32x16xf32>
    %269 = vector.shape_cast %268 : vector<1x32x16xf32> to vector<32x16xf32>
    %270 = vector.shape_cast %267 : vector<32x16xf32> to vector<1x32x16xf32>
    tpu.vector_store %arg9[%c2_144, %c0_145, %c0_146], %270 {strides = array<i32>} : memref<4x32x16xf32, #tpu.memory_space<vmem>>, vector<1x32x16xf32>,
    %271 = arith.truncf %267 : vector<32x16xf32> to vector<32x16xbf16>
    %272 = arith.truncf %235 : vector<16x128xf32> to vector<16x128xbf16>
    %cst_147 = arith.constant dense<0.000000e+00> : vector<32x128xf32>
    %273 = tpu.matmul %271, %272, %cst_147 {dimension_numbers = #tpu.dot_dimension_numbers<[1], [0], [0], [1], [0, 0, 1, 1], [], []>} : vector<32x16xbf16>, vector<16x128xbf16>, vector<32x128xf32> -> vector<32x128xf32>
    %274 = arith.truncf %273 : vector<32x128xf32> to vector<32x128xbf16>
    %c2_148 = arith.constant 2 : index
    %c0_149 = arith.constant 0 : index
    %c0_150 = arith.constant 0 : index
    %275 = vector.load %arg8[%c2_148, %c0_149, %c0_150] : memref<4x32x128xbf16, #tpu.memory_space<vmem>>, vector<1x32x128xbf16>
    %276 = vector.shape_cast %275 : vector<1x32x128xbf16> to vector<32x128xbf16>
    %277 = vector.shape_cast %274 : vector<32x128xbf16> to vector<1x32x128xbf16>
    tpu.vector_store %arg8[%c2_148, %c0_149, %c0_150], %277 {strides = array<i32>} : memref<4x32x128xbf16, #tpu.memory_space<vmem>>, vector<1x32x128xbf16>,
    %c3_151 = arith.constant 3 : index
    %c0_152 = arith.constant 0 : index
    %c0_153 = arith.constant 0 : index
    %278 = vector.load %arg1[%c3_151, %c0_152, %c0_153] : memref<4x32x128xf32, #tpu.memory_space<vmem>>, vector<1x32x128xf32>
    %279 = vector.shape_cast %278 : vector<1x32x128xf32> to vector<32x128xf32>
    %280 = arith.truncf %279 : vector<32x128xf32> to vector<32x128xbf16>
    %cst_154 = arith.constant dense<0.000000e+00> : vector<48x128xf32>
    %281 = tpu.matmul %0, %280, %cst_154 {dimension_numbers = #tpu.dot_dimension_numbers<[1], [0], [0], [1], [0, 0, 1, 1], [], []>} : vector<48x32xbf16>, vector<32x128xbf16>, vector<48x128xf32> -> vector<48x128xf32>
    %c4_155 = arith.constant 4 : index
    %c0_156 = arith.constant 0 : index
    %c0_157 = arith.constant 0 : index
    %282 = vector.load %arg2[%c4_155, %c0_156, %c0_157] : memref<9x48x128xf32, #tpu.memory_space<vmem>>, vector<1x48x128xf32>
    %283 = vector.shape_cast %282 : vector<1x48x128xf32> to vector<48x128xf32>
    %284 = arith.mulf %283, %281 : vector<48x128xf32>
    %c17_i32_158 = arith.constant 17 : i32
    %285 = tpu.dynamic_rotate %281 by %c17_i32_158 dim 1 : vector<48x128xf32>, i32 -> vector<48x128xf32>
    %c0_159 = arith.constant 0 : index
    %c0_160 = arith.constant 0 : index
    %c0_161 = arith.constant 0 : index
    %286 = vector.load %arg2[%c0_159, %c0_160, %c0_161] : memref<9x48x128xf32, #tpu.memory_space<vmem>>, vector<1x48x128xf32>
    %287 = vector.shape_cast %286 : vector<1x48x128xf32> to vector<48x128xf32>
    %288 = arith.mulf %287, %285 : vector<48x128xf32>
    %289 = arith.addf %284, %288 : vector<48x128xf32>
    %c16_i32_162 = arith.constant 16 : i32
    %290 = tpu.dynamic_rotate %281 by %c16_i32_162 dim 1 : vector<48x128xf32>, i32 -> vector<48x128xf32>
    %c1_163 = arith.constant 1 : index
    %c0_164 = arith.constant 0 : index
    %c0_165 = arith.constant 0 : index
    %291 = vector.load %arg2[%c1_163, %c0_164, %c0_165] : memref<9x48x128xf32, #tpu.memory_space<vmem>>, vector<1x48x128xf32>
    %292 = vector.shape_cast %291 : vector<1x48x128xf32> to vector<48x128xf32>
    %293 = arith.mulf %292, %290 : vector<48x128xf32>
    %294 = arith.addf %289, %293 : vector<48x128xf32>
    %c15_i32_166 = arith.constant 15 : i32
    %295 = tpu.dynamic_rotate %281 by %c15_i32_166 dim 1 : vector<48x128xf32>, i32 -> vector<48x128xf32>
    %c2_167 = arith.constant 2 : index
    %c0_168 = arith.constant 0 : index
    %c0_169 = arith.constant 0 : index
    %296 = vector.load %arg2[%c2_167, %c0_168, %c0_169] : memref<9x48x128xf32, #tpu.memory_space<vmem>>, vector<1x48x128xf32>
    %297 = vector.shape_cast %296 : vector<1x48x128xf32> to vector<48x128xf32>
    %298 = arith.mulf %297, %295 : vector<48x128xf32>
    %299 = arith.addf %294, %298 : vector<48x128xf32>
    %c1_i32_170 = arith.constant 1 : i32
    %300 = tpu.dynamic_rotate %281 by %c1_i32_170 dim 1 : vector<48x128xf32>, i32 -> vector<48x128xf32>
    %c3_171 = arith.constant 3 : index
    %c0_172 = arith.constant 0 : index
    %c0_173 = arith.constant 0 : index
    %301 = vector.load %arg2[%c3_171, %c0_172, %c0_173] : memref<9x48x128xf32, #tpu.memory_space<vmem>>, vector<1x48x128xf32>
    %302 = vector.shape_cast %301 : vector<1x48x128xf32> to vector<48x128xf32>
    %303 = arith.mulf %302, %300 : vector<48x128xf32>
    %304 = arith.addf %299, %303 : vector<48x128xf32>
    %c127_i32_174 = arith.constant 127 : i32
    %305 = tpu.dynamic_rotate %281 by %c127_i32_174 dim 1 : vector<48x128xf32>, i32 -> vector<48x128xf32>
    %c5_175 = arith.constant 5 : index
    %c0_176 = arith.constant 0 : index
    %c0_177 = arith.constant 0 : index
    %306 = vector.load %arg2[%c5_175, %c0_176, %c0_177] : memref<9x48x128xf32, #tpu.memory_space<vmem>>, vector<1x48x128xf32>
    %307 = vector.shape_cast %306 : vector<1x48x128xf32> to vector<48x128xf32>
    %308 = arith.mulf %307, %305 : vector<48x128xf32>
    %309 = arith.addf %304, %308 : vector<48x128xf32>
    %c113_i32_178 = arith.constant 113 : i32
    %310 = tpu.dynamic_rotate %281 by %c113_i32_178 dim 1 : vector<48x128xf32>, i32 -> vector<48x128xf32>
    %c6_179 = arith.constant 6 : index
    %c0_180 = arith.constant 0 : index
    %c0_181 = arith.constant 0 : index
    %311 = vector.load %arg2[%c6_179, %c0_180, %c0_181] : memref<9x48x128xf32, #tpu.memory_space<vmem>>, vector<1x48x128xf32>
    %312 = vector.shape_cast %311 : vector<1x48x128xf32> to vector<48x128xf32>
    %313 = arith.mulf %312, %310 : vector<48x128xf32>
    %314 = arith.addf %309, %313 : vector<48x128xf32>
    %c112_i32_182 = arith.constant 112 : i32
    %315 = tpu.dynamic_rotate %281 by %c112_i32_182 dim 1 : vector<48x128xf32>, i32 -> vector<48x128xf32>
    %c7_183 = arith.constant 7 : index
    %c0_184 = arith.constant 0 : index
    %c0_185 = arith.constant 0 : index
    %316 = vector.load %arg2[%c7_183, %c0_184, %c0_185] : memref<9x48x128xf32, #tpu.memory_space<vmem>>, vector<1x48x128xf32>
    %317 = vector.shape_cast %316 : vector<1x48x128xf32> to vector<48x128xf32>
    %318 = arith.mulf %317, %315 : vector<48x128xf32>
    %319 = arith.addf %314, %318 : vector<48x128xf32>
    %c111_i32_186 = arith.constant 111 : i32
    %320 = tpu.dynamic_rotate %281 by %c111_i32_186 dim 1 : vector<48x128xf32>, i32 -> vector<48x128xf32>
    %c8_187 = arith.constant 8 : index
    %c0_188 = arith.constant 0 : index
    %c0_189 = arith.constant 0 : index
    %321 = vector.load %arg2[%c8_187, %c0_188, %c0_189] : memref<9x48x128xf32, #tpu.memory_space<vmem>>, vector<1x48x128xf32>
    %322 = vector.shape_cast %321 : vector<1x48x128xf32> to vector<48x128xf32>
    %323 = arith.mulf %322, %320 : vector<48x128xf32>
    %324 = arith.addf %319, %323 : vector<48x128xf32>
    %325 = vector.extract_strided_slice %324 {offsets = [0, 0], sizes = [16, 128], strides = [1, 1]} : vector<48x128xf32> to vector<16x128xf32>
    %326 = vector.extract_strided_slice %324 {offsets = [16, 0], sizes = [16, 128], strides = [1, 1]} : vector<48x128xf32> to vector<16x128xf32>
    %327 = vector.extract_strided_slice %324 {offsets = [32, 0], sizes = [16, 128], strides = [1, 1]} : vector<48x128xf32> to vector<16x128xf32>
    %328 = vector.broadcast %1 : vector<16x1xf32> to vector<16x128xf32>
    %329 = arith.addf %327, %328 : vector<16x128xf32>
    %cst_190 = arith.constant dense<0xFF800000> : vector<16xf32>
    %330 = vector.multi_reduction <maximumf>, %329, %cst_190 [1] : vector<16x128xf32> to vector<16xf32>
    %331 = vector.shape_cast %330 : vector<16xf32> to vector<16x1xf32>
    %332 = vector.broadcast %331 : vector<16x1xf32> to vector<16x128xf32>
    %333 = arith.subf %329, %332 : vector<16x128xf32>
    %334 = math.exp %333 : vector<16x128xf32>
    %cst_191 = arith.constant dense<0.000000e+00> : vector<16xf32>
    %335 = vector.multi_reduction <add>, %334, %cst_191 [1] : vector<16x128xf32> to vector<16xf32>
    %336 = vector.shape_cast %335 : vector<16xf32> to vector<16x1xf32>
    %337 = tpu.reciprocal %336 {approx = true} : vector<16x1xf32> -> vector<16x1xf32>
    %338 = vector.broadcast %337 : vector<16x1xf32> to vector<16x128xf32>
    %339 = arith.mulf %334, %338 : vector<16x128xf32>
    %340 = arith.mulf %339, %325 : vector<16x128xf32>
    %341 = arith.truncf %340 : vector<16x128xf32> to vector<16x128xbf16>
    %cst_192 = arith.constant dense<0.000000e+00> : vector<32x16xf32>
    %342 = tpu.matmul %280, %341, %cst_192 {dimension_numbers = #tpu.dot_dimension_numbers<[1], [1], [0], [0], [0, 0, 1, 0], [], []>} : vector<32x128xbf16>, vector<16x128xbf16>, vector<32x16xf32> -> vector<32x16xf32>
    %343 = arith.truncf %342 : vector<32x16xf32> to vector<32x16xbf16>
    %cst_193 = arith.constant dense<0.000000e+00> : vector<64x16xf32>
    %344 = tpu.matmul %2, %343, %cst_193 {dimension_numbers = #tpu.dot_dimension_numbers<[1], [0], [0], [1], [0, 0, 1, 1], [], []>} : vector<64x32xbf16>, vector<32x16xbf16>, vector<64x16xf32> -> vector<64x16xf32>
    %345 = vector.extract_strided_slice %344 {offsets = [0, 0], sizes = [32, 16], strides = [1, 1]} : vector<64x16xf32> to vector<32x16xf32>
    %346 = vector.extract_strided_slice %344 {offsets = [32, 0], sizes = [32, 16], strides = [1, 1]} : vector<64x16xf32> to vector<32x16xf32>
    %cst_194 = arith.constant 0.000000e+00 : f32
    %347 = vector.broadcast %cst_194 : f32 to vector<32x16xf32>
    %348 = arith.subf %347, %346 : vector<32x16xf32>
    %349 = math.exp %348 : vector<32x16xf32>
    %cst_195 = arith.constant 1.000000e+00 : f32
    %350 = vector.broadcast %cst_195 : f32 to vector<32x16xf32>
    %351 = arith.addf %350, %349 : vector<32x16xf32>
    %352 = tpu.reciprocal %351 {approx = true} : vector<32x16xf32> -> vector<32x16xf32>
    %353 = arith.mulf %346, %352 : vector<32x16xf32>
    %354 = vector.broadcast %4 : f32 to vector<32x16xf32>
    %355 = arith.addf %353, %354 : vector<32x16xf32>
    %356 = arith.mulf %345, %355 : vector<32x16xf32>
    %357 = arith.truncf %356 : vector<32x16xf32> to vector<32x16xbf16>
    %cst_196 = arith.constant dense<0.000000e+00> : vector<32x16xf32>
    %358 = tpu.matmul %3, %357, %cst_196 {dimension_numbers = #tpu.dot_dimension_numbers<[1], [0], [0], [1], [0, 0, 1, 1], [], []>} : vector<32x32xbf16>, vector<32x16xbf16>, vector<32x16xf32> -> vector<32x16xf32>
    %c3_197 = arith.constant 3 : index
    %c0_198 = arith.constant 0 : index
    %c0_199 = arith.constant 0 : index
    %359 = vector.load %arg9[%c3_197, %c0_198, %c0_199] : memref<4x32x16xf32, #tpu.memory_space<vmem>>, vector<1x32x16xf32>
    %360 = vector.shape_cast %359 : vector<1x32x16xf32> to vector<32x16xf32>
    %361 = vector.shape_cast %358 : vector<32x16xf32> to vector<1x32x16xf32>
    tpu.vector_store %arg9[%c3_197, %c0_198, %c0_199], %361 {strides = array<i32>} : memref<4x32x16xf32, #tpu.memory_space<vmem>>, vector<1x32x16xf32>,
    %362 = arith.truncf %358 : vector<32x16xf32> to vector<32x16xbf16>
    %363 = arith.truncf %326 : vector<16x128xf32> to vector<16x128xbf16>
    %cst_200 = arith.constant dense<0.000000e+00> : vector<32x128xf32>
    %364 = tpu.matmul %362, %363, %cst_200 {dimension_numbers = #tpu.dot_dimension_numbers<[1], [0], [0], [1], [0, 0, 1, 1], [], []>} : vector<32x16xbf16>, vector<16x128xbf16>, vector<32x128xf32> -> vector<32x128xf32>
    %365 = arith.truncf %364 : vector<32x128xf32> to vector<32x128xbf16>
    %c3_201 = arith.constant 3 : index
    %c0_202 = arith.constant 0 : index
    %c0_203 = arith.constant 0 : index
    %366 = vector.load %arg8[%c3_201, %c0_202, %c0_203] : memref<4x32x128xbf16, #tpu.memory_space<vmem>>, vector<1x32x128xbf16>
    %367 = vector.shape_cast %366 : vector<1x32x128xbf16> to vector<32x128xbf16>
    %368 = vector.shape_cast %365 : vector<32x128xbf16> to vector<1x32x128xbf16>
    tpu.vector_store %arg8[%c3_201, %c0_202, %c0_203], %368 {strides = array<i32>} : memref<4x32x128xbf16, #tpu.memory_space<vmem>>, vector<1x32x128xbf16>,
    return
  }
  func.func @transform_0(%arg0: i32) -> (i32, i32, i32) {
    %c0_i32 = arith.constant 0 : i32
    %c0_i32_0 = arith.constant 0 : i32
    %c0_i32_1 = arith.constant 0 : i32
    return %arg0, %c0_i32, %c0_i32_0 : i32, i32, i32
  }
  func.func @transform_1(%arg0: i32) -> (i32, i32, i32) {
    %c0_i32 = arith.constant 0 : i32
    %c0_i32_0 = arith.constant 0 : i32
    %c0_i32_1 = arith.constant 0 : i32
    %c0_i32_2 = arith.constant 0 : i32
    return %c0_i32, %c0_i32_0, %c0_i32_1 : i32, i32, i32
  }
  func.func @transform_2(%arg0: i32) -> (i32, i32) {
    %c0_i32 = arith.constant 0 : i32
    %c0_i32_0 = arith.constant 0 : i32
    %c0_i32_1 = arith.constant 0 : i32
    return %c0_i32, %c0_i32_0 : i32, i32
  }
  func.func @transform_3(%arg0: i32) -> (i32, i32) {
    %c0_i32 = arith.constant 0 : i32
    %c0_i32_0 = arith.constant 0 : i32
    %c0_i32_1 = arith.constant 0 : i32
    return %c0_i32, %c0_i32_0 : i32, i32
  }
  func.func @transform_4(%arg0: i32) -> (i32, i32) {
    %c0_i32 = arith.constant 0 : i32
    %c0_i32_0 = arith.constant 0 : i32
    %c0_i32_1 = arith.constant 0 : i32
    return %c0_i32, %c0_i32_0 : i32, i32
  }
  func.func @transform_5(%arg0: i32) -> (i32, i32) {
    %c0_i32 = arith.constant 0 : i32
    %c0_i32_0 = arith.constant 0 : i32
    %c0_i32_1 = arith.constant 0 : i32
    return %c0_i32, %c0_i32_0 : i32, i32
  }
  func.func @transform_6(%arg0: i32) -> (i32, i32) {
    %c0_i32 = arith.constant 0 : i32
    %c0_i32_0 = arith.constant 0 : i32
    %c0_i32_1 = arith.constant 0 : i32
    return %c0_i32, %c0_i32_0 : i32, i32
  }
  func.func @transform_7(%arg0: i32) -> (i32, i32, i32) {
    %c0_i32 = arith.constant 0 : i32
    %c0_i32_0 = arith.constant 0 : i32
    %c0_i32_1 = arith.constant 0 : i32
    return %arg0, %c0_i32, %c0_i32_0 : i32, i32, i32
  }
  func.func @transform_8(%arg0: i32) -> (i32, i32, i32) {
    %c0_i32 = arith.constant 0 : i32
    %c0_i32_0 = arith.constant 0 : i32
    %c0_i32_1 = arith.constant 0 : i32
    return %arg0, %c0_i32, %c0_i32_0 : i32, i32, i32
  }
}

</mosaic_0001>

<llo_original>
// kernel: tpu_custom_call.1
$region0: #{tpu_custom_call.1}
  #allocation0 [shape = 'u32[]', space=smem, size = 0x4, offset = 0x4, fixed_abs, tag = 'smem constant byte address 0x4 - core index']
  #allocation1 [shape = 'u32[144,128]{1,0:T(1,128)}', space=vmem, size = 0x12000, scoped, tag = 'internal scratch']
  %s0 = inlined_call_operand.hbm [shape: f32[8,128], index: 0, kind: input, shape index: {}]
  %s1 = inlined_call_operand.hbm [shape: f32[8,128], index: 1, kind: output, shape index: {}]
  %s2 = sld [smem:[#allocation0]]
  $region18: #{tpu_custom_call.1} parent=0
    _
  %s4 = ssub.s32 1, %s2
  %s5 = scalar_select 0, %s4, %s2
  $region1: #{tpu_custom_call.1} parent=0
    #allocation2 [shape = 'u8[4096]{0}', space=vmem, size = 0x1000, scoped, tag = 'input window, operand 0, single buffered']
    #allocation3 [shape = 's32[1]{0}', space=sflag, size = 0x4, scoped, tag = 'scoped memory for tpu_custom_call.1']
    #allocation4 [shape = 's32[1]{0}', space=sflag, size = 0x4, scoped, tag = 'scoped memory for tpu_custom_call.1']
    #allocation5 [shape = 'u8[4096]{0}', space=vmem, size = 0x1000, scoped, tag = 'output window, operand 0, single buffered']
    %6 = vsyncpa [#allocation3], 0
    %7 = vsyncpa [#allocation4], 0
    // Predicated region
    $region2: #{tpu_custom_call.1} parent=1 // pred_check
      _
    $region3: #{tpu_custom_call.1} parent=1 // pred_check_branch
      %9 = sbr.rel (0) target = $region5
    $region4: #{tpu_custom_call.1} parent=1 // pred_region
      %s11 = ssub.s32 128, 128
      %12 = vsyncadd [#allocation3], %s11
      %s14 = sshll.u32 [#allocation2], 4
      %s15 = int_to_ptr.vmem [resolvable:$true] %s14
      %17 = dma.hbm_to_vmem [thread:$0]  %s0, 128, %s15, [#allocation3]
    $region5: #{tpu_custom_call.1} parent=1 // pred_fallthru
      _
    // Predicated region
    $region6: #{tpu_custom_call.1} parent=1 // pred_check
      _
    $region7: #{tpu_custom_call.1} parent=1 // pred_check_branch
      %19 = sbr.rel (0) target = $region9
    $region8: #{tpu_custom_call.1} parent=1 // pred_region
      %20 = dma.done [#allocation3], 128
    $region9: #{tpu_custom_call.1} parent=1 // pred_fallthru
      _
    %v21 = vld [vmem:[#allocation2] sm:$0xff]
    %22 = vrot.lane.b32.xlu0 %v21, 1
    %v23 = vpop.permute.xlu0 %22
    %24 = vst [vmem:[#allocation5] sm:$0xff] %v23
    // Predicated region
    $region10: #{tpu_custom_call.1} parent=1 // pred_check
      _
    $region11: #{tpu_custom_call.1} parent=1 // pred_check_branch
      %26 = sbr.rel (0) target = $region13
    $region12: #{tpu_custom_call.1} parent=1 // pred_region
      %s28 = ssub.s32 128, 128
      %29 = vsyncadd [#allocation4], %s28
      %s31 = sshll.u32 [#allocation5], 4
      %s32 = int_to_ptr.vmem [resolvable:$true] %s31
      %34 = dma.vmem_to_hbm [thread:$0]  %s32, 128, %s1, [#allocation4]
    $region13: #{tpu_custom_call.1} parent=1 // pred_fallthru
      _
    // Predicated region
    $region14: #{tpu_custom_call.1} parent=1 // pred_check
      _
    $region15: #{tpu_custom_call.1} parent=1 // pred_check_branch
      %36 = sbr.rel (0) target = $region17
    $region16: #{tpu_custom_call.1} parent=1 // pred_region
      %37 = dma.done [#allocation4], 128
    $region17: #{tpu_custom_call.1} parent=1 // pred_fallthru
      _
    %38 = vsyncpa [#allocation3], 1
    %39 = vsyncpa [#allocation4], 1

// kernel: tpu_custom_call.1
$region0: #{tpu_custom_call.1}
  #allocation0 [shape = 'u32[]', space=smem, size = 0x4, offset = 0x4, fixed_abs, tag = 'smem constant byte address 0x4 - core index']
  #allocation1 [shape = 'u32[144,128]{1,0:T(1,128)}', space=vmem, size = 0x12000, scoped, tag = 'internal scratch']
  #allocation2 [shape = 'f32[1,1]{1,0:T(1,128)S(6)}', space=smem, size = 0x200, scoped, tag = 'scoped memory for tpu_custom_call.1']
  %s0 = inlined_call_operand.hbm [shape: f32[16,32,128], index: 0, kind: input, shape index: {}]
  %s1 = inlined_call_operand.hbm [shape: f32[9,48,128], index: 1, kind: input, shape index: {}]
  %s2 = inlined_call_operand.vmem [shape: bf16[48,32], index: 2, kind: input, shape index: {}]
  %s3 = inlined_call_operand.vmem [shape: f32[16,1], index: 3, kind: input, shape index: {}]
  %s4 = inlined_call_operand.vmem [shape: bf16[64,32], index: 4, kind: input, shape index: {}]
  %s5 = inlined_call_operand.vmem [shape: bf16[32,32], index: 5, kind: input, shape index: {}]
  %s6 = inlined_call_operand.<no memory space> [shape: f32[1,1], index: 6, kind: input, shape index: {}]
  %s7 = inlined_call_operand.hbm [shape: bf16[16,32,128], index: 7, kind: output, shape index: {0}]
  %s8 = inlined_call_operand.vmem [shape: f32[16,32,16], index: 8, kind: output, shape index: {1}]
  %9 = xla_tuple %s7, %s8
  %s10 = sld [smem:[#allocation0]]
  $region77: #{tpu_custom_call.1} parent=0
    _
  %s12 = ssub.s32 1, %s10
  %s13 = scalar_select 0, %s12, %s10
  %14 = sst [smem:[#allocation2]] %s6
  $region1: #{tpu_custom_call.1} parent=0
    #allocation3 [shape = 'u8[131072]{0}', space=vmem, size = 0x20000, scoped, tag = 'input window, operand 0']
    #allocation4 [shape = 's32[2]{0}', space=sflag, size = 0x8, scoped, tag = 'scoped memory for tpu_custom_call.1']
    #allocation5 [shape = 's32[2]{0}', space=sflag, size = 0x8, scoped, tag = 'scoped memory for tpu_custom_call.1']
    #allocation6 [shape = 'u8[221184]{0}', space=vmem, size = 0x36000, scoped, tag = 'input window, operand 1, single buffered']
    #allocation7 [shape = 's32[1]{0}', space=sflag, size = 0x4, scoped, tag = 'scoped memory for tpu_custom_call.1']
    #allocation8 [shape = 'u8[65536]{0}', space=vmem, size = 0x10000, scoped, tag = 'output window, operand 0']
    %15 = vsyncpa [#allocation4], 0
    %s16 = scalar_lea.sflag [#allocation4], 1
    %17 = vsyncpa %s16, 0
    %18 = vsyncpa [#allocation7], 0
    %19 = vsyncpa [#allocation5], 0
    %s20 = scalar_lea.sflag [#allocation5], 1
    %21 = vsyncpa %s20, 0
    loop: start=0, step=1, limit=6
    $region2: #{tpu_custom_call.1} parent=1 // loop_pre_header
      _
    $region3: #{tpu_custom_call.1} parent=1 // loop_header
      %s23 = sphi 0, %s27
      %p24 = scmp.ge.s32.totalorder %s23, 6
      %s33 = sphi 0, %s35
      %s36 = sphi 0, %s33
      %s37 = sphi 0, %s36
      %s53 = sphi 0, %s37
      %s57 = sphi 0, %s57
      %s59 = sphi 0, %s57
      %s60 = sphi 0, %s59
      %s74 = sphi 0, %s60
      %s78 = sphi 0, %s78
      %s80 = sphi 0, %s78
      %s81 = sphi 0, %s80
      %s95 = sphi 0, %s81
      %s99 = sphi 0, %s99
      %s101 = sphi 0, %s99
      %s102 = sphi 0, %s101
      %s116 = sphi 0, %s102
      %s120 = sphi 0, %s120
      %s122 = sphi 0, %s120
      %s123 = sphi 0, %s122
      %s137 = sphi 0, %s123
      %s141 = sphi 0, %s141
      %s143 = sphi 0, %s141
      %s144 = sphi 0, %s143
      %s158 = sphi 0, %s144
      %s162 = sphi 0, %s162
      %s164 = sphi 0, %s162
      %s165 = sphi 0, %s164
      %s179 = sphi 0, %s165
      %s185 = sphi 0, %s187
      %s188 = sphi 0, %s185
      %s189 = sphi 0, %s188
      %s205 = sphi 0, %s189
      %s211 = sphi 0, %s213
      %s214 = sphi 0, %s211
      %s215 = sphi 0, %s214
      %s231 = sphi 0, %s215
    $region4: #{tpu_custom_call.1} parent=1 // loop_header_branch
      %26 = sbr.rel (%p24) target = $region8
    $region5: #{tpu_custom_call.1} parent=1 // loop_body
      %s28 = ssub.s32 %s23, 1
      %s29 = ssub.s32 %s23, 2
      %s30 = sadd.s32 %s23, 1
      %s31 = ssub.s32 %s23, %s30
      %p32 = scmp.eq.s32.totalorder %s31, 0
      %s34 = sadd.s32 %s33, 1
      %s35 = scalar_select %p32, %s33, %s34
      %p38 = pneg %p32
      %p39 = scmp.eq.s32.totalorder %s23, 3
      %p40 = por %p38, %p39
      %p41 = scmp.ne.s32.totalorder %s33, %s36
      %p42 = scmp.eq.s32.totalorder %s23, 0
      %p43 = por %p41, %p42
      %p44 = scmp.ne.s32.totalorder %s33, %s36
      %p45 = scmp.eq.s32.totalorder %s28, 3
      %p46 = por %p44, %p45
      %p47 = scmp.ne.s32.totalorder %s36, %s37
      %p48 = scmp.eq.s32.totalorder %s28, 0
      %p49 = por %p47, %p48
      %p50 = scmp.ne.s32.totalorder %s36, %s37
      %p51 = scmp.eq.s32.totalorder %s29, 3
      %p52 = por %p50, %p51
      %p54 = scmp.ne.s32.totalorder %s37, %s53
      %p55 = scmp.eq.s32.totalorder %s29, 0
      %p56 = por %p54, %p55
      %s58 = sadd.s32 %s57, 1
      %p61 = scmp.eq.s32.totalorder %s23, 3
      %p62 = scmp.ne.s32.totalorder %s57, %s59
      %p63 = scmp.eq.s32.totalorder %s23, 0
      %p64 = por %p62, %p63
      %p65 = scmp.ne.s32.totalorder %s57, %s59
      %p66 = scmp.eq.s32.totalorder %s28, 3
      %p67 = por %p65, %p66
      %p68 = scmp.ne.s32.totalorder %s59, %s60
      %p69 = scmp.eq.s32.totalorder %s28, 0
      %p70 = por %p68, %p69
      %p71 = scmp.ne.s32.totalorder %s59, %s60
      %p72 = scmp.eq.s32.totalorder %s29, 3
      %p73 = por %p71, %p72
      %p75 = scmp.ne.s32.totalorder %s60, %s74
      %p76 = scmp.eq.s32.totalorder %s29, 0
      %p77 = por %p75, %p76
      %s79 = sadd.s32 %s78, 1
      %p82 = scmp.eq.s32.totalorder %s23, 3
      %p83 = scmp.ne.s32.totalorder %s78, %s80
      %p84 = scmp.eq.s32.totalorder %s23, 0
      %p85 = por %p83, %p84
      %p86 = scmp.ne.s32.totalorder %s78, %s80
      %p87 = scmp.eq.s32.totalorder %s28, 3
      %p88 = por %p86, %p87
      %p89 = scmp.ne.s32.totalorder %s80, %s81
      %p90 = scmp.eq.s32.totalorder %s28, 0
      %p91 = por %p89, %p90
      %p92 = scmp.ne.s32.totalorder %s80, %s81
      %p93 = scmp.eq.s32.totalorder %s29, 3
      %p94 = por %p92, %p93
      %p96 = scmp.ne.s32.totalorder %s81, %s95
      %p97 = scmp.eq.s32.totalorder %s29, 0
      %p98 = por %p96, %p97
      %s100 = sadd.s32 %s99, 1
      %p103 = scmp.eq.s32.totalorder %s23, 3
      %p104 = scmp.ne.s32.totalorder %s99, %s101
      %p105 = scmp.eq.s32.totalorder %s23, 0
      %p106 = por %p104, %p105
      %p107 = scmp.ne.s32.totalorder %s99, %s101
      %p108 = scmp.eq.s32.totalorder %s28, 3
      %p109 = por %p107, %p108
      %p110 = scmp.ne.s32.totalorder %s101, %s102
      %p111 = scmp.eq.s32.totalorder %s28, 0
      %p112 = por %p110, %p111
      %p113 = scmp.ne.s32.totalorder %s101, %s102
      %p114 = scmp.eq.s32.totalorder %s29, 3
      %p115 = por %p113, %p114
      %p117 = scmp.ne.s32.totalorder %s102, %s116
      %p118 = scmp.eq.s32.totalorder %s29, 0
      %p119 = por %p117, %p118
      %s121 = sadd.s32 %s120, 1
      %p124 = scmp.eq.s32.totalorder %s23, 3
      %p125 = scmp.ne.s32.totalorder %s120, %s122
      %p126 = scmp.eq.s32.totalorder %s23, 0
      %p127 = por %p125, %p126
      %p128 = scmp.ne.s32.totalorder %s120, %s122
      %p129 = scmp.eq.s32.totalorder %s28, 3
      %p130 = por %p128, %p129
      %p131 = scmp.ne.s32.totalorder %s122, %s123
      %p132 = scmp.eq.s32.totalorder %s28, 0
      %p133 = por %p131, %p132
      %p134 = scmp.ne.s32.totalorder %s122, %s123
      %p135 = scmp.eq.s32.totalorder %s29, 3
      %p136 = por %p134, %p135
      %p138 = scmp.ne.s32.totalorder %s123, %s137
      %p139 = scmp.eq.s32.totalorder %s29, 0
      %p140 = por %p138, %p139
      %s142 = sadd.s32 %s141, 1
      %p145 = scmp.eq.s32.totalorder %s23, 3
      %p146 = scmp.ne.s32.totalorder %s141, %s143
      %p147 = scmp.eq.s32.totalorder %s23, 0
      %p148 = por %p146, %p147
      %p149 = scmp.ne.s32.totalorder %s141, %s143
      %p150 = scmp.eq.s32.totalorder %s28, 3
      %p151 = por %p149, %p150
      %p152 = scmp.ne.s32.totalorder %s143, %s144
      %p153 = scmp.eq.s32.totalorder %s28, 0
      %p154 = por %p152, %p153
      %p155 = scmp.ne.s32.totalorder %s143, %s144
      %p156 = scmp.eq.s32.totalorder %s29, 3
      %p157 = por %p155, %p156
      %p159 = scmp.ne.s32.totalorder %s144, %s158
      %p160 = scmp.eq.s32.totalorder %s29, 0
      %p161 = por %p159, %p160
      %s163 = sadd.s32 %s162, 1
      %p166 = scmp.eq.s32.totalorder %s23, 3
      %p167 = scmp.ne.s32.totalorder %s162, %s164
      %p168 = scmp.eq.s32.totalorder %s23, 0
      %p169 = por %p167, %p168
      %p170 = scmp.ne.s32.totalorder %s162, %s164
      %p171 = scmp.eq.s32.totalorder %s28, 3
      %p172 = por %p170, %p171
      %p173 = scmp.ne.s32.totalorder %s164, %s165
      %p174 = scmp.eq.s32.totalorder %s28, 0
      %p175 = por %p173, %p174
      %p176 = scmp.ne.s32.totalorder %s164, %s165
      %p177 = scmp.eq.s32.totalorder %s29, 3
      %p178 = por %p176, %p177
      %p180 = scmp.ne.s32.totalorder %s165, %s179
      %p181 = scmp.eq.s32.totalorder %s29, 0
      %p182 = por %p180, %p181
      %s183 = ssub.s32 %s23, %s30
      %p184 = scmp.eq.s32.totalorder %s183, 0
      %s186 = sadd.s32 %s185, 1
      %s187 = scalar_select %p184, %s185, %s186
      %p190 = pneg %p184
      %p191 = scmp.eq.s32.totalorder %s23, 3
      %p192 = por %p190, %p191
      %p193 = scmp.ne.s32.totalorder %s185, %s188
      %p194 = scmp.eq.s32.totalorder %s23, 0
      %p195 = por %p193, %p194
      %p196 = scmp.ne.s32.totalorder %s185, %s188
      %p197 = scmp.eq.s32.totalorder %s28, 3
      %p198 = por %p196, %p197
      %p199 = scmp.ne.s32.totalorder %s188, %s189
      %p200 = scmp.eq.s32.totalorder %s28, 0
      %p201 = por %p199, %p200
      %p202 = scmp.ne.s32.totalorder %s188, %s189
      %p203 = scmp.eq.s32.totalorder %s29, 3
      %p204 = por %p202, %p203
      %p206 = scmp.ne.s32.totalorder %s189, %s205
      %p207 = scmp.eq.s32.totalorder %s29, 0
      %p208 = por %p206, %p207
      %s209 = ssub.s32 %s23, %s30
      %p210 = scmp.eq.s32.totalorder %s209, 0
      %s212 = sadd.s32 %s211, 1
      %s213 = scalar_select %p210, %s211, %s212
      %p216 = pneg %p210
      %p217 = scmp.eq.s32.totalorder %s23, 3
      %p218 = por %p216, %p217
      %p219 = scmp.ne.s32.totalorder %s211, %s214
      %p220 = scmp.eq.s32.totalorder %s23, 0
      %p221 = por %p219, %p220
      %p222 = scmp.ne.s32.totalorder %s211, %s214
      %p223 = scmp.eq.s32.totalorder %s28, 3
      %p224 = por %p222, %p223
      %p225 = scmp.ne.s32.totalorder %s214, %s215
      %p226 = scmp.eq.s32.totalorder %s28, 0
      %p227 = por %p225, %p226
      %p228 = scmp.ne.s32.totalorder %s214, %s215
      %p229 = scmp.eq.s32.totalorder %s29, 3
      %p230 = por %p228, %p229
      %p232 = scmp.ne.s32.totalorder %s215, %s231
      %p233 = scmp.eq.s32.totalorder %s29, 0
      %p234 = por %p232, %p233
      %p235 = scmp.le.s32.totalorder 1, %s23
      %p236 = scmp.lt.s32.totalorder %s23, 5
      %p237 = pnand %p235, %p236
      %p238 = pneg %p237
      // Predicated region
      $region9: #{tpu_custom_call.1} parent=5 // pred_check
        _
      $region10: #{tpu_custom_call.1} parent=5 // pred_check_branch
        %240 = sbr.rel (%p237) target = $region12
      $region11: #{tpu_custom_call.1} parent=5 // pred_region
        %s241 = ssub.s32 %s23, 1
        // Predicated region
        $region13: #{tpu_custom_call.1} parent=11 // pred_check
          %p242 = pneg %p70
        $region14: #{tpu_custom_call.1} parent=11 // pred_check_branch
          %244 = sbr.rel (%p242) target = $region16
        $region15: #{tpu_custom_call.1} parent=11 // pred_region
          %s246 = ssub.s32 6912, 6912
          %247 = vsyncadd [#allocation7], %s246
          %s248 = sshll.u32 [#allocation6], 4
          %s249 = int_to_ptr.vmem [resolvable:$true] %s248
          %254 = dma.hbm_to_vmem [thread:$0]  %s1, 6912, %s249, [#allocation7], 128, 128, 8
        $region16: #{tpu_custom_call.1} parent=11 // pred_fallthru
          _
        // Predicated region
        $region17: #{tpu_custom_call.1} parent=11 // pred_check
          %p255 = pneg %p91
        $region18: #{tpu_custom_call.1} parent=11 // pred_check_branch
          %257 = sbr.rel (%p255) target = $region20
        $region19: #{tpu_custom_call.1} parent=11 // pred_region
          _
        $region20: #{tpu_custom_call.1} parent=11 // pred_fallthru
          _
        // Predicated region
        $region21: #{tpu_custom_call.1} parent=11 // pred_check
          %p258 = pneg %p112
        $region22: #{tpu_custom_call.1} parent=11 // pred_check_branch
          %260 = sbr.rel (%p258) target = $region24
        $region23: #{tpu_custom_call.1} parent=11 // pred_region
          _
        $region24: #{tpu_custom_call.1} parent=11 // pred_fallthru
          _
        // Predicated region
        $region25: #{tpu_custom_call.1} parent=11 // pred_check
          %p261 = pneg %p133
        $region26: #{tpu_custom_call.1} parent=11 // pred_check_branch
          %263 = sbr.rel (%p261) target = $region28
        $region27: #{tpu_custom_call.1} parent=11 // pred_region
          _
        $region28: #{tpu_custom_call.1} parent=11 // pred_fallthru
          _
        // Predicated region
        $region29: #{tpu_custom_call.1} parent=11 // pred_check
          %p264 = pneg %p154
        $region30: #{tpu_custom_call.1} parent=11 // pred_check_branch
          %266 = sbr.rel (%p264) target = $region32
        $region31: #{tpu_custom_call.1} parent=11 // pred_region
          _
        $region32: #{tpu_custom_call.1} parent=11 // pred_fallthru
          _
        // Predicated region
        $region33: #{tpu_custom_call.1} parent=11 // pred_check
          %p267 = pneg %p175
        $region34: #{tpu_custom_call.1} parent=11 // pred_check_branch
          %269 = sbr.rel (%p267) target = $region36
        $region35: #{tpu_custom_call.1} parent=11 // pred_region
          _
        $region36: #{tpu_custom_call.1} parent=11 // pred_fallthru
          _
      $region12: #{tpu_custom_call.1} parent=5 // pred_fallthru
        _
      %p270 = scmp.lt.s32.totalorder %s23, 4
      // Predicated region
      $region37: #{tpu_custom_call.1} parent=5 // pred_check
        %p271 = pneg %p270
      $region38: #{tpu_custom_call.1} parent=5 // pred_check_branch
        %273 = sbr.rel (%p271) target = $region40
      $region39: #{tpu_custom_call.1} parent=5 // pred_region
        // Predicated region
        $region41: #{tpu_custom_call.1} parent=39 // pred_check
          %p274 = pneg %p43
        $region42: #{tpu_custom_call.1} parent=39 // pred_check_branch
          %276 = sbr.rel (%p274) target = $region44
        $region43: #{tpu_custom_call.1} parent=39 // pred_region
          %s277 = sand.u32 %s33, 1
          %s278 = scalar_lea.sflag [#allocation4], %s277
          %s279 = sand.u32 %s33, 1
          %s280 = smul.addr %s279, 128
          %s281 = scalar_lea.vmem [#allocation3], %s280
          %s282 = smul.u32 4, %s23
          %s284 = ssub.s32 2048, 2048
          %285 = vsyncadd %s278, %s284
          %s286 = smul.addr %s282, 4
          %s287 = smul.addr %s286, 128
          %s288 = scalar_lea.hbm %s0, %s287
          %s289 = sshll.u32 %s281, 4
          %s290 = int_to_ptr.vmem [resolvable:$true] %s289
          %295 = dma.hbm_to_vmem [thread:$0]  %s288, 2048, %s290, %s278, 128, 128, 8
        $region44: #{tpu_custom_call.1} parent=39 // pred_fallthru
          _
      $region40: #{tpu_custom_call.1} parent=5 // pred_fallthru
        _
      %p296 = scmp.le.s32.totalorder 1, %s23
      %p297 = scmp.lt.s32.totalorder %s23, 5
      %p298 = pnand %p296, %p297
      %p299 = pneg %p298
      // Predicated region
      $region45: #{tpu_custom_call.1} parent=5 // pred_check
        _
      $region46: #{tpu_custom_call.1} parent=5 // pred_check_branch
        %301 = sbr.rel (%p298) target = $region48
      $region47: #{tpu_custom_call.1} parent=5 // pred_region
        %s302 = ssub.s32 %s23, 1
        %s303 = sand.u32 %s36, 1
        %s304 = scalar_lea.sflag [#allocation4], %s303
        %s305 = sand.u32 %s36, 1
        %s306 = smul.addr %s305, 128
        %s307 = scalar_lea.vmem [#allocation3], %s306
        // Predicated region
        $region49: #{tpu_custom_call.1} parent=47 // pred_check
          %p308 = pneg %p49
        $region50: #{tpu_custom_call.1} parent=47 // pred_check_branch
          %310 = sbr.rel (%p308) target = $region52
        $region51: #{tpu_custom_call.1} parent=47 // pred_region
          %311 = dma.done %s304, 2048
        $region52: #{tpu_custom_call.1} parent=47 // pred_fallthru
          _
        // Predicated region
        $region53: #{tpu_custom_call.1} parent=47 // pred_check
          %p312 = pneg %p70
        $region54: #{tpu_custom_call.1} parent=47 // pred_check_branch
          %314 = sbr.rel (%p312) target = $region56
        $region55: #{tpu_custom_call.1} parent=47 // pred_region
          %315 = dma.done [#allocation7], 6912
        $region56: #{tpu_custom_call.1} parent=47 // pred_fallthru
          _
        %s316 = sand.u32 %s36, 1
        %s317 = scalar_lea.sflag [#allocation4], %s316
        %s318 = sand.u32 %s36, 1
        %s319 = smul.addr %s318, 128
        %s320 = scalar_lea.vmem [#allocation3], %s319
        %p321 = pneg %p49
        %p322 = pneg %p46
        %p323 = pneg %p70
        %p324 = pneg %p67
        %p325 = pneg %p91
        %p326 = pneg %p88
        %p327 = pneg %p112
        %p328 = pneg %p109
        %p329 = pneg %p133
        %p330 = pneg %p130
        %p331 = pneg %p154
        %p332 = pneg %p151
        %p333 = pneg %p175
        %p334 = pneg %p172
        %p335 = pneg %p201
        %p336 = pneg %p198
        %s337 = sand.u32 %s188, 1
        %s338 = scalar_lea.sflag [#allocation5], %s337
        %s339 = sand.u32 %s188, 1
        %s340 = smul.addr %s339, 64
        %s341 = scalar_lea.vmem [#allocation8], %s340
        %p342 = pneg %p227
        %p343 = pneg %p224
        %s344 = smul.u32 4, %s28
        %p345 = scmp.lt.s32.totalorder %s344, 15
        %s346 = scalar_select %p345, %s344, 15
        %s347 = smul.addr %s346, 4
        %s348 = smul.addr %s347, 8
        %s349 = scalar_lea.vmem %s8, %s348
        %s350 = smul.u32 4, %s28
        %s351 = smul.u32 4, %s28
        %s352 = smul.u32 4, %s28
        %p353 = scmp.lt.s32.totalorder %s352, 15
        %s354 = scalar_select %p353, %s352, 15
        %s355 = smul.addr %s354, 4
        %s356 = smul.addr %s355, 8
        %s357 = scalar_lea.vmem %s8, %s356
        %s358 = smul.u32 4, %s28
        %v360 = vld [vmem:[%s2] sm:$0xf]
        %v361 = vld [vmem:[%s2 + $0x4] sm:$0xf]
        %v362 = vld [vmem:[%s2 + $0x8] sm:$0xf]
        %v363 = vld [vmem:[%s2 + $0xc] sm:$0xf]
        %v364 = vld [vmem:[%s2 + $0x10] sm:$0xf]
        %v365 = vld [vmem:[%s2 + $0x14] sm:$0xf]
        %v366 = vld [vmem:[%s3] sm:$0xff]
        %v367 = vld [vmem:[%s3 + $0x8] sm:$0xff]
        %v368 = vld [vmem:[%s4] sm:$0xf]
        %v369 = vld [vmem:[%s4 + $0x4] sm:$0xf]
        %v370 = vld [vmem:[%s4 + $0x8] sm:$0xf]
        %v371 = vld [vmem:[%s4 + $0xc] sm:$0xf]
        %v372 = vld [vmem:[%s4 + $0x10] sm:$0xf]
        %v373 = vld [vmem:[%s4 + $0x14] sm:$0xf]
        %v374 = vld [vmem:[%s4 + $0x18] sm:$0xf]
        %v375 = vld [vmem:[%s4 + $0x1c] sm:$0xf]
        %v376 = vld [vmem:[%s5] sm:$0xf]
        %v377 = vld [vmem:[%s5 + $0x4] sm:$0xf]
        %v378 = vld [vmem:[%s5 + $0x8] sm:$0xf]
        %v379 = vld [vmem:[%s5 + $0xc] sm:$0xf]
        %s380 = sld [smem:[#allocation2]]
        %v381 = vld [vmem:[%s307] sm:$0xff]
        %v382 = vld [vmem:[%s307 + $0x8] sm:$0xff]
        %v383 = vld [vmem:[%s307 + $0x10] sm:$0xff]
        %v384 = vld [vmem:[%s307 + $0x18] sm:$0xff]
        %v385 = vpack.c.bf16 %v382, %v381
        %v386 = vpack.c.bf16 %v384, %v383
        %v393 = vunpack.c.l.b16 %v360
        %v394 = vunpack.c.l.b16 %v361
        %v395 = vunpack.c.l.b16 %v362
        %v396 = vunpack.c.l.b16 %v363
        %v397 = vunpack.c.l.b16 %v364
        %v398 = vunpack.c.l.b16 %v365
        %v399 = vpack.c.b16 %v394, %v393
        %v400 = vpack.c.b16 %v396, %v395
        %v401 = vpack.c.b16 %v398, %v397
        %vm402 = vcmask 261120
        %v404 = vsel %vm402, %v399, 0
        %v407 = vsel %vm402, %v400, 0
        %v410 = vsel %vm402, %v401, 0
        %412 = vmatprep.subr.bf16.mxu0 0
        %413 = vmatpush1.bf16.msra.mxu0 %v385
        %414 = vmatprep.subr.bf16.mxu0 0
        %415 = vmatpush1.bf16.msra.mxu0 %v386
        %416 = vmatprep.subr.bf16.mxu0 0
        %417 = vmatpush1.bf16.msra.mxu0 0
        %418 = vmatprep.subr.bf16.mxu0 0
        %419 = vmatpush1.bf16.msra.mxu0 0
        %420 = vmatprep.subr.bf16.mxu0 0
        %421 = vmatpush1.bf16.msra.mxu0 0
        %422 = vmatprep.subr.bf16.mxu0 0
        %423 = vmatpush1.bf16.msra.mxu0 0
        %424 = vmatprep.subr.bf16.mxu0 0
        %425 = vmatpush1.bf16.msra.mxu0 0
        %426 = vmatprep.subr.bf16.mxu0 0
        %427 = vmatpush1.bf16.msra.mxu0 0
        %428 = vmatprep.subr.bf16.mxu0 0
        %429 = vmatpush1.bf16.msra.mxu0 0
        %430 = vmatprep.subr.bf16.mxu0 0
        %431 = vmatpush1.bf16.msra.mxu0 0
        %432 = vmatprep.subr.bf16.mxu0 0
        %433 = vmatpush1.bf16.msra.mxu0 0
        %434 = vmatprep.subr.bf16.mxu0 0
        %435 = vmatpush1.bf16.msra.mxu0 0
        %436 = vmatprep.subr.bf16.mxu0 0
        %437 = vmatpush1.bf16.msra.mxu0 0
        %438 = vmatprep.subr.bf16.mxu0 0
        %439 = vmatpush1.bf16.msra.mxu0 0
        %440 = vmatprep.subr.bf16.mxu0 0
        %441 = vmatpush1.bf16.msra.mxu0 0
        %442 = vmatprep.subr.bf16.mxu0 0
        %443 = vmatpush1.bf16.msra.mxu0 0
        %444 = vmatprep.mubr.bf16.mxu0 0
        %445 = vmatmul.mubr.bf16.gmra.mrb[0].mxu0 %v404
        %v446 = vpop.f32.mrb[0].mxu0
        %v447 = vadd.f32 0.0, %v446
        %v448 = vpop.f32.mrb[0].mxu0
        %v449 = vpop.f32.mrb[0].mxu0
        %v450 = vadd.f32 0.0, %v449
        %v451 = vpop.f32.mrb[0].mxu0
        %452 = vmatprep.mubr.bf16.mxu0 0
        %453 = vmatmul.mubr.bf16.gmra.mrb[0].mxu0 %v407
        %v454 = vpop.f32.mrb[0].mxu0
        %v455 = vadd.f32 0.0, %v454
        %v456 = vpop.f32.mrb[0].mxu0
        %v457 = vpop.f32.mrb[0].mxu0
        %v458 = vadd.f32 0.0, %v457
        %v459 = vpop.f32.mrb[0].mxu0
        %460 = vmatprep.mubr.bf16.mxu0 0
        %461 = vmatmul.mubr.bf16.gmra.mrb[0].mxu0 %v410
        %v462 = vpop.f32.mrb[0].mxu0
        %v463 = vadd.f32 0.0, %v462
        %v464 = vpop.f32.mrb[0].mxu0
        %v465 = vpop.f32.mrb[0].mxu0
        %v466 = vadd.f32 0.0, %v465
        %v467 = vpop.f32.mrb[0].mxu0
        %468 = vdwg.mxu0
        %s469 = scalar_lea.vmem [#allocation6], 192
        %v470 = vld [vmem:[%s469] sm:$0xff]
        %v471 = vld [vmem:[%s469 + $0x8] sm:$0xff]
        %v472 = vld [vmem:[%s469 + $0x10] sm:$0xff]
        %v473 = vld [vmem:[%s469 + $0x18] sm:$0xff]
        %v474 = vld [vmem:[%s469 + $0x20] sm:$0xff]
        %v475 = vld [vmem:[%s469 + $0x28] sm:$0xff]
        %v476 = vmul.f32 %v470, %v447
        %v477 = vmul.f32 %v471, %v450
        %v478 = vmul.f32 %v472, %v455
        %v479 = vmul.f32 %v473, %v458
        %v480 = vmul.f32 %v474, %v463
        %v481 = vmul.f32 %v475, %v466
        %482 = vrot.lane.b32.xlu0 %v447, 17
        %v483 = vpop.permute.xlu0 %482
        %484 = vrot.lane.b32.xlu0 %v450, 17
        %v485 = vpop.permute.xlu0 %484
        %486 = vrot.lane.b32.xlu0 %v455, 17
        %v487 = vpop.permute.xlu0 %486
        %488 = vrot.lane.b32.xlu0 %v458, 17
        %v489 = vpop.permute.xlu0 %488
        %490 = vrot.lane.b32.xlu0 %v463, 17
        %v491 = vpop.permute.xlu0 %490
        %492 = vrot.lane.b32.xlu0 %v466, 17
        %v493 = vpop.permute.xlu0 %492
        %v494 = vld [vmem:[#allocation6] sm:$0xff]
        %v495 = vld [vmem:[#allocation6 + $0x8] sm:$0xff]
        %v496 = vld [vmem:[#allocation6 + $0x10] sm:$0xff]
        %v497 = vld [vmem:[#allocation6 + $0x18] sm:$0xff]
        %v498 = vld [vmem:[#allocation6 + $0x20] sm:$0xff]
        %v499 = vld [vmem:[#allocation6 + $0x28] sm:$0xff]
        %v500 = vmul.f32 %v494, %v483
        %v501 = vmul.f32 %v495, %v485
        %v502 = vmul.f32 %v496, %v487
        %v503 = vmul.f32 %v497, %v489
        %v504 = vmul.f32 %v498, %v491
        %v505 = vmul.f32 %v499, %v493
        %v506 = vadd.f32 %v476, %v500
        %v507 = vadd.f32 %v477, %v501
        %v508 = vadd.f32 %v478, %v502
        %v509 = vadd.f32 %v479, %v503
        %v510 = vadd.f32 %v480, %v504
        %v511 = vadd.f32 %v481, %v505
        %512 = vrot.lane.b32.xlu0 %v447, 16
        %v513 = vpop.permute.xlu0 %512
        %514 = vrot.lane.b32.xlu0 %v450, 16
        %v515 = vpop.permute.xlu0 %514
        %516 = vrot.lane.b32.xlu0 %v455, 16
        %v517 = vpop.permute.xlu0 %516
        %518 = vrot.lane.b32.xlu0 %v458, 16
        %v519 = vpop.permute.xlu0 %518
        %520 = vrot.lane.b32.xlu0 %v463, 16
        %v521 = vpop.permute.xlu0 %520
        %522 = vrot.lane.b32.xlu0 %v466, 16
        %v523 = vpop.permute.xlu0 %522
        %s524 = scalar_lea.vmem [#allocation6], 48
        %v525 = vld [vmem:[%s524] sm:$0xff]
        %v526 = vld [vmem:[%s524 + $0x8] sm:$0xff]
        %v527 = vld [vmem:[%s524 + $0x10] sm:$0xff]
        %v528 = vld [vmem:[%s524 + $0x18] sm:$0xff]
        %v529 = vld [vmem:[%s524 + $0x20] sm:$0xff]
        %v530 = vld [vmem:[%s524 + $0x28] sm:$0xff]
        %v531 = vmul.f32 %v525, %v513
        %v532 = vmul.f32 %v526, %v515
        %v533 = vmul.f32 %v527, %v517
        %v534 = vmul.f32 %v528, %v519
        %v535 = vmul.f32 %v529, %v521
        %v536 = vmul.f32 %v530, %v523
        %v537 = vadd.f32 %v506, %v531
        %v538 = vadd.f32 %v507, %v532
        %v539 = vadd.f32 %v508, %v533
        %v540 = vadd.f32 %v509, %v534
        %v541 = vadd.f32 %v510, %v535
        %v542 = vadd.f32 %v511, %v536
        %543 = vrot.lane.b32.xlu0 %v447, 15
        %v544 = vpop.permute.xlu0 %543
        %545 = vrot.lane.b32.xlu0 %v450, 15
        %v546 = vpop.permute.xlu0 %545
        %547 = vrot.lane.b32.xlu0 %v455, 15
        %v548 = vpop.permute.xlu0 %547
        %549 = vrot.lane.b32.xlu0 %v458, 15
        %v550 = vpop.permute.xlu0 %549
        %551 = vrot.lane.b32.xlu0 %v463, 15
        %v552 = vpop.permute.xlu0 %551
        %553 = vrot.lane.b32.xlu0 %v466, 15
        %v554 = vpop.permute.xlu0 %553
        %s555 = scalar_lea.vmem [#allocation6], 96
        %v556 = vld [vmem:[%s555] sm:$0xff]
        %v557 = vld [vmem:[%s555 + $0x8] sm:$0xff]
        %v558 = vld [vmem:[%s555 + $0x10] sm:$0xff]
        %v559 = vld [vmem:[%s555 + $0x18] sm:$0xff]
        %v560 = vld [vmem:[%s555 + $0x20] sm:$0xff]
        %v561 = vld [vmem:[%s555 + $0x28] sm:$0xff]
        %v562 = vmul.f32 %v556, %v544
        %v563 = vmul.f32 %v557, %v546
        %v564 = vmul.f32 %v558, %v548
        %v565 = vmul.f32 %v559, %v550
        %v566 = vmul.f32 %v560, %v552
        %v567 = vmul.f32 %v561, %v554
        %v568 = vadd.f32 %v537, %v562
        %v569 = vadd.f32 %v538, %v563
        %v570 = vadd.f32 %v539, %v564
        %v571 = vadd.f32 %v540, %v565
        %v572 = vadd.f32 %v541, %v566
        %v573 = vadd.f32 %v542, %v567
        %574 = vrot.lane.b32.xlu0 %v447, 1
        %v575 = vpop.permute.xlu0 %574
        %576 = vrot.lane.b32.xlu0 %v450, 1
        %v577 = vpop.permute.xlu0 %576
        %578 = vrot.lane.b32.xlu0 %v455, 1
        %v579 = vpop.permute.xlu0 %578
        %580 = vrot.lane.b32.xlu0 %v458, 1
        %v581 = vpop.permute.xlu0 %580
        %582 = vrot.lane.b32.xlu0 %v463, 1
        %v583 = vpop.permute.xlu0 %582
        %584 = vrot.lane.b32.xlu0 %v466, 1
        %v585 = vpop.permute.xlu0 %584
        %s586 = scalar_lea.vmem [#allocation6], 144
        %v587 = vld [vmem:[%s586] sm:$0xff]
        %v588 = vld [vmem:[%s586 + $0x8] sm:$0xff]
        %v589 = vld [vmem:[%s586 + $0x10] sm:$0xff]
        %v590 = vld [vmem:[%s586 + $0x18] sm:$0xff]
        %v591 = vld [vmem:[%s586 + $0x20] sm:$0xff]
        %v592 = vld [vmem:[%s586 + $0x28] sm:$0xff]
        %v593 = vmul.f32 %v587, %v575
        %v594 = vmul.f32 %v588, %v577
        %v595 = vmul.f32 %v589, %v579
        %v596 = vmul.f32 %v590, %v581
        %v597 = vmul.f32 %v591, %v583
        %v598 = vmul.f32 %v592, %v585
        %v599 = vadd.f32 %v568, %v593
        %v600 = vadd.f32 %v569, %v594
        %v601 = vadd.f32 %v570, %v595
        %v602 = vadd.f32 %v571, %v596
        %v603 = vadd.f32 %v572, %v597
        %v604 = vadd.f32 %v573, %v598
        %605 = vrot.lane.b32.xlu0 %v447, 127
        %v606 = vpop.permute.xlu0 %605
        %607 = vrot.lane.b32.xlu0 %v450, 127
        %v608 = vpop.permute.xlu0 %607
        %609 = vrot.lane.b32.xlu0 %v455, 127
        %v610 = vpop.permute.xlu0 %609
        %611 = vrot.lane.b32.xlu0 %v458, 127
        %v612 = vpop.permute.xlu0 %611
        %613 = vrot.lane.b32.xlu0 %v463, 127
        %v614 = vpop.permute.xlu0 %613
        %615 = vrot.lane.b32.xlu0 %v466, 127
        %v616 = vpop.permute.xlu0 %615
        %s617 = scalar_lea.vmem [#allocation6], 240
        %v618 = vld [vmem:[%s617] sm:$0xff]
        %v619 = vld [vmem:[%s617 + $0x8] sm:$0xff]
        %v620 = vld [vmem:[%s617 + $0x10] sm:$0xff]
        %v621 = vld [vmem:[%s617 + $0x18] sm:$0xff]
        %v622 = vld [vmem:[%s617 + $0x20] sm:$0xff]
        %v623 = vld [vmem:[%s617 + $0x28] sm:$0xff]
        %v624 = vmul.f32 %v618, %v606
        %v625 = vmul.f32 %v619, %v608
        %v626 = vmul.f32 %v620, %v610
        %v627 = vmul.f32 %v621, %v612
        %v628 = vmul.f32 %v622, %v614
        %v629 = vmul.f32 %v623, %v616
        %v630 = vadd.f32 %v599, %v624
        %v631 = vadd.f32 %v600, %v625
        %v632 = vadd.f32 %v601, %v626
        %v633 = vadd.f32 %v602, %v627
        %v634 = vadd.f32 %v603, %v628
        %v635 = vadd.f32 %v604, %v629
        %636 = vrot.lane.b32.xlu0 %v447, 113
        %v637 = vpop.permute.xlu0 %636
        %638 = vrot.lane.b32.xlu0 %v450, 113
        %v639 = vpop.permute.xlu0 %638
        %640 = vrot.lane.b32.xlu0 %v455, 113
        %v641 = vpop.permute.xlu0 %640
        %642 = vrot.lane.b32.xlu0 %v458, 113
        %v643 = vpop.permute.xlu0 %642
        %644 = vrot.lane.b32.xlu0 %v463, 113
        %v645 = vpop.permute.xlu0 %644
        %646 = vrot.lane.b32.xlu0 %v466, 113
        %v647 = vpop.permute.xlu0 %646
        %s648 = scalar_lea.vmem [#allocation6], 288
        %v649 = vld [vmem:[%s648] sm:$0xff]
        %v650 = vld [vmem:[%s648 + $0x8] sm:$0xff]
        %v651 = vld [vmem:[%s648 + $0x10] sm:$0xff]
        %v652 = vld [vmem:[%s648 + $0x18] sm:$0xff]
        %v653 = vld [vmem:[%s648 + $0x20] sm:$0xff]
        %v654 = vld [vmem:[%s648 + $0x28] sm:$0xff]
        %v655 = vmul.f32 %v649, %v637
        %v656 = vmul.f32 %v650, %v639
        %v657 = vmul.f32 %v651, %v641
        %v658 = vmul.f32 %v652, %v643
        %v659 = vmul.f32 %v653, %v645
        %v660 = vmul.f32 %v654, %v647
        %v661 = vadd.f32 %v630, %v655
        %v662 = vadd.f32 %v631, %v656
        %v663 = vadd.f32 %v632, %v657
        %v664 = vadd.f32 %v633, %v658
        %v665 = vadd.f32 %v634, %v659
        %v666 = vadd.f32 %v635, %v660
        %667 = vrot.lane.b32.xlu0 %v447, 112
        %v668 = vpop.permute.xlu0 %667
        %669 = vrot.lane.b32.xlu0 %v450, 112
        %v670 = vpop.permute.xlu0 %669
        %671 = vrot.lane.b32.xlu0 %v455, 112
        %v672 = vpop.permute.xlu0 %671
        %673 = vrot.lane.b32.xlu0 %v458, 112
        %v674 = vpop.permute.xlu0 %673
        %675 = vrot.lane.b32.xlu0 %v463, 112
        %v676 = vpop.permute.xlu0 %675
        %677 = vrot.lane.b32.xlu0 %v466, 112
        %v678 = vpop.permute.xlu0 %677
        %s679 = scalar_lea.vmem [#allocation6], 336
        %v680 = vld [vmem:[%s679] sm:$0xff]
        %v681 = vld [vmem:[%s679 + $0x8] sm:$0xff]
        %v682 = vld [vmem:[%s679 + $0x10] sm:$0xff]
        %v683 = vld [vmem:[%s679 + $0x18] sm:$0xff]
        %v684 = vld [vmem:[%s679 + $0x20] sm:$0xff]
        %v685 = vld [vmem:[%s679 + $0x28] sm:$0xff]
        %v686 = vmul.f32 %v680, %v668
        %v687 = vmul.f32 %v681, %v670
        %v688 = vmul.f32 %v682, %v672
        %v689 = vmul.f32 %v683, %v674
        %v690 = vmul.f32 %v684, %v676
        %v691 = vmul.f32 %v685, %v678
        %v692 = vadd.f32 %v661, %v686
        %v693 = vadd.f32 %v662, %v687
        %v694 = vadd.f32 %v663, %v688
        %v695 = vadd.f32 %v664, %v689
        %v696 = vadd.f32 %v665, %v690
        %v697 = vadd.f32 %v666, %v691
        %698 = vrot.lane.b32.xlu0 %v447, 111
        %v699 = vpop.permute.xlu0 %698
        %700 = vrot.lane.b32.xlu0 %v450, 111
        %v701 = vpop.permute.xlu0 %700
        %702 = vrot.lane.b32.xlu0 %v455, 111
        %v703 = vpop.permute.xlu0 %702
        %704 = vrot.lane.b32.xlu0 %v458, 111
        %v705 = vpop.permute.xlu0 %704
        %706 = vrot.lane.b32.xlu0 %v463, 111
        %v707 = vpop.permute.xlu0 %706
        %708 = vrot.lane.b32.xlu0 %v466, 111
        %v709 = vpop.permute.xlu0 %708
        %s710 = scalar_lea.vmem [#allocation6], 384
        %v711 = vld [vmem:[%s710] sm:$0xff]
        %v712 = vld [vmem:[%s710 + $0x8] sm:$0xff]
        %v713 = vld [vmem:[%s710 + $0x10] sm:$0xff]
        %v714 = vld [vmem:[%s710 + $0x18] sm:$0xff]
        %v715 = vld [vmem:[%s710 + $0x20] sm:$0xff]
        %v716 = vld [vmem:[%s710 + $0x28] sm:$0xff]
        %v717 = vmul.f32 %v711, %v699
        %v718 = vmul.f32 %v712, %v701
        %v719 = vmul.f32 %v713, %v703
        %v720 = vmul.f32 %v714, %v705
        %v721 = vmul.f32 %v715, %v707
        %v722 = vmul.f32 %v716, %v709
        %v723 = vadd.f32 %v692, %v717
        %v724 = vadd.f32 %v693, %v718
        %v725 = vadd.f32 %v694, %v719
        %v726 = vadd.f32 %v695, %v720
        %v727 = vadd.f32 %v696, %v721
        %v728 = vadd.f32 %v697, %v722
        %730 = vset.pattern.permute.xlu0 0
        %731 = vperm.xlu0 %730, %v366
        %v732 = vpop.permute.xlu0 %731
        %735 = vset.pattern.permute.xlu0 0
        %736 = vperm.xlu0 %735, %v367
        %v737 = vpop.permute.xlu0 %736
        %v739 = vadd.f32 %v727, %v732
        %v740 = vadd.f32 %v728, %v737
        %741 = vmax.xlane.f32.xlu0 %v739
        %v742 = vpop.xlane.xlu0 %741
        %743 = vmax.xlane.f32.xlu0 %v740
        %v744 = vpop.xlane.xlu0 %743
        %v745 = vsub.f32 %v739, %v742
        %v746 = vsub.f32 %v740, %v744
        %v747 = vmul.f32 %v745, 1.442695
        %v748 = vpow.pop %v747
        %v749 = vmul.f32 %v746, 1.442695
        %v750 = vpow.pop %v749
        %751 = vadd.xlane.f32.xlu0 %v748
        %v752 = vpop.xlane.xlu0 %751
        %753 = vadd.xlane.f32.xlu0 %v750
        %v754 = vpop.xlane.xlu0 %753
        %v755 = vrcp.pop %v752
        %v756 = vrcp.pop %v754
        %v757 = vmul.f32 %v748, %v755
        %v758 = vmul.f32 %v750, %v756
        %v759 = vmul.f32 %v757, %v723
        %v760 = vmul.f32 %v758, %v724
        %v761 = vpack.c.bf16 %v760, %v759
        %762 = vmatprep.subr.bf16.mxu0 0
        %763 = vmatpush1.bf16.xpose.msra.mxu0 %v761
        %764 = vmatprep.subr.bf16.mxu0 0
        %765 = vmatpush1.bf16.xpose.msra.mxu0 0
        %766 = vmatprep.subr.bf16.mxu0 0
        %767 = vmatpush1.bf16.xpose.msra.mxu0 0
        %768 = vmatprep.subr.bf16.mxu0 0
        %769 = vmatpush1.bf16.xpose.msra.mxu0 0
        %770 = vmatprep.subr.bf16.mxu0 0
        %771 = vmatpush1.bf16.xpose.msra.mxu0 0
        %772 = vmatprep.subr.bf16.mxu0 0
        %773 = vmatpush1.bf16.xpose.msra.mxu0 0
        %774 = vmatprep.subr.bf16.mxu0 0
        %775 = vmatpush1.bf16.xpose.msra.mxu0 0
        %776 = vmatprep.subr.bf16.mxu0 0
        %777 = vmatpush1.bf16.xpose.msra.mxu0 0
        %778 = vmatprep.subr.bf16.mxu0 0
        %779 = vmatpush1.bf16.xpose.msra.mxu0 0
        %780 = vmatprep.subr.bf16.mxu0 0
        %781 = vmatpush1.bf16.xpose.msra.mxu0 0
        %782 = vmatprep.subr.bf16.mxu0 0
        %783 = vmatpush1.bf16.xpose.msra.mxu0 0
        %784 = vmatprep.subr.bf16.mxu0 0
        %785 = vmatpush1.bf16.xpose.msra.mxu0 0
        %786 = vmatprep.subr.bf16.mxu0 0
        %787 = vmatpush1.bf16.xpose.msra.mxu0 0
        %788 = vmatprep.subr.bf16.mxu0 0
        %789 = vmatpush1.bf16.xpose.msra.mxu0 0
        %790 = vmatprep.subr.bf16.mxu0 0
        %791 = vmatpush1.bf16.xpose.msra.mxu0 0
        %792 = vmatprep.subr.bf16.mxu0 0
        %793 = vmatpush1.bf16.xpose.msra.mxu0 0
        %794 = vmatprep.mubr.bf16.mxu0 0
        %795 = vmatmul.mubr.bf16.gmra.mrb[0].mxu0 %v385
        %v796 = vpop.f32.mrb[0].mxu0
        %v797 = vadd.f32 0.0, %v796
        %v798 = vpop.f32.mrb[0].mxu0
        %v799 = vpop.f32.mrb[0].mxu0
        %v800 = vadd.f32 0.0, %v799
        %v801 = vpop.f32.mrb[0].mxu0
        %802 = vmatprep.mubr.bf16.mxu0 0
        %803 = vmatmul.mubr.bf16.gmra.mrb[0].mxu0 %v386
        %v804 = vpop.f32.mrb[0].mxu0
        %v805 = vadd.f32 0.0, %v804
        %v806 = vpop.f32.mrb[0].mxu0
        %v807 = vpop.f32.mrb[0].mxu0
        %v808 = vadd.f32 0.0, %v807
        %v809 = vpop.f32.mrb[0].mxu0
        %810 = vdwg.mxu0
        %v811 = vpack.c.bf16 %v800, %v797
        %v812 = vpack.c.bf16 %v808, %v805
        %v821 = vunpack.c.l.b16 %v368
        %v822 = vunpack.c.l.b16 %v369
        %v823 = vunpack.c.l.b16 %v370
        %v824 = vunpack.c.l.b16 %v371
        %v825 = vunpack.c.l.b16 %v372
        %v826 = vunpack.c.l.b16 %v373
        %v827 = vunpack.c.l.b16 %v374
        %v828 = vunpack.c.l.b16 %v375
        %v829 = vpack.c.b16 %v822, %v821
        %v830 = vpack.c.b16 %v824, %v823
        %v831 = vpack.c.b16 %v826, %v825
        %v832 = vpack.c.b16 %v828, %v827
        %v834 = vsel %vm402, %v829, 0
        %v837 = vsel %vm402, %v830, 0
        %v840 = vsel %vm402, %v831, 0
        %v843 = vsel %vm402, %v832, 0
        %845 = vmatprep.subr.bf16.mxu0 0
        %846 = vmatpush1.bf16.msra.mxu0 %v811
        %847 = vmatprep.subr.bf16.mxu0 0
        %848 = vmatpush1.bf16.msra.mxu0 %v812
        %849 = vmatprep.subr.bf16.mxu0 0
        %850 = vmatpush1.bf16.msra.mxu0 0
        %851 = vmatprep.subr.bf16.mxu0 0
        %852 = vmatpush1.bf16.msra.mxu0 0
        %853 = vmatprep.subr.bf16.mxu0 0
        %854 = vmatpush1.bf16.msra.mxu0 0
        %855 = vmatprep.subr.bf16.mxu0 0
        %856 = vmatpush1.bf16.msra.mxu0 0
        %857 = vmatprep.subr.bf16.mxu0 0
        %858 = vmatpush1.bf16.msra.mxu0 0
        %859 = vmatprep.subr.bf16.mxu0 0
        %860 = vmatpush1.bf16.msra.mxu0 0
        %861 = vmatprep.subr.bf16.mxu0 0
        %862 = vmatpush1.bf16.msra.mxu0 0
        %863 = vmatprep.subr.bf16.mxu0 0
        %864 = vmatpush1.bf16.msra.mxu0 0
        %865 = vmatprep.subr.bf16.mxu0 0
        %866 = vmatpush1.bf16.msra.mxu0 0
        %867 = vmatprep.subr.bf16.mxu0 0
        %868 = vmatpush1.bf16.msra.mxu0 0
        %869 = vmatprep.subr.bf16.mxu0 0
        %870 = vmatpush1.bf16.msra.mxu0 0
        %871 = vmatprep.subr.bf16.mxu0 0
        %872 = vmatpush1.bf16.msra.mxu0 0
        %873 = vmatprep.subr.bf16.mxu0 0
        %874 = vmatpush1.bf16.msra.mxu0 0
        %875 = vmatprep.subr.bf16.mxu0 0
        %876 = vmatpush1.bf16.msra.mxu0 0
        %877 = vmatprep.mubr.bf16.mxu0 0
        %878 = vmatmul.mubr.bf16.gmra.mrb[0].mxu0 %v834
        %v879 = vpop.f32.mrb[0].mxu0
        %v880 = vadd.f32 0.0, %v879
        %v881 = vpop.f32.mrb[0].mxu0
        %v882 = vpop.f32.mrb[0].mxu0
        %v883 = vadd.f32 0.0, %v882
        %v884 = vpop.f32.mrb[0].mxu0
        %885 = vmatprep.mubr.bf16.mxu0 0
        %886 = vmatmul.mubr.bf16.gmra.mrb[0].mxu0 %v837
        %v887 = vpop.f32.mrb[0].mxu0
        %v888 = vadd.f32 0.0, %v887
        %v889 = vpop.f32.mrb[0].mxu0
        %v890 = vpop.f32.mrb[0].mxu0
        %v891 = vadd.f32 0.0, %v890
        %v892 = vpop.f32.mrb[0].mxu0
        %893 = vmatprep.mubr.bf16.mxu0 0
        %894 = vmatmul.mubr.bf16.gmra.mrb[0].mxu0 %v840
        %v895 = vpop.f32.mrb[0].mxu0
        %v896 = vadd.f32 0.0, %v895
        %v897 = vpop.f32.mrb[0].mxu0
        %v898 = vpop.f32.mrb[0].mxu0
        %v899 = vadd.f32 0.0, %v898
        %v900 = vpop.f32.mrb[0].mxu0
        %901 = vmatprep.mubr.bf16.mxu0 0
        %902 = vmatmul.mubr.bf16.gmra.mrb[0].mxu0 %v843
        %v903 = vpop.f32.mrb[0].mxu0
        %v904 = vadd.f32 0.0, %v903
        %v905 = vpop.f32.mrb[0].mxu0
        %v906 = vpop.f32.mrb[0].mxu0
        %v907 = vadd.f32 0.0, %v906
        %v908 = vpop.f32.mrb[0].mxu0
        %909 = vdwg.mxu0
        %v910 = vsub.f32 0.0, %v896
        %v911 = vsub.f32 0.0, %v899
        %v912 = vsub.f32 0.0, %v904
        %v913 = vsub.f32 0.0, %v907
        %v914 = vmul.f32 %v910, 1.442695
        %v915 = vpow.pop %v914
        %v916 = vmul.f32 %v911, 1.442695
        %v917 = vpow.pop %v916
        %v918 = vmul.f32 %v912, 1.442695
        %v919 = vpow.pop %v918
        %v920 = vmul.f32 %v913, 1.442695
        %v921 = vpow.pop %v920
        %v922 = vadd.f32 %v915, 1.0
        %v923 = vadd.f32 %v917, 1.0
        %v924 = vadd.f32 %v919, 1.0
        %v925 = vadd.f32 %v921, 1.0
        %v926 = vrcp.pop %v922
        %v927 = vrcp.pop %v923
        %v928 = vrcp.pop %v924
        %v929 = vrcp.pop %v925
        %v930 = vmul.f32 %v896, %v926
        %v931 = vmul.f32 %v899, %v927
        %v932 = vmul.f32 %v904, %v928
        %v933 = vmul.f32 %v907, %v929
        %v934 = vstv %s380
        %v935 = vadd.f32 %v930, %v934
        %v936 = vadd.f32 %v931, %v934
        %v937 = vadd.f32 %v932, %v934
        %v938 = vadd.f32 %v933, %v934
        %v939 = vmul.f32 %v880, %v935
        %v940 = vmul.f32 %v883, %v936
        %v941 = vmul.f32 %v888, %v937
        %v942 = vmul.f32 %v891, %v938
        %v943 = vpack.c.bf16 %v940, %v939
        %v944 = vpack.c.bf16 %v942, %v941
        %v949 = vunpack.c.l.b16 %v376
        %v950 = vunpack.c.l.b16 %v377
        %v951 = vunpack.c.l.b16 %v378
        %v952 = vunpack.c.l.b16 %v379
        %v953 = vpack.c.b16 %v950, %v949
        %v954 = vpack.c.b16 %v952, %v951
        %v956 = vsel %vm402, %v953, 0
        %v959 = vsel %vm402, %v954, 0
        %961 = vmatprep.subr.bf16.mxu0 0
        %962 = vmatpush1.bf16.msra.mxu0 %v943
        %963 = vmatprep.subr.bf16.mxu0 0
        %964 = vmatpush1.bf16.msra.mxu0 %v944
        %965 = vmatprep.subr.bf16.mxu0 0
        %966 = vmatpush1.bf16.msra.mxu0 0
        %967 = vmatprep.subr.bf16.mxu0 0
        %968 = vmatpush1.bf16.msra.mxu0 0
        %969 = vmatprep.subr.bf16.mxu0 0
        %970 = vmatpush1.bf16.msra.mxu0 0
        %971 = vmatprep.subr.bf16.mxu0 0
        %972 = vmatpush1.bf16.msra.mxu0 0
        %973 = vmatprep.subr.bf16.mxu0 0
        %974 = vmatpush1.bf16.msra.mxu0 0
        %975 = vmatprep.subr.bf16.mxu0 0
        %976 = vmatpush1.bf16.msra.mxu0 0
        %977 = vmatprep.subr.bf16.mxu0 0
        %978 = vmatpush1.bf16.msra.mxu0 0
        %979 = vmatprep.subr.bf16.mxu0 0
        %980 = vmatpush1.bf16.msra.mxu0 0
        %981 = vmatprep.subr.bf16.mxu0 0
        %982 = vmatpush1.bf16.msra.mxu0 0
        %983 = vmatprep.subr.bf16.mxu0 0
        %984 = vmatpush1.bf16.msra.mxu0 0
        %985 = vmatprep.subr.bf16.mxu0 0
        %986 = vmatpush1.bf16.msra.mxu0 0
        %987 = vmatprep.subr.bf16.mxu0 0
        %988 = vmatpush1.bf16.msra.mxu0 0
        %989 = vmatprep.subr.bf16.mxu0 0
        %990 = vmatpush1.bf16.msra.mxu0 0
        %991 = vmatprep.subr.bf16.mxu0 0
        %992 = vmatpush1.bf16.msra.mxu0 0
        %993 = vmatprep.mubr.bf16.mxu0 0
        %994 = vmatmul.mubr.bf16.gmra.mrb[0].mxu0 %v956
        %v995 = vpop.f32.mrb[0].mxu0
        %v996 = vadd.f32 0.0, %v995
        %v997 = vpop.f32.mrb[0].mxu0
        %v998 = vpop.f32.mrb[0].mxu0
        %v999 = vadd.f32 0.0, %v998
        %v1000 = vpop.f32.mrb[0].mxu0
        %1001 = vmatprep.mubr.bf16.mxu0 0
        %1002 = vmatmul.mubr.bf16.gmra.mrb[0].mxu0 %v959
        %v1003 = vpop.f32.mrb[0].mxu0
        %v1004 = vadd.f32 0.0, %v1003
        %v1005 = vpop.f32.mrb[0].mxu0
        %v1006 = vpop.f32.mrb[0].mxu0
        %v1007 = vadd.f32 0.0, %v1006
        %v1008 = vpop.f32.mrb[0].mxu0
        %1009 = vdwg.mxu0
        %vm1010 = vcmask 130048
        %1011 = vst.msk [vmem:[%s357] sm:$0xff] %vm1010, %v996
        %1012 = vst.msk [vmem:[%s357 + $0x8] sm:$0xff] %vm1010, %v999
        %1013 = vst.msk [vmem:[%s357 + $0x10] sm:$0xff] %vm1010, %v1004
        %1014 = vst.msk [vmem:[%s357 + $0x18] sm:$0xff] %vm1010, %v1007
        %v1015 = vpack.c.bf16 %v999, %v996
        %v1016 = vpack.c.bf16 %v1007, %v1004
        %v1017 = vpack.c.bf16 %v726, %v725
        %v1019 = vsel %vm1010, %v1015, 0
        %v1022 = vsel %vm1010, %v1016, 0
        %1024 = vmatprep.subr.bf16.mxu0 0
        %1025 = vmatpush1.bf16.msra.mxu0 %v1017
        %1026 = vmatprep.subr.bf16.mxu0 0
        %1027 = vmatpush1.bf16.msra.mxu0 0
        %1028 = vmatprep.subr.bf16.mxu0 0
        %1029 = vmatpush1.bf16.msra.mxu0 0
        %1030 = vmatprep.subr.bf16.mxu0 0
        %1031 = vmatpush1.bf16.msra.mxu0 0
        %1032 = vmatprep.subr.bf16.mxu0 0
        %1033 = vmatpush1.bf16.msra.mxu0 0
        %1034 = vmatprep.subr.bf16.mxu0 0
        %1035 = vmatpush1.bf16.msra.mxu0 0
        %1036 = vmatprep.subr.bf16.mxu0 0
        %1037 = vmatpush1.bf16.msra.mxu0 0
        %1038 = vmatprep.subr.bf16.mxu0 0
        %1039 = vmatpush1.bf16.msra.mxu0 0
        %1040 = vmatprep.subr.bf16.mxu0 0
        %1041 = vmatpush1.bf16.msra.mxu0 0
        %1042 = vmatprep.subr.bf16.mxu0 0
        %1043 = vmatpush1.bf16.msra.mxu0 0
        %1044 = vmatprep.subr.bf16.mxu0 0
        %1045 = vmatpush1.bf16.msra.mxu0 0
        %1046 = vmatprep.subr.bf16.mxu0 0
        %1047 = vmatpush1.bf16.msra.mxu0 0
        %1048 = vmatprep.subr.bf16.mxu0 0
        %1049 = vmatpush1.bf16.msra.mxu0 0
        %1050 = vmatprep.subr.bf16.mxu0 0
        %1051 = vmatpush1.bf16.msra.mxu0 0
        %1052 = vmatprep.subr.bf16.mxu0 0
        %1053 = vmatpush1.bf16.msra.mxu0 0
        %1054 = vmatprep.subr.bf16.mxu0 0
        %1055 = vmatpush1.bf16.msra.mxu0 0
        %1056 = vmatprep.mubr.bf16.mxu0 0
        %1057 = vmatmul.mubr.bf16.gmra.mrb[0].mxu0 %v1019
        %v1058 = vpop.f32.mrb[0].mxu0
        %v1059 = vadd.f32 0.0, %v1058
        %v1060 = vpop.f32.mrb[0].mxu0
        %v1061 = vpop.f32.mrb[0].mxu0
        %v1062 = vadd.f32 0.0, %v1061
        %v1063 = vpop.f32.mrb[0].mxu0
        %1064 = vmatprep.mubr.bf16.mxu0 0
        %1065 = vmatmul.mubr.bf16.gmra.mrb[0].mxu0 %v1022
        %v1066 = vpop.f32.mrb[0].mxu0
        %v1067 = vadd.f32 0.0, %v1066
        %v1068 = vpop.f32.mrb[0].mxu0
        %v1069 = vpop.f32.mrb[0].mxu0
        %v1070 = vadd.f32 0.0, %v1069
        %v1071 = vpop.f32.mrb[0].mxu0
        %1072 = vdwg.mxu0
        %v1073 = vpack.c.bf16 %v1062, %v1059
        %v1074 = vpack.c.bf16 %v1070, %v1067
        %v1077 = vunpack.c.l.b16 %v1073
        %v1078 = vunpack.c.h.b16 %v1073
        %v1079 = vunpack.c.l.b16 %v1074
        %v1080 = vunpack.c.h.b16 %v1074
        %v1081 = vpack.c.b16 %v1077, %v1077
        %v1082 = vpack.c.b16 %v1078, %v1078
        %v1083 = vpack.c.b16 %v1079, %v1079
        %v1084 = vpack.c.b16 %v1080, %v1080
        %1089 = vst [vmem:[%s341] sm:$0xf] %v1081
        %1090 = vst [vmem:[%s341 + $0x4] sm:$0xf] %v1082
        %1091 = vst [vmem:[%s341 + $0x8] sm:$0xf] %v1083
        %1092 = vst [vmem:[%s341 + $0xc] sm:$0xf] %v1084
        %s1093 = scalar_lea.vmem %s307, 32 [#allocation3]
        %v1094 = vld [vmem:[%s1093] sm:$0xff]
        %v1095 = vld [vmem:[%s1093 + $0x8] sm:$0xff]
        %v1096 = vld [vmem:[%s1093 + $0x10] sm:$0xff]
        %v1097 = vld [vmem:[%s1093 + $0x18] sm:$0xff]
        %v1098 = vpack.c.bf16 %v1095, %v1094
        %v1099 = vpack.c.bf16 %v1097, %v1096
        %1100 = vmatprep.subr.bf16.mxu0 0
        %1101 = vmatpush1.bf16.msra.mxu0 %v1098
        %1102 = vmatprep.subr.bf16.mxu0 0
        %1103 = vmatpush1.bf16.msra.mxu0 %v1099
        %1104 = vmatprep.subr.bf16.mxu0 0
        %1105 = vmatpush1.bf16.msra.mxu0 0
        %1106 = vmatprep.subr.bf16.mxu0 0
        %1107 = vmatpush1.bf16.msra.mxu0 0
        %1108 = vmatprep.subr.bf16.mxu0 0
        %1109 = vmatpush1.bf16.msra.mxu0 0
        %1110 = vmatprep.subr.bf16.mxu0 0
        %1111 = vmatpush1.bf16.msra.mxu0 0
        %1112 = vmatprep.subr.bf16.mxu0 0
        %1113 = vmatpush1.bf16.msra.mxu0 0
        %1114 = vmatprep.subr.bf16.mxu0 0
        %1115 = vmatpush1.bf16.msra.mxu0 0
        %1116 = vmatprep.subr.bf16.mxu0 0
        %1117 = vmatpush1.bf16.msra.mxu0 0
        %1118 = vmatprep.subr.bf16.mxu0 0
        %1119 = vmatpush1.bf16.msra.mxu0 0
        %1120 = vmatprep.subr.bf16.mxu0 0
        %1121 = vmatpush1.bf16.msra.mxu0 0
        %1122 = vmatprep.subr.bf16.mxu0 0
        %1123 = vmatpush1.bf16.msra.mxu0 0
        %1124 = vmatprep.subr.bf16.mxu0 0
        %1125 = vmatpush1.bf16.msra.mxu0 0
        %1126 = vmatprep.subr.bf16.mxu0 0
        %1127 = vmatpush1.bf16.msra.mxu0 0
        %1128 = vmatprep.subr.bf16.mxu0 0
        %1129 = vmatpush1.bf16.msra.mxu0 0
        %1130 = vmatprep.subr.bf16.mxu0 0
        %1131 = vmatpush1.bf16.msra.mxu0 0
        %1132 = vmatprep.mubr.bf16.mxu0 0
        %1133 = vmatmul.mubr.bf16.gmra.mrb[0].mxu0 %v404
        %v1134 = vpop.f32.mrb[0].mxu0
        %v1135 = vadd.f32 0.0, %v1134
        %v1136 = vpop.f32.mrb[0].mxu0
        %v1137 = vpop.f32.mrb[0].mxu0
        %v1138 = vadd.f32 0.0, %v1137
        %v1139 = vpop.f32.mrb[0].mxu0
        %1140 = vmatprep.mubr.bf16.mxu0 0
        %1141 = vmatmul.mubr.bf16.gmra.mrb[0].mxu0 %v407
        %v1142 = vpop.f32.mrb[0].mxu0
        %v1143 = vadd.f32 0.0, %v1142
        %v1144 = vpop.f32.mrb[0].mxu0
        %v1145 = vpop.f32.mrb[0].mxu0
        %v1146 = vadd.f32 0.0, %v1145
        %v1147 = vpop.f32.mrb[0].mxu0
        %1148 = vmatprep.mubr.bf16.mxu0 0
        %1149 = vmatmul.mubr.bf16.gmra.mrb[0].mxu0 %v410
        %v1150 = vpop.f32.mrb[0].mxu0
        %v1151 = vadd.f32 0.0, %v1150
        %v1152 = vpop.f32.mrb[0].mxu0
        %v1153 = vpop.f32.mrb[0].mxu0
        %v1154 = vadd.f32 0.0, %v1153
        %v1155 = vpop.f32.mrb[0].mxu0
        %1156 = vdwg.mxu0
        %v1157 = vld [vmem:[%s469] sm:$0xff]
        %v1158 = vld [vmem:[%s469 + $0x8] sm:$0xff]
        %v1159 = vld [vmem:[%s469 + $0x10] sm:$0xff]
        %v1160 = vld [vmem:[%s469 + $0x18] sm:$0xff]
        %v1161 = vld [vmem:[%s469 + $0x20] sm:$0xff]
        %v1162 = vld [vmem:[%s469 + $0x28] sm:$0xff]
        %v1163 = vmul.f32 %v1157, %v1135
        %v1164 = vmul.f32 %v1158, %v1138
        %v1165 = vmul.f32 %v1159, %v1143
        %v1166 = vmul.f32 %v1160, %v1146
        %v1167 = vmul.f32 %v1161, %v1151
        %v1168 = vmul.f32 %v1162, %v1154
        %1169 = vrot.lane.b32.xlu0 %v1135, 17
        %v1170 = vpop.permute.xlu0 %1169
        %1171 = vrot.lane.b32.xlu0 %v1138, 17
        %v1172 = vpop.permute.xlu0 %1171
        %1173 = vrot.lane.b32.xlu0 %v1143, 17
        %v1174 = vpop.permute.xlu0 %1173
        %1175 = vrot.lane.b32.xlu0 %v1146, 17
        %v1176 = vpop.permute.xlu0 %1175
        %1177 = vrot.lane.b32.xlu0 %v1151, 17
        %v1178 = vpop.permute.xlu0 %1177
        %1179 = vrot.lane.b32.xlu0 %v1154, 17
        %v1180 = vpop.permute.xlu0 %1179
        %v1181 = vld [vmem:[#allocation6] sm:$0xff]
        %v1182 = vld [vmem:[#allocation6 + $0x8] sm:$0xff]
        %v1183 = vld [vmem:[#allocation6 + $0x10] sm:$0xff]
        %v1184 = vld [vmem:[#allocation6 + $0x18] sm:$0xff]
        %v1185 = vld [vmem:[#allocation6 + $0x20] sm:$0xff]
        %v1186 = vld [vmem:[#allocation6 + $0x28] sm:$0xff]
        %v1187 = vmul.f32 %v1181, %v1170
        %v1188 = vmul.f32 %v1182, %v1172
        %v1189 = vmul.f32 %v1183, %v1174
        %v1190 = vmul.f32 %v1184, %v1176
        %v1191 = vmul.f32 %v1185, %v1178
        %v1192 = vmul.f32 %v1186, %v1180
        %v1193 = vadd.f32 %v1163, %v1187
        %v1194 = vadd.f32 %v1164, %v1188
        %v1195 = vadd.f32 %v1165, %v1189
        %v1196 = vadd.f32 %v1166, %v1190
        %v1197 = vadd.f32 %v1167, %v1191
        %v1198 = vadd.f32 %v1168, %v1192
        %1199 = vrot.lane.b32.xlu0 %v1135, 16
        %v1200 = vpop.permute.xlu0 %1199
        %1201 = vrot.lane.b32.xlu0 %v1138, 16
        %v1202 = vpop.permute.xlu0 %1201
        %1203 = vrot.lane.b32.xlu0 %v1143, 16
        %v1204 = vpop.permute.xlu0 %1203
        %1205 = vrot.lane.b32.xlu0 %v1146, 16
        %v1206 = vpop.permute.xlu0 %1205
        %1207 = vrot.lane.b32.xlu0 %v1151, 16
        %v1208 = vpop.permute.xlu0 %1207
        %1209 = vrot.lane.b32.xlu0 %v1154, 16
        %v1210 = vpop.permute.xlu0 %1209
        %v1211 = vld [vmem:[%s524] sm:$0xff]
        %v1212 = vld [vmem:[%s524 + $0x8] sm:$0xff]
        %v1213 = vld [vmem:[%s524 + $0x10] sm:$0xff]
        %v1214 = vld [vmem:[%s524 + $0x18] sm:$0xff]
        %v1215 = vld [vmem:[%s524 + $0x20] sm:$0xff]
        %v1216 = vld [vmem:[%s524 + $0x28] sm:$0xff]
        %v1217 = vmul.f32 %v1211, %v1200
        %v1218 = vmul.f32 %v1212, %v1202
        %v1219 = vmul.f32 %v1213, %v1204
        %v1220 = vmul.f32 %v1214, %v1206
        %v1221 = vmul.f32 %v1215, %v1208
        %v1222 = vmul.f32 %v1216, %v1210
        %v1223 = vadd.f32 %v1193, %v1217
        %v1224 = vadd.f32 %v1194, %v1218
        %v1225 = vadd.f32 %v1195, %v1219
        %v1226 = vadd.f32 %v1196, %v1220
        %v1227 = vadd.f32 %v1197, %v1221
        %v1228 = vadd.f32 %v1198, %v1222
        %1229 = vrot.lane.b32.xlu0 %v1135, 15
        %v1230 = vpop.permute.xlu0 %1229
        %1231 = vrot.lane.b32.xlu0 %v1138, 15
        %v1232 = vpop.permute.xlu0 %1231
        %1233 = vrot.lane.b32.xlu0 %v1143, 15
        %v1234 = vpop.permute.xlu0 %1233
        %1235 = vrot.lane.b32.xlu0 %v1146, 15
        %v1236 = vpop.permute.xlu0 %1235
        %1237 = vrot.lane.b32.xlu0 %v1151, 15
        %v1238 = vpop.permute.xlu0 %1237
        %1239 = vrot.lane.b32.xlu0 %v1154, 15
        %v1240 = vpop.permute.xlu0 %1239
        %v1241 = vld [vmem:[%s555] sm:$0xff]
        %v1242 = vld [vmem:[%s555 + $0x8] sm:$0xff]
        %v1243 = vld [vmem:[%s555 + $0x10] sm:$0xff]
        %v1244 = vld [vmem:[%s555 + $0x18] sm:$0xff]
        %v1245 = vld [vmem:[%s555 + $0x20] sm:$0xff]
        %v1246 = vld [vmem:[%s555 + $0x28] sm:$0xff]
        %v1247 = vmul.f32 %v1241, %v1230
        %v1248 = vmul.f32 %v1242, %v1232
        %v1249 = vmul.f32 %v1243, %v1234
        %v1250 = vmul.f32 %v1244, %v1236
        %v1251 = vmul.f32 %v1245, %v1238
        %v1252 = vmul.f32 %v1246, %v1240
        %v1253 = vadd.f32 %v1223, %v1247
        %v1254 = vadd.f32 %v1224, %v1248
        %v1255 = vadd.f32 %v1225, %v1249
        %v1256 = vadd.f32 %v1226, %v1250
        %v1257 = vadd.f32 %v1227, %v1251
        %v1258 = vadd.f32 %v1228, %v1252
        %1259 = vrot.lane.b32.xlu0 %v1135, 1
        %v1260 = vpop.permute.xlu0 %1259
        %1261 = vrot.lane.b32.xlu0 %v1138, 1
        %v1262 = vpop.permute.xlu0 %1261
        %1263 = vrot.lane.b32.xlu0 %v1143, 1
        %v1264 = vpop.permute.xlu0 %1263
        %1265 = vrot.lane.b32.xlu0 %v1146, 1
        %v1266 = vpop.permute.xlu0 %1265
        %1267 = vrot.lane.b32.xlu0 %v1151, 1
        %v1268 = vpop.permute.xlu0 %1267
        %1269 = vrot.lane.b32.xlu0 %v1154, 1
        %v1270 = vpop.permute.xlu0 %1269
        %v1271 = vld [vmem:[%s586] sm:$0xff]
        %v1272 = vld [vmem:[%s586 + $0x8] sm:$0xff]
        %v1273 = vld [vmem:[%s586 + $0x10] sm:$0xff]
        %v1274 = vld [vmem:[%s586 + $0x18] sm:$0xff]
        %v1275 = vld [vmem:[%s586 + $0x20] sm:$0xff]
        %v1276 = vld [vmem:[%s586 + $0x28] sm:$0xff]
        %v1277 = vmul.f32 %v1271, %v1260
        %v1278 = vmul.f32 %v1272, %v1262
        %v1279 = vmul.f32 %v1273, %v1264
        %v1280 = vmul.f32 %v1274, %v1266
        %v1281 = vmul.f32 %v1275, %v1268
        %v1282 = vmul.f32 %v1276, %v1270
        %v1283 = vadd.f32 %v1253, %v1277
        %v1284 = vadd.f32 %v1254, %v1278
        %v1285 = vadd.f32 %v1255, %v1279
        %v1286 = vadd.f32 %v1256, %v1280
        %v1287 = vadd.f32 %v1257, %v1281
        %v1288 = vadd.f32 %v1258, %v1282
        %1289 = vrot.lane.b32.xlu0 %v1135, 127
        %v1290 = vpop.permute.xlu0 %1289
        %1291 = vrot.lane.b32.xlu0 %v1138, 127
        %v1292 = vpop.permute.xlu0 %1291
        %1293 = vrot.lane.b32.xlu0 %v1143, 127
        %v1294 = vpop.permute.xlu0 %1293
        %1295 = vrot.lane.b32.xlu0 %v1146, 127
        %v1296 = vpop.permute.xlu0 %1295
        %1297 = vrot.lane.b32.xlu0 %v1151, 127
        %v1298 = vpop.permute.xlu0 %1297
        %1299 = vrot.lane.b32.xlu0 %v1154, 127
        %v1300 = vpop.permute.xlu0 %1299
        %v1301 = vld [vmem:[%s617] sm:$0xff]
        %v1302 = vld [vmem:[%s617 + $0x8] sm:$0xff]
        %v1303 = vld [vmem:[%s617 + $0x10] sm:$0xff]
        %v1304 = vld [vmem:[%s617 + $0x18] sm:$0xff]
        %v1305 = vld [vmem:[%s617 + $0x20] sm:$0xff]
        %v1306 = vld [vmem:[%s617 + $0x28] sm:$0xff]
        %v1307 = vmul.f32 %v1301, %v1290
        %v1308 = vmul.f32 %v1302, %v1292
        %v1309 = vmul.f32 %v1303, %v1294
        %v1310 = vmul.f32 %v1304, %v1296
        %v1311 = vmul.f32 %v1305, %v1298
        %v1312 = vmul.f32 %v1306, %v1300
        %v1313 = vadd.f32 %v1283, %v1307
        %v1314 = vadd.f32 %v1284, %v1308
        %v1315 = vadd.f32 %v1285, %v1309
        %v1316 = vadd.f32 %v1286, %v1310
        %v1317 = vadd.f32 %v1287, %v1311
        %v1318 = vadd.f32 %v1288, %v1312
        %1319 = vrot.lane.b32.xlu0 %v1135, 113
        %v1320 = vpop.permute.xlu0 %1319
        %1321 = vrot.lane.b32.xlu0 %v1138, 113
        %v1322 = vpop.permute.xlu0 %1321
        %1323 = vrot.lane.b32.xlu0 %v1143, 113
        %v1324 = vpop.permute.xlu0 %1323
        %1325 = vrot.lane.b32.xlu0 %v1146, 113
        %v1326 = vpop.permute.xlu0 %1325
        %1327 = vrot.lane.b32.xlu0 %v1151, 113
        %v1328 = vpop.permute.xlu0 %1327
        %1329 = vrot.lane.b32.xlu0 %v1154, 113
        %v1330 = vpop.permute.xlu0 %1329
        %v1331 = vld [vmem:[%s648] sm:$0xff]
        %v1332 = vld [vmem:[%s648 + $0x8] sm:$0xff]
        %v1333 = vld [vmem:[%s648 + $0x10] sm:$0xff]
        %v1334 = vld [vmem:[%s648 + $0x18] sm:$0xff]
        %v1335 = vld [vmem:[%s648 + $0x20] sm:$0xff]
        %v1336 = vld [vmem:[%s648 + $0x28] sm:$0xff]
        %v1337 = vmul.f32 %v1331, %v1320
        %v1338 = vmul.f32 %v1332, %v1322
        %v1339 = vmul.f32 %v1333, %v1324
        %v1340 = vmul.f32 %v1334, %v1326
        %v1341 = vmul.f32 %v1335, %v1328
        %v1342 = vmul.f32 %v1336, %v1330
        %v1343 = vadd.f32 %v1313, %v1337
        %v1344 = vadd.f32 %v1314, %v1338
        %v1345 = vadd.f32 %v1315, %v1339
        %v1346 = vadd.f32 %v1316, %v1340
        %v1347 = vadd.f32 %v1317, %v1341
        %v1348 = vadd.f32 %v1318, %v1342
        %1349 = vrot.lane.b32.xlu0 %v1135, 112
        %v1350 = vpop.permute.xlu0 %1349
        %1351 = vrot.lane.b32.xlu0 %v1138, 112
        %v1352 = vpop.permute.xlu0 %1351
        %1353 = vrot.lane.b32.xlu0 %v1143, 112
        %v1354 = vpop.permute.xlu0 %1353
        %1355 = vrot.lane.b32.xlu0 %v1146, 112
        %v1356 = vpop.permute.xlu0 %1355
        %1357 = vrot.lane.b32.xlu0 %v1151, 112
        %v1358 = vpop.permute.xlu0 %1357
        %1359 = vrot.lane.b32.xlu0 %v1154, 112
        %v1360 = vpop.permute.xlu0 %1359
        %v1361 = vld [vmem:[%s679] sm:$0xff]
        %v1362 = vld [vmem:[%s679 + $0x8] sm:$0xff]
        %v1363 = vld [vmem:[%s679 + $0x10] sm:$0xff]
        %v1364 = vld [vmem:[%s679 + $0x18] sm:$0xff]
        %v1365 = vld [vmem:[%s679 + $0x20] sm:$0xff]
        %v1366 = vld [vmem:[%s679 + $0x28] sm:$0xff]
        %v1367 = vmul.f32 %v1361, %v1350
        %v1368 = vmul.f32 %v1362, %v1352
        %v1369 = vmul.f32 %v1363, %v1354
        %v1370 = vmul.f32 %v1364, %v1356
        %v1371 = vmul.f32 %v1365, %v1358
        %v1372 = vmul.f32 %v1366, %v1360
        %v1373 = vadd.f32 %v1343, %v1367
        %v1374 = vadd.f32 %v1344, %v1368
        %v1375 = vadd.f32 %v1345, %v1369
        %v1376 = vadd.f32 %v1346, %v1370
        %v1377 = vadd.f32 %v1347, %v1371
        %v1378 = vadd.f32 %v1348, %v1372
        %1379 = vrot.lane.b32.xlu0 %v1135, 111
        %v1380 = vpop.permute.xlu0 %1379
        %1381 = vrot.lane.b32.xlu0 %v1138, 111
        %v1382 = vpop.permute.xlu0 %1381
        %1383 = vrot.lane.b32.xlu0 %v1143, 111
        %v1384 = vpop.permute.xlu0 %1383
        %1385 = vrot.lane.b32.xlu0 %v1146, 111
        %v1386 = vpop.permute.xlu0 %1385
        %1387 = vrot.lane.b32.xlu0 %v1151, 111
        %v1388 = vpop.permute.xlu0 %1387
        %1389 = vrot.lane.b32.xlu0 %v1154, 111
        %v1390 = vpop.permute.xlu0 %1389
        %v1391 = vld [vmem:[%s710] sm:$0xff]
        %v1392 = vld [vmem:[%s710 + $0x8] sm:$0xff]
        %v1393 = vld [vmem:[%s710 + $0x10] sm:$0xff]
        %v1394 = vld [vmem:[%s710 + $0x18] sm:$0xff]
        %v1395 = vld [vmem:[%s710 + $0x20] sm:$0xff]
        %v1396 = vld [vmem:[%s710 + $0x28] sm:$0xff]
        %v1397 = vmul.f32 %v1391, %v1380
        %v1398 = vmul.f32 %v1392, %v1382
        %v1399 = vmul.f32 %v1393, %v1384
        %v1400 = vmul.f32 %v1394, %v1386
        %v1401 = vmul.f32 %v1395, %v1388
        %v1402 = vmul.f32 %v1396, %v1390
        %v1403 = vadd.f32 %v1373, %v1397
        %v1404 = vadd.f32 %v1374, %v1398
        %v1405 = vadd.f32 %v1375, %v1399
        %v1406 = vadd.f32 %v1376, %v1400
        %v1407 = vadd.f32 %v1377, %v1401
        %v1408 = vadd.f32 %v1378, %v1402
        %v1409 = vadd.f32 %v1407, %v732
        %v1410 = vadd.f32 %v1408, %v737
        %1411 = vmax.xlane.f32.xlu0 %v1409
        %v1412 = vpop.xlane.xlu0 %1411
        %1413 = vmax.xlane.f32.xlu0 %v1410
        %v1414 = vpop.xlane.xlu0 %1413
        %v1415 = vsub.f32 %v1409, %v1412
        %v1416 = vsub.f32 %v1410, %v1414
        %v1417 = vmul.f32 %v1415, 1.442695
        %v1418 = vpow.pop %v1417
        %v1419 = vmul.f32 %v1416, 1.442695
        %v1420 = vpow.pop %v1419
        %1421 = vadd.xlane.f32.xlu0 %v1418
        %v1422 = vpop.xlane.xlu0 %1421
        %1423 = vadd.xlane.f32.xlu0 %v1420
        %v1424 = vpop.xlane.xlu0 %1423
        %v1425 = vrcp.pop %v1422
        %v1426 = vrcp.pop %v1424
        %v1427 = vmul.f32 %v1418, %v1425
        %v1428 = vmul.f32 %v1420, %v1426
        %v1429 = vmul.f32 %v1427, %v1403
        %v1430 = vmul.f32 %v1428, %v1404
        %v1431 = vpack.c.bf16 %v1430, %v1429
        %1432 = vmatprep.subr.bf16.mxu0 0
        %1433 = vmatpush1.bf16.xpose.msra.mxu0 %v1431
        %1434 = vmatprep.subr.bf16.mxu0 0
        %1435 = vmatpush1.bf16.xpose.msra.mxu0 0
        %1436 = vmatprep.subr.bf16.mxu0 0
        %1437 = vmatpush1.bf16.xpose.msra.mxu0 0
        %1438 = vmatprep.subr.bf16.mxu0 0
        %1439 = vmatpush1.bf16.xpose.msra.mxu0 0
        %1440 = vmatprep.subr.bf16.mxu0 0
        %1441 = vmatpush1.bf16.xpose.msra.mxu0 0
        %1442 = vmatprep.subr.bf16.mxu0 0
        %1443 = vmatpush1.bf16.xpose.msra.mxu0 0
        %1444 = vmatprep.subr.bf16.mxu0 0
        %1445 = vmatpush1.bf16.xpose.msra.mxu0 0
        %1446 = vmatprep.subr.bf16.mxu0 0
        %1447 = vmatpush1.bf16.xpose.msra.mxu0 0
        %1448 = vmatprep.subr.bf16.mxu0 0
        %1449 = vmatpush1.bf16.xpose.msra.mxu0 0
        %1450 = vmatprep.subr.bf16.mxu0 0
        %1451 = vmatpush1.bf16.xpose.msra.mxu0 0
        %1452 = vmatprep.subr.bf16.mxu0 0
        %1453 = vmatpush1.bf16.xpose.msra.mxu0 0
        %1454 = vmatprep.subr.bf16.mxu0 0
        %1455 = vmatpush1.bf16.xpose.msra.mxu0 0
        %1456 = vmatprep.subr.bf16.mxu0 0
        %1457 = vmatpush1.bf16.xpose.msra.mxu0 0
        %1458 = vmatprep.subr.bf16.mxu0 0
        %1459 = vmatpush1.bf16.xpose.msra.mxu0 0
        %1460 = vmatprep.subr.bf16.mxu0 0
        %1461 = vmatpush1.bf16.xpose.msra.mxu0 0
        %1462 = vmatprep.subr.bf16.mxu0 0
        %1463 = vmatpush1.bf16.xpose.msra.mxu0 0
        %1464 = vmatprep.mubr.bf16.mxu0 0
        %1465 = vmatmul.mubr.bf16.gmra.mrb[0].mxu0 %v1098
        %v1466 = vpop.f32.mrb[0].mxu0
        %v1467 = vadd.f32 0.0, %v1466
        %v1468 = vpop.f32.mrb[0].mxu0
        %v1469 = vpop.f32.mrb[0].mxu0
        %v1470 = vadd.f32 0.0, %v1469
        %v1471 = vpop.f32.mrb[0].mxu0
        %1472 = vmatprep.mubr.bf16.mxu0 0
        %1473 = vmatmul.mubr.bf16.gmra.mrb[0].mxu0 %v1099
        %v1474 = vpop.f32.mrb[0].mxu0
        %v1475 = vadd.f32 0.0, %v1474
        %v1476 = vpop.f32.mrb[0].mxu0
        %v1477 = vpop.f32.mrb[0].mxu0
        %v1478 = vadd.f32 0.0, %v1477
        %v1479 = vpop.f32.mrb[0].mxu0
        %1480 = vdwg.mxu0
        %v1481 = vpack.c.bf16 %v1470, %v1467
        %v1482 = vpack.c.bf16 %v1478, %v1475
        %1483 = vmatprep.subr.bf16.mxu0 0
        %1484 = vmatpush1.bf16.msra.mxu0 %v1481
        %1485 = vmatprep.subr.bf16.mxu0 0
        %1486 = vmatpush1.bf16.msra.mxu0 %v1482
        %1487 = vmatprep.subr.bf16.mxu0 0
        %1488 = vmatpush1.bf16.msra.mxu0 0
        %1489 = vmatprep.subr.bf16.mxu0 0
        %1490 = vmatpush1.bf16.msra.mxu0 0
        %1491 = vmatprep.subr.bf16.mxu0 0
        %1492 = vmatpush1.bf16.msra.mxu0 0
        %1493 = vmatprep.subr.bf16.mxu0 0
        %1494 = vmatpush1.bf16.msra.mxu0 0
        %1495 = vmatprep.subr.bf16.mxu0 0
        %1496 = vmatpush1.bf16.msra.mxu0 0
        %1497 = vmatprep.subr.bf16.mxu0 0
        %1498 = vmatpush1.bf16.msra.mxu0 0
        %1499 = vmatprep.subr.bf16.mxu0 0
        %1500 = vmatpush1.bf16.msra.mxu0 0
        %1501 = vmatprep.subr.bf16.mxu0 0
        %1502 = vmatpush1.bf16.msra.mxu0 0
        %1503 = vmatprep.subr.bf16.mxu0 0
        %1504 = vmatpush1.bf16.msra.mxu0 0
        %1505 = vmatprep.subr.bf16.mxu0 0
        %1506 = vmatpush1.bf16.msra.mxu0 0
        %1507 = vmatprep.subr.bf16.mxu0 0
        %1508 = vmatpush1.bf16.msra.mxu0 0
        %1509 = vmatprep.subr.bf16.mxu0 0
        %1510 = vmatpush1.bf16.msra.mxu0 0
        %1511 = vmatprep.subr.bf16.mxu0 0
        %1512 = vmatpush1.bf16.msra.mxu0 0
        %1513 = vmatprep.subr.bf16.mxu0 0
        %1514 = vmatpush1.bf16.msra.mxu0 0
        %1515 = vmatprep.mubr.bf16.mxu0 0
        %1516 = vmatmul.mubr.bf16.gmra.mrb[0].mxu0 %v834
        %v1517 = vpop.f32.mrb[0].mxu0
        %v1518 = vadd.f32 0.0, %v1517
        %v1519 = vpop.f32.mrb[0].mxu0
        %v1520 = vpop.f32.mrb[0].mxu0
        %v1521 = vadd.f32 0.0, %v1520
        %v1522 = vpop.f32.mrb[0].mxu0
        %1523 = vmatprep.mubr.bf16.mxu0 0
        %1524 = vmatmul.mubr.bf16.gmra.mrb[0].mxu0 %v837
        %v1525 = vpop.f32.mrb[0].mxu0
        %v1526 = vadd.f32 0.0, %v1525
        %v1527 = vpop.f32.mrb[0].mxu0
        %v1528 = vpop.f32.mrb[0].mxu0
        %v1529 = vadd.f32 0.0, %v1528
        %v1530 = vpop.f32.mrb[0].mxu0
        %1531 = vmatprep.mubr.bf16.mxu0 0
        %1532 = vmatmul.mubr.bf16.gmra.mrb[0].mxu0 %v840
        %v1533 = vpop.f32.mrb[0].mxu0
        %v1534 = vadd.f32 0.0, %v1533
        %v1535 = vpop.f32.mrb[0].mxu0
        %v1536 = vpop.f32.mrb[0].mxu0
        %v1537 = vadd.f32 0.0, %v1536
        %v1538 = vpop.f32.mrb[0].mxu0
        %1539 = vmatprep.mubr.bf16.mxu0 0
        %1540 = vmatmul.mubr.bf16.gmra.mrb[0].mxu0 %v843
        %v1541 = vpop.f32.mrb[0].mxu0
        %v1542 = vadd.f32 0.0, %v1541
        %v1543 = vpop.f32.mrb[0].mxu0
        %v1544 = vpop.f32.mrb[0].mxu0
        %v1545 = vadd.f32 0.0, %v1544
        %v1546 = vpop.f32.mrb[0].mxu0
        %1547 = vdwg.mxu0
        %v1548 = vsub.f32 0.0, %v1534
        %v1549 = vsub.f32 0.0, %v1537
        %v1550 = vsub.f32 0.0, %v1542
        %v1551 = vsub.f32 0.0, %v1545
        %v1552 = vmul.f32 %v1548, 1.442695
        %v1553 = vpow.pop %v1552
        %v1554 = vmul.f32 %v1549, 1.442695
        %v1555 = vpow.pop %v1554
        %v1556 = vmul.f32 %v1550, 1.442695
        %v1557 = vpow.pop %v1556
        %v1558 = vmul.f32 %v1551, 1.442695
        %v1559 = vpow.pop %v1558
        %v1560 = vadd.f32 %v1553, 1.0
        %v1561 = vadd.f32 %v1555, 1.0
        %v1562 = vadd.f32 %v1557, 1.0
        %v1563 = vadd.f32 %v1559, 1.0
        %v1564 = vrcp.pop %v1560
        %v1565 = vrcp.pop %v1561
        %v1566 = vrcp.pop %v1562
        %v1567 = vrcp.pop %v1563
        %v1568 = vmul.f32 %v1534, %v1564
        %v1569 = vmul.f32 %v1537, %v1565
        %v1570 = vmul.f32 %v1542, %v1566
        %v1571 = vmul.f32 %v1545, %v1567
        %v1572 = vadd.f32 %v1568, %v934
        %v1573 = vadd.f32 %v1569, %v934
        %v1574 = vadd.f32 %v1570, %v934
        %v1575 = vadd.f32 %v1571, %v934
        %v1576 = vmul.f32 %v1518, %v1572
        %v1577 = vmul.f32 %v1521, %v1573
        %v1578 = vmul.f32 %v1526, %v1574
        %v1579 = vmul.f32 %v1529, %v1575
        %v1580 = vpack.c.bf16 %v1577, %v1576
        %v1581 = vpack.c.bf16 %v1579, %v1578
        %1582 = vmatprep.subr.bf16.mxu0 0
        %1583 = vmatpush1.bf16.msra.mxu0 %v1580
        %1584 = vmatprep.subr.bf16.mxu0 0
        %1585 = vmatpush1.bf16.msra.mxu0 %v1581
        %1586 = vmatprep.subr.bf16.mxu0 0
        %1587 = vmatpush1.bf16.msra.mxu0 0
        %1588 = vmatprep.subr.bf16.mxu0 0
        %1589 = vmatpush1.bf16.msra.mxu0 0
        %1590 = vmatprep.subr.bf16.mxu0 0
        %1591 = vmatpush1.bf16.msra.mxu0 0
        %1592 = vmatprep.subr.bf16.mxu0 0
        %1593 = vmatpush1.bf16.msra.mxu0 0
        %1594 = vmatprep.subr.bf16.mxu0 0
        %1595 = vmatpush1.bf16.msra.mxu0 0
        %1596 = vmatprep.subr.bf16.mxu0 0
        %1597 = vmatpush1.bf16.msra.mxu0 0
        %1598 = vmatprep.subr.bf16.mxu0 0
        %1599 = vmatpush1.bf16.msra.mxu0 0
        %1600 = vmatprep.subr.bf16.mxu0 0
        %1601 = vmatpush1.bf16.msra.mxu0 0
        %1602 = vmatprep.subr.bf16.mxu0 0
        %1603 = vmatpush1.bf16.msra.mxu0 0
        %1604 = vmatprep.subr.bf16.mxu0 0
        %1605 = vmatpush1.bf16.msra.mxu0 0
        %1606 = vmatprep.subr.bf16.mxu0 0
        %1607 = vmatpush1.bf16.msra.mxu0 0
        %1608 = vmatprep.subr.bf16.mxu0 0
        %1609 = vmatpush1.bf16.msra.mxu0 0
        %1610 = vmatprep.subr.bf16.mxu0 0
        %1611 = vmatpush1.bf16.msra.mxu0 0
        %1612 = vmatprep.subr.bf16.mxu0 0
        %1613 = vmatpush1.bf16.msra.mxu0 0
        %1614 = vmatprep.mubr.bf16.mxu0 0
        %1615 = vmatmul.mubr.bf16.gmra.mrb[0].mxu0 %v956
        %v1616 = vpop.f32.mrb[0].mxu0
        %v1617 = vadd.f32 0.0, %v1616
        %v1618 = vpop.f32.mrb[0].mxu0
        %v1619 = vpop.f32.mrb[0].mxu0
        %v1620 = vadd.f32 0.0, %v1619
        %v1621 = vpop.f32.mrb[0].mxu0
        %1622 = vmatprep.mubr.bf16.mxu0 0
        %1623 = vmatmul.mubr.bf16.gmra.mrb[0].mxu0 %v959
        %v1624 = vpop.f32.mrb[0].mxu0
        %v1625 = vadd.f32 0.0, %v1624
        %v1626 = vpop.f32.mrb[0].mxu0
        %v1627 = vpop.f32.mrb[0].mxu0
        %v1628 = vadd.f32 0.0, %v1627
        %v1629 = vpop.f32.mrb[0].mxu0
        %1630 = vdwg.mxu0
        %s1631 = scalar_lea.vmem %s357, 32
        %1632 = vst.msk [vmem:[%s1631] sm:$0xff] %vm1010, %v1617
        %1633 = vst.msk [vmem:[%s1631 + $0x8] sm:$0xff] %vm1010, %v1620
        %1634 = vst.msk [vmem:[%s1631 + $0x10] sm:$0xff] %vm1010, %v1625
        %1635 = vst.msk [vmem:[%s1631 + $0x18] sm:$0xff] %vm1010, %v1628
        %v1636 = vpack.c.bf16 %v1620, %v1617
        %v1637 = vpack.c.bf16 %v1628, %v1625
        %v1638 = vpack.c.bf16 %v1406, %v1405
        %v1640 = vsel %vm1010, %v1636, 0
        %v1643 = vsel %vm1010, %v1637, 0
        %1645 = vmatprep.subr.bf16.mxu0 0
        %1646 = vmatpush1.bf16.msra.mxu0 %v1638
        %1647 = vmatprep.subr.bf16.mxu0 0
        %1648 = vmatpush1.bf16.msra.mxu0 0
        %1649 = vmatprep.subr.bf16.mxu0 0
        %1650 = vmatpush1.bf16.msra.mxu0 0
        %1651 = vmatprep.subr.bf16.mxu0 0
        %1652 = vmatpush1.bf16.msra.mxu0 0
        %1653 = vmatprep.subr.bf16.mxu0 0
        %1654 = vmatpush1.bf16.msra.mxu0 0
        %1655 = vmatprep.subr.bf16.mxu0 0
        %1656 = vmatpush1.bf16.msra.mxu0 0
        %1657 = vmatprep.subr.bf16.mxu0 0
        %1658 = vmatpush1.bf16.msra.mxu0 0
        %1659 = vmatprep.subr.bf16.mxu0 0
        %1660 = vmatpush1.bf16.msra.mxu0 0
        %1661 = vmatprep.subr.bf16.mxu0 0
        %1662 = vmatpush1.bf16.msra.mxu0 0
        %1663 = vmatprep.subr.bf16.mxu0 0
        %1664 = vmatpush1.bf16.msra.mxu0 0
        %1665 = vmatprep.subr.bf16.mxu0 0
        %1666 = vmatpush1.bf16.msra.mxu0 0
        %1667 = vmatprep.subr.bf16.mxu0 0
        %1668 = vmatpush1.bf16.msra.mxu0 0
        %1669 = vmatprep.subr.bf16.mxu0 0
        %1670 = vmatpush1.bf16.msra.mxu0 0
        %1671 = vmatprep.subr.bf16.mxu0 0
        %1672 = vmatpush1.bf16.msra.mxu0 0
        %1673 = vmatprep.subr.bf16.mxu0 0
        %1674 = vmatpush1.bf16.msra.mxu0 0
        %1675 = vmatprep.subr.bf16.mxu0 0
        %1676 = vmatpush1.bf16.msra.mxu0 0
        %1677 = vmatprep.mubr.bf16.mxu0 0
        %1678 = vmatmul.mubr.bf16.gmra.mrb[0].mxu0 %v1640
        %v1679 = vpop.f32.mrb[0].mxu0
        %v1680 = vadd.f32 0.0, %v1679
        %v1681 = vpop.f32.mrb[0].mxu0
        %v1682 = vpop.f32.mrb[0].mxu0
        %v1683 = vadd.f32 0.0, %v1682
        %v1684 = vpop.f32.mrb[0].mxu0
        %1685 = vmatprep.mubr.bf16.mxu0 0
        %1686 = vmatmul.mubr.bf16.gmra.mrb[0].mxu0 %v1643
        %v1687 = vpop.f32.mrb[0].mxu0
        %v1688 = vadd.f32 0.0, %v1687
        %v1689 = vpop.f32.mrb[0].mxu0
        %v1690 = vpop.f32.mrb[0].mxu0
        %v1691 = vadd.f32 0.0, %v1690
        %v1692 = vpop.f32.mrb[0].mxu0
        %1693 = vdwg.mxu0
        %v1694 = vpack.c.bf16 %v1683, %v1680
        %v1695 = vpack.c.bf16 %v1691, %v1688
        %v1698 = vunpack.c.l.b16 %v1694
        %v1699 = vunpack.c.h.b16 %v1694
        %v1700 = vunpack.c.l.b16 %v1695
        %v1701 = vunpack.c.h.b16 %v1695
        %v1702 = vpack.c.b16 %v1698, %v1698
        %v1703 = vpack.c.b16 %v1699, %v1699
        %v1704 = vpack.c.b16 %v1700, %v1700
        %v1705 = vpack.c.b16 %v1701, %v1701
        %s1710 = scalar_lea.vmem %s341, 16 [#allocation8]
        %1711 = vst [vmem:[%s1710] sm:$0xf] %v1702
        %1712 = vst [vmem:[%s1710 + $0x4] sm:$0xf] %v1703
        %1713 = vst [vmem:[%s1710 + $0x8] sm:$0xf] %v1704
        %1714 = vst [vmem:[%s1710 + $0xc] sm:$0xf] %v1705
        %s1715 = scalar_lea.vmem %s307, 64 [#allocation3]
        %v1716 = vld [vmem:[%s1715] sm:$0xff]
        %v1717 = vld [vmem:[%s1715 + $0x8] sm:$0xff]
        %v1718 = vld [vmem:[%s1715 + $0x10] sm:$0xff]
        %v1719 = vld [vmem:[%s1715 + $0x18] sm:$0xff]
        %v1720 = vpack.c.bf16 %v1717, %v1716
        %v1721 = vpack.c.bf16 %v1719, %v1718
        %1722 = vmatprep.subr.bf16.mxu0 0
        %1723 = vmatpush1.bf16.msra.mxu0 %v1720
        %1724 = vmatprep.subr.bf16.mxu0 0
        %1725 = vmatpush1.bf16.msra.mxu0 %v1721
        %1726 = vmatprep.subr.bf16.mxu0 0
        %1727 = vmatpush1.bf16.msra.mxu0 0
        %1728 = vmatprep.subr.bf16.mxu0 0
        %1729 = vmatpush1.bf16.msra.mxu0 0
        %1730 = vmatprep.subr.bf16.mxu0 0
        %1731 = vmatpush1.bf16.msra.mxu0 0
        %1732 = vmatprep.subr.bf16.mxu0 0
        %1733 = vmatpush1.bf16.msra.mxu0 0
        %1734 = vmatprep.subr.bf16.mxu0 0
        %1735 = vmatpush1.bf16.msra.mxu0 0
        %1736 = vmatprep.subr.bf16.mxu0 0
        %1737 = vmatpush1.bf16.msra.mxu0 0
        %1738 = vmatprep.subr.bf16.mxu0 0
        %1739 = vmatpush1.bf16.msra.mxu0 0
        %1740 = vmatprep.subr.bf16.mxu0 0
        %1741 = vmatpush1.bf16.msra.mxu0 0
        %1742 = vmatprep.subr.bf16.mxu0 0
        %1743 = vmatpush1.bf16.msra.mxu0 0
        %1744 = vmatprep.subr.bf16.mxu0 0
        %1745 = vmatpush1.bf16.msra.mxu0 0
        %1746 = vmatprep.subr.bf16.mxu0 0
        %1747 = vmatpush1.bf16.msra.mxu0 0
        %1748 = vmatprep.subr.bf16.mxu0 0
        %1749 = vmatpush1.bf16.msra.mxu0 0
        %1750 = vmatprep.subr.bf16.mxu0 0
        %1751 = vmatpush1.bf16.msra.mxu0 0
        %1752 = vmatprep.subr.bf16.mxu0 0
        %1753 = vmatpush1.bf16.msra.mxu0 0
        %1754 = vmatprep.mubr.bf16.mxu0 0
        %1755 = vmatmul.mubr.bf16.gmra.mrb[0].mxu0 %v404
        %v1756 = vpop.f32.mrb[0].mxu0
        %v1757 = vadd.f32 0.0, %v1756
        %v1758 = vpop.f32.mrb[0].mxu0
        %v1759 = vpop.f32.mrb[0].mxu0
        %v1760 = vadd.f32 0.0, %v1759
        %v1761 = vpop.f32.mrb[0].mxu0
        %1762 = vmatprep.mubr.bf16.mxu0 0
        %1763 = vmatmul.mubr.bf16.gmra.mrb[0].mxu0 %v407
        %v1764 = vpop.f32.mrb[0].mxu0
        %v1765 = vadd.f32 0.0, %v1764
        %v1766 = vpop.f32.mrb[0].mxu0
        %v1767 = vpop.f32.mrb[0].mxu0
        %v1768 = vadd.f32 0.0, %v1767
        %v1769 = vpop.f32.mrb[0].mxu0
        %1770 = vmatprep.mubr.bf16.mxu0 0
        %1771 = vmatmul.mubr.bf16.gmra.mrb[0].mxu0 %v410
        %v1772 = vpop.f32.mrb[0].mxu0
        %v1773 = vadd.f32 0.0, %v1772
        %v1774 = vpop.f32.mrb[0].mxu0
        %v1775 = vpop.f32.mrb[0].mxu0
        %v1776 = vadd.f32 0.0, %v1775
        %v1777 = vpop.f32.mrb[0].mxu0
        %1778 = vdwg.mxu0
        %v1779 = vld [vmem:[%s469] sm:$0xff]
        %v1780 = vld [vmem:[%s469 + $0x8] sm:$0xff]
        %v1781 = vld [vmem:[%s469 + $0x10] sm:$0xff]
        %v1782 = vld [vmem:[%s469 + $0x18] sm:$0xff]
        %v1783 = vld [vmem:[%s469 + $0x20] sm:$0xff]
        %v1784 = vld [vmem:[%s469 + $0x28] sm:$0xff]
        %v1785 = vmul.f32 %v1779, %v1757
        %v1786 = vmul.f32 %v1780, %v1760
        %v1787 = vmul.f32 %v1781, %v1765
        %v1788 = vmul.f32 %v1782, %v1768
        %v1789 = vmul.f32 %v1783, %v1773
        %v1790 = vmul.f32 %v1784, %v1776
        %1791 = vrot.lane.b32.xlu0 %v1757, 17
        %v1792 = vpop.permute.xlu0 %1791
        %1793 = vrot.lane.b32.xlu0 %v1760, 17
        %v1794 = vpop.permute.xlu0 %1793
        %1795 = vrot.lane.b32.xlu0 %v1765, 17
        %v1796 = vpop.permute.xlu0 %1795
        %1797 = vrot.lane.b32.xlu0 %v1768, 17
        %v1798 = vpop.permute.xlu0 %1797
        %1799 = vrot.lane.b32.xlu0 %v1773, 17
        %v1800 = vpop.permute.xlu0 %1799
        %1801 = vrot.lane.b32.xlu0 %v1776, 17
        %v1802 = vpop.permute.xlu0 %1801
        %v1803 = vld [vmem:[#allocation6] sm:$0xff]
        %v1804 = vld [vmem:[#allocation6 + $0x8] sm:$0xff]
        %v1805 = vld [vmem:[#allocation6 + $0x10] sm:$0xff]
        %v1806 = vld [vmem:[#allocation6 + $0x18] sm:$0xff]
        %v1807 = vld [vmem:[#allocation6 + $0x20] sm:$0xff]
        %v1808 = vld [vmem:[#allocation6 + $0x28] sm:$0xff]
        %v1809 = vmul.f32 %v1803, %v1792
        %v1810 = vmul.f32 %v1804, %v1794
        %v1811 = vmul.f32 %v1805, %v1796
        %v1812 = vmul.f32 %v1806, %v1798
        %v1813 = vmul.f32 %v1807, %v1800
        %v1814 = vmul.f32 %v1808, %v1802
        %v1815 = vadd.f32 %v1785, %v1809
        %v1816 = vadd.f32 %v1786, %v1810
        %v1817 = vadd.f32 %v1787, %v1811
        %v1818 = vadd.f32 %v1788, %v1812
        %v1819 = vadd.f32 %v1789, %v1813
        %v1820 = vadd.f32 %v1790, %v1814
        %1821 = vrot.lane.b32.xlu0 %v1757, 16
        %v1822 = vpop.permute.xlu0 %1821
        %1823 = vrot.lane.b32.xlu0 %v1760, 16
        %v1824 = vpop.permute.xlu0 %1823
        %1825 = vrot.lane.b32.xlu0 %v1765, 16
        %v1826 = vpop.permute.xlu0 %1825
        %1827 = vrot.lane.b32.xlu0 %v1768, 16
        %v1828 = vpop.permute.xlu0 %1827
        %1829 = vrot.lane.b32.xlu0 %v1773, 16
        %v1830 = vpop.permute.xlu0 %1829
        %1831 = vrot.lane.b32.xlu0 %v1776, 16
        %v1832 = vpop.permute.xlu0 %1831
        %v1833 = vld [vmem:[%s524] sm:$0xff]
        %v1834 = vld [vmem:[%s524 + $0x8] sm:$0xff]
        %v1835 = vld [vmem:[%s524 + $0x10] sm:$0xff]
        %v1836 = vld [vmem:[%s524 + $0x18] sm:$0xff]
        %v1837 = vld [vmem:[%s524 + $0x20] sm:$0xff]
        %v1838 = vld [vmem:[%s524 + $0x28] sm:$0xff]
        %v1839 = vmul.f32 %v1833, %v1822
        %v1840 = vmul.f32 %v1834, %v1824
        %v1841 = vmul.f32 %v1835, %v1826
        %v1842 = vmul.f32 %v1836, %v1828
        %v1843 = vmul.f32 %v1837, %v1830
        %v1844 = vmul.f32 %v1838, %v1832
        %v1845 = vadd.f32 %v1815, %v1839
        %v1846 = vadd.f32 %v1816, %v1840
        %v1847 = vadd.f32 %v1817, %v1841
        %v1848 = vadd.f32 %v1818, %v1842
        %v1849 = vadd.f32 %v1819, %v1843
        %v1850 = vadd.f32 %v1820, %v1844
        %1851 = vrot.lane.b32.xlu0 %v1757, 15
        %v1852 = vpop.permute.xlu0 %1851
        %1853 = vrot.lane.b32.xlu0 %v1760, 15
        %v1854 = vpop.permute.xlu0 %1853
        %1855 = vrot.lane.b32.xlu0 %v1765, 15
        %v1856 = vpop.permute.xlu0 %1855
        %1857 = vrot.lane.b32.xlu0 %v1768, 15
        %v1858 = vpop.permute.xlu0 %1857
        %1859 = vrot.lane.b32.xlu0 %v1773, 15
        %v1860 = vpop.permute.xlu0 %1859
        %1861 = vrot.lane.b32.xlu0 %v1776, 15
        %v1862 = vpop.permute.xlu0 %1861
        %v1863 = vld [vmem:[%s555] sm:$0xff]
        %v1864 = vld [vmem:[%s555 + $0x8] sm:$0xff]
        %v1865 = vld [vmem:[%s555 + $0x10] sm:$0xff]
        %v1866 = vld [vmem:[%s555 + $0x18] sm:$0xff]
        %v1867 = vld [vmem:[%s555 + $0x20] sm:$0xff]
        %v1868 = vld [vmem:[%s555 + $0x28] sm:$0xff]
        %v1869 = vmul.f32 %v1863, %v1852
        %v1870 = vmul.f32 %v1864, %v1854
        %v1871 = vmul.f32 %v1865, %v1856
        %v1872 = vmul.f32 %v1866, %v1858
        %v1873 = vmul.f32 %v1867, %v1860
        %v1874 = vmul.f32 %v1868, %v1862
        %v1875 = vadd.f32 %v1845, %v1869
        %v1876 = vadd.f32 %v1846, %v1870
        %v1877 = vadd.f32 %v1847, %v1871
        %v1878 = vadd.f32 %v1848, %v1872
        %v1879 = vadd.f32 %v1849, %v1873
        %v1880 = vadd.f32 %v1850, %v1874
        %1881 = vrot.lane.b32.xlu0 %v1757, 1
        %v1882 = vpop.permute.xlu0 %1881
        %1883 = vrot.lane.b32.xlu0 %v1760, 1
        %v1884 = vpop.permute.xlu0 %1883
        %1885 = vrot.lane.b32.xlu0 %v1765, 1
        %v1886 = vpop.permute.xlu0 %1885
        %1887 = vrot.lane.b32.xlu0 %v1768, 1
        %v1888 = vpop.permute.xlu0 %1887
        %1889 = vrot.lane.b32.xlu0 %v1773, 1
        %v1890 = vpop.permute.xlu0 %1889
        %1891 = vrot.lane.b32.xlu0 %v1776, 1
        %v1892 = vpop.permute.xlu0 %1891
        %v1893 = vld [vmem:[%s586] sm:$0xff]
        %v1894 = vld [vmem:[%s586 + $0x8] sm:$0xff]
        %v1895 = vld [vmem:[%s586 + $0x10] sm:$0xff]
        %v1896 = vld [vmem:[%s586 + $0x18] sm:$0xff]
        %v1897 = vld [vmem:[%s586 + $0x20] sm:$0xff]
        %v1898 = vld [vmem:[%s586 + $0x28] sm:$0xff]
        %v1899 = vmul.f32 %v1893, %v1882
        %v1900 = vmul.f32 %v1894, %v1884
        %v1901 = vmul.f32 %v1895, %v1886
        %v1902 = vmul.f32 %v1896, %v1888
        %v1903 = vmul.f32 %v1897, %v1890
        %v1904 = vmul.f32 %v1898, %v1892
        %v1905 = vadd.f32 %v1875, %v1899
        %v1906 = vadd.f32 %v1876, %v1900
        %v1907 = vadd.f32 %v1877, %v1901
        %v1908 = vadd.f32 %v1878, %v1902
        %v1909 = vadd.f32 %v1879, %v1903
        %v1910 = vadd.f32 %v1880, %v1904
        %1911 = vrot.lane.b32.xlu0 %v1757, 127
        %v1912 = vpop.permute.xlu0 %1911
        %1913 = vrot.lane.b32.xlu0 %v1760, 127
        %v1914 = vpop.permute.xlu0 %1913
        %1915 = vrot.lane.b32.xlu0 %v1765, 127
        %v1916 = vpop.permute.xlu0 %1915
        %1917 = vrot.lane.b32.xlu0 %v1768, 127
        %v1918 = vpop.permute.xlu0 %1917
        %1919 = vrot.lane.b32.xlu0 %v1773, 127
        %v1920 = vpop.permute.xlu0 %1919
        %1921 = vrot.lane.b32.xlu0 %v1776, 127
        %v1922 = vpop.permute.xlu0 %1921
        %v1923 = vld [vmem:[%s617] sm:$0xff]
        %v1924 = vld [vmem:[%s617 + $0x8] sm:$0xff]
        %v1925 = vld [vmem:[%s617 + $0x10] sm:$0xff]
        %v1926 = vld [vmem:[%s617 + $0x18] sm:$0xff]
        %v1927 = vld [vmem:[%s617 + $0x20] sm:$0xff]
        %v1928 = vld [vmem:[%s617 + $0x28] sm:$0xff]
        %v1929 = vmul.f32 %v1923, %v1912
        %v1930 = vmul.f32 %v1924, %v1914
        %v1931 = vmul.f32 %v1925, %v1916
        %v1932 = vmul.f32 %v1926, %v1918
        %v1933 = vmul.f32 %v1927, %v1920
        %v1934 = vmul.f32 %v1928, %v1922
        %v1935 = vadd.f32 %v1905, %v1929
        %v1936 = vadd.f32 %v1906, %v1930
        %v1937 = vadd.f32 %v1907, %v1931
        %v1938 = vadd.f32 %v1908, %v1932
        %v1939 = vadd.f32 %v1909, %v1933
        %v1940 = vadd.f32 %v1910, %v1934
        %1941 = vrot.lane.b32.xlu0 %v1757, 113
        %v1942 = vpop.permute.xlu0 %1941
        %1943 = vrot.lane.b32.xlu0 %v1760, 113
        %v1944 = vpop.permute.xlu0 %1943
        %1945 = vrot.lane.b32.xlu0 %v1765, 113
        %v1946 = vpop.permute.xlu0 %1945
        %1947 = vrot.lane.b32.xlu0 %v1768, 113
        %v1948 = vpop.permute.xlu0 %1947
        %1949 = vrot.lane.b32.xlu0 %v1773, 113
        %v1950 = vpop.permute.xlu0 %1949
        %1951 = vrot.lane.b32.xlu0 %v1776, 113
        %v1952 = vpop.permute.xlu0 %1951
        %v1953 = vld [vmem:[%s648] sm:$0xff]
        %v1954 = vld [vmem:[%s648 + $0x8] sm:$0xff]
        %v1955 = vld [vmem:[%s648 + $0x10] sm:$0xff]
        %v1956 = vld [vmem:[%s648 + $0x18] sm:$0xff]
        %v1957 = vld [vmem:[%s648 + $0x20] sm:$0xff]
        %v1958 = vld [vmem:[%s648 + $0x28] sm:$0xff]
        %v1959 = vmul.f32 %v1953, %v1942
        %v1960 = vmul.f32 %v1954, %v1944
        %v1961 = vmul.f32 %v1955, %v1946
        %v1962 = vmul.f32 %v1956, %v1948
        %v1963 = vmul.f32 %v1957, %v1950
        %v1964 = vmul.f32 %v1958, %v1952
        %v1965 = vadd.f32 %v1935, %v1959
        %v1966 = vadd.f32 %v1936, %v1960
        %v1967 = vadd.f32 %v1937, %v1961
        %v1968 = vadd.f32 %v1938, %v1962
        %v1969 = vadd.f32 %v1939, %v1963
        %v1970 = vadd.f32 %v1940, %v1964
        %1971 = vrot.lane.b32.xlu0 %v1757, 112
        %v1972 = vpop.permute.xlu0 %1971
        %1973 = vrot.lane.b32.xlu0 %v1760, 112
        %v1974 = vpop.permute.xlu0 %1973
        %1975 = vrot.lane.b32.xlu0 %v1765, 112
        %v1976 = vpop.permute.xlu0 %1975
        %1977 = vrot.lane.b32.xlu0 %v1768, 112
        %v1978 = vpop.permute.xlu0 %1977
        %1979 = vrot.lane.b32.xlu0 %v1773, 112
        %v1980 = vpop.permute.xlu0 %1979
        %1981 = vrot.lane.b32.xlu0 %v1776, 112
        %v1982 = vpop.permute.xlu0 %1981
        %v1983 = vld [vmem:[%s679] sm:$0xff]
        %v1984 = vld [vmem:[%s679 + $0x8] sm:$0xff]
        %v1985 = vld [vmem:[%s679 + $0x10] sm:$0xff]
        %v1986 = vld [vmem:[%s679 + $0x18] sm:$0xff]
        %v1987 = vld [vmem:[%s679 + $0x20] sm:$0xff]
        %v1988 = vld [vmem:[%s679 + $0x28] sm:$0xff]
        %v1989 = vmul.f32 %v1983, %v1972
        %v1990 = vmul.f32 %v1984, %v1974
        %v1991 = vmul.f32 %v1985, %v1976
        %v1992 = vmul.f32 %v1986, %v1978
        %v1993 = vmul.f32 %v1987, %v1980
        %v1994 = vmul.f32 %v1988, %v1982
        %v1995 = vadd.f32 %v1965, %v1989
        %v1996 = vadd.f32 %v1966, %v1990
        %v1997 = vadd.f32 %v1967, %v1991
        %v1998 = vadd.f32 %v1968, %v1992
        %v1999 = vadd.f32 %v1969, %v1993
        %v2000 = vadd.f32 %v1970, %v1994
        %2001 = vrot.lane.b32.xlu0 %v1757, 111
        %v2002 = vpop.permute.xlu0 %2001
        %2003 = vrot.lane.b32.xlu0 %v1760, 111
        %v2004 = vpop.permute.xlu0 %2003
        %2005 = vrot.lane.b32.xlu0 %v1765, 111
        %v2006 = vpop.permute.xlu0 %2005
        %2007 = vrot.lane.b32.xlu0 %v1768, 111
        %v2008 = vpop.permute.xlu0 %2007
        %2009 = vrot.lane.b32.xlu0 %v1773, 111
        %v2010 = vpop.permute.xlu0 %2009
        %2011 = vrot.lane.b32.xlu0 %v1776, 111
        %v2012 = vpop.permute.xlu0 %2011
        %v2013 = vld [vmem:[%s710] sm:$0xff]
        %v2014 = vld [vmem:[%s710 + $0x8] sm:$0xff]
        %v2015 = vld [vmem:[%s710 + $0x10] sm:$0xff]
        %v2016 = vld [vmem:[%s710 + $0x18] sm:$0xff]
        %v2017 = vld [vmem:[%s710 + $0x20] sm:$0xff]
        %v2018 = vld [vmem:[%s710 + $0x28] sm:$0xff]
        %v2019 = vmul.f32 %v2013, %v2002
        %v2020 = vmul.f32 %v2014, %v2004
        %v2021 = vmul.f32 %v2015, %v2006
        %v2022 = vmul.f32 %v2016, %v2008
        %v2023 = vmul.f32 %v2017, %v2010
        %v2024 = vmul.f32 %v2018, %v2012
        %v2025 = vadd.f32 %v1995, %v2019
        %v2026 = vadd.f32 %v1996, %v2020
        %v2027 = vadd.f32 %v1997, %v2021
        %v2028 = vadd.f32 %v1998, %v2022
        %v2029 = vadd.f32 %v1999, %v2023
        %v2030 = vadd.f32 %v2000, %v2024
        %v2031 = vadd.f32 %v2029, %v732
        %v2032 = vadd.f32 %v2030, %v737
        %2033 = vmax.xlane.f32.xlu0 %v2031
        %v2034 = vpop.xlane.xlu0 %2033
        %2035 = vmax.xlane.f32.xlu0 %v2032
        %v2036 = vpop.xlane.xlu0 %2035
        %v2037 = vsub.f32 %v2031, %v2034
        %v2038 = vsub.f32 %v2032, %v2036
        %v2039 = vmul.f32 %v2037, 1.442695
        %v2040 = vpow.pop %v2039
        %v2041 = vmul.f32 %v2038, 1.442695
        %v2042 = vpow.pop %v2041
        %2043 = vadd.xlane.f32.xlu0 %v2040
        %v2044 = vpop.xlane.xlu0 %2043
        %2045 = vadd.xlane.f32.xlu0 %v2042
        %v2046 = vpop.xlane.xlu0 %2045
        %v2047 = vrcp.pop %v2044
        %v2048 = vrcp.pop %v2046
        %v2049 = vmul.f32 %v2040, %v2047
        %v2050 = vmul.f32 %v2042, %v2048
        %v2051 = vmul.f32 %v2049, %v2025
        %v2052 = vmul.f32 %v2050, %v2026
        %v2053 = vpack.c.bf16 %v2052, %v2051
        %2054 = vmatprep.subr.bf16.mxu0 0
        %2055 = vmatpush1.bf16.xpose.msra.mxu0 %v2053
        %2056 = vmatprep.subr.bf16.mxu0 0
        %2057 = vmatpush1.bf16.xpose.msra.mxu0 0
        %2058 = vmatprep.subr.bf16.mxu0 0
        %2059 = vmatpush1.bf16.xpose.msra.mxu0 0
        %2060 = vmatprep.subr.bf16.mxu0 0
        %2061 = vmatpush1.bf16.xpose.msra.mxu0 0
        %2062 = vmatprep.subr.bf16.mxu0 0
        %2063 = vmatpush1.bf16.xpose.msra.mxu0 0
        %2064 = vmatprep.subr.bf16.mxu0 0
        %2065 = vmatpush1.bf16.xpose.msra.mxu0 0
        %2066 = vmatprep.subr.bf16.mxu0 0
        %2067 = vmatpush1.bf16.xpose.msra.mxu0 0
        %2068 = vmatprep.subr.bf16.mxu0 0
        %2069 = vmatpush1.bf16.xpose.msra.mxu0 0
        %2070 = vmatprep.subr.bf16.mxu0 0
        %2071 = vmatpush1.bf16.xpose.msra.mxu0 0
        %2072 = vmatprep.subr.bf16.mxu0 0
        %2073 = vmatpush1.bf16.xpose.msra.mxu0 0
        %2074 = vmatprep.subr.bf16.mxu0 0
        %2075 = vmatpush1.bf16.xpose.msra.mxu0 0
        %2076 = vmatprep.subr.bf16.mxu0 0
        %2077 = vmatpush1.bf16.xpose.msra.mxu0 0
        %2078 = vmatprep.subr.bf16.mxu0 0
        %2079 = vmatpush1.bf16.xpose.msra.mxu0 0
        %2080 = vmatprep.subr.bf16.mxu0 0
        %2081 = vmatpush1.bf16.xpose.msra.mxu0 0
        %2082 = vmatprep.subr.bf16.mxu0 0
        %2083 = vmatpush1.bf16.xpose.msra.mxu0 0
        %2084 = vmatprep.subr.bf16.mxu0 0
        %2085 = vmatpush1.bf16.xpose.msra.mxu0 0
        %2086 = vmatprep.mubr.bf16.mxu0 0
        %2087 = vmatmul.mubr.bf16.gmra.mrb[0].mxu0 %v1720
        %v2088 = vpop.f32.mrb[0].mxu0
        %v2089 = vadd.f32 0.0, %v2088
        %v2090 = vpop.f32.mrb[0].mxu0
        %v2091 = vpop.f32.mrb[0].mxu0
        %v2092 = vadd.f32 0.0, %v2091
        %v2093 = vpop.f32.mrb[0].mxu0
        %2094 = vmatprep.mubr.bf16.mxu0 0
        %2095 = vmatmul.mubr.bf16.gmra.mrb[0].mxu0 %v1721
        %v2096 = vpop.f32.mrb[0].mxu0
        %v2097 = vadd.f32 0.0, %v2096
        %v2098 = vpop.f32.mrb[0].mxu0
        %v2099 = vpop.f32.mrb[0].mxu0
        %v2100 = vadd.f32 0.0, %v2099
        %v2101 = vpop.f32.mrb[0].mxu0
        %2102 = vdwg.mxu0
        %v2103 = vpack.c.bf16 %v2092, %v2089
        %v2104 = vpack.c.bf16 %v2100, %v2097
        %2105 = vmatprep.subr.bf16.mxu0 0
        %2106 = vmatpush1.bf16.msra.mxu0 %v2103
        %2107 = vmatprep.subr.bf16.mxu0 0
        %2108 = vmatpush1.bf16.msra.mxu0 %v2104
        %2109 = vmatprep.subr.bf16.mxu0 0
        %2110 = vmatpush1.bf16.msra.mxu0 0
        %2111 = vmatprep.subr.bf16.mxu0 0
        %2112 = vmatpush1.bf16.msra.mxu0 0
        %2113 = vmatprep.subr.bf16.mxu0 0
        %2114 = vmatpush1.bf16.msra.mxu0 0
        %2115 = vmatprep.subr.bf16.mxu0 0
        %2116 = vmatpush1.bf16.msra.mxu0 0
        %2117 = vmatprep.subr.bf16.mxu0 0
        %2118 = vmatpush1.bf16.msra.mxu0 0
        %2119 = vmatprep.subr.bf16.mxu0 0
        %2120 = vmatpush1.bf16.msra.mxu0 0
        %2121 = vmatprep.subr.bf16.mxu0 0
        %2122 = vmatpush1.bf16.msra.mxu0 0
        %2123 = vmatprep.subr.bf16.mxu0 0
        %2124 = vmatpush1.bf16.msra.mxu0 0
        %2125 = vmatprep.subr.bf16.mxu0 0
        %2126 = vmatpush1.bf16.msra.mxu0 0
        %2127 = vmatprep.subr.bf16.mxu0 0
        %2128 = vmatpush1.bf16.msra.mxu0 0
        %2129 = vmatprep.subr.bf16.mxu0 0
        %2130 = vmatpush1.bf16.msra.mxu0 0
        %2131 = vmatprep.subr.bf16.mxu0 0
        %2132 = vmatpush1.bf16.msra.mxu0 0
        %2133 = vmatprep.subr.bf16.mxu0 0
        %2134 = vmatpush1.bf16.msra.mxu0 0
        %2135 = vmatprep.subr.bf16.mxu0 0
        %2136 = vmatpush1.bf16.msra.mxu0 0
        %2137 = vmatprep.mubr.bf16.mxu0 0
        %2138 = vmatmul.mubr.bf16.gmra.mrb[0].mxu0 %v834
        %v2139 = vpop.f32.mrb[0].mxu0
        %v2140 = vadd.f32 0.0, %v2139
        %v2141 = vpop.f32.mrb[0].mxu0
        %v2142 = vpop.f32.mrb[0].mxu0
        %v2143 = vadd.f32 0.0, %v2142
        %v2144 = vpop.f32.mrb[0].mxu0
        %2145 = vmatprep.mubr.bf16.mxu0 0
        %2146 = vmatmul.mubr.bf16.gmra.mrb[0].mxu0 %v837
        %v2147 = vpop.f32.mrb[0].mxu0
        %v2148 = vadd.f32 0.0, %v2147
        %v2149 = vpop.f32.mrb[0].mxu0
        %v2150 = vpop.f32.mrb[0].mxu0
        %v2151 = vadd.f32 0.0, %v2150
        %v2152 = vpop.f32.mrb[0].mxu0
        %2153 = vmatprep.mubr.bf16.mxu0 0
        %2154 = vmatmul.mubr.bf16.gmra.mrb[0].mxu0 %v840
        %v2155 = vpop.f32.mrb[0].mxu0
        %v2156 = vadd.f32 0.0, %v2155
        %v2157 = vpop.f32.mrb[0].mxu0
        %v2158 = vpop.f32.mrb[0].mxu0
        %v2159 = vadd.f32 0.0, %v2158
        %v2160 = vpop.f32.mrb[0].mxu0
        %2161 = vmatprep.mubr.bf16.mxu0 0
        %2162 = vmatmul.mubr.bf16.gmra.mrb[0].mxu0 %v843
        %v2163 = vpop.f32.mrb[0].mxu0
        %v2164 = vadd.f32 0.0, %v2163
        %v2165 = vpop.f32.mrb[0].mxu0
        %v2166 = vpop.f32.mrb[0].mxu0
        %v2167 = vadd.f32 0.0, %v2166
        %v2168 = vpop.f32.mrb[0].mxu0
        %2169 = vdwg.mxu0
        %v2170 = vsub.f32 0.0, %v2156
        %v2171 = vsub.f32 0.0, %v2159
        %v2172 = vsub.f32 0.0, %v2164
        %v2173 = vsub.f32 0.0, %v2167
        %v2174 = vmul.f32 %v2170, 1.442695
        %v2175 = vpow.pop %v2174
        %v2176 = vmul.f32 %v2171, 1.442695
        %v2177 = vpow.pop %v2176
        %v2178 = vmul.f32 %v2172, 1.442695
        %v2179 = vpow.pop %v2178
        %v2180 = vmul.f32 %v2173, 1.442695
        %v2181 = vpow.pop %v2180
        %v2182 = vadd.f32 %v2175, 1.0
        %v2183 = vadd.f32 %v2177, 1.0
        %v2184 = vadd.f32 %v2179, 1.0
        %v2185 = vadd.f32 %v2181, 1.0
        %v2186 = vrcp.pop %v2182
        %v2187 = vrcp.pop %v2183
        %v2188 = vrcp.pop %v2184
        %v2189 = vrcp.pop %v2185
        %v2190 = vmul.f32 %v2156, %v2186
        %v2191 = vmul.f32 %v2159, %v2187
        %v2192 = vmul.f32 %v2164, %v2188
        %v2193 = vmul.f32 %v2167, %v2189
        %v2194 = vadd.f32 %v2190, %v934
        %v2195 = vadd.f32 %v2191, %v934
        %v2196 = vadd.f32 %v2192, %v934
        %v2197 = vadd.f32 %v2193, %v934
        %v2198 = vmul.f32 %v2140, %v2194
        %v2199 = vmul.f32 %v2143, %v2195
        %v2200 = vmul.f32 %v2148, %v2196
        %v2201 = vmul.f32 %v2151, %v2197
        %v2202 = vpack.c.bf16 %v2199, %v2198
        %v2203 = vpack.c.bf16 %v2201, %v2200
        %2204 = vmatprep.subr.bf16.mxu0 0
        %2205 = vmatpush1.bf16.msra.mxu0 %v2202
        %2206 = vmatprep.subr.bf16.mxu0 0
        %2207 = vmatpush1.bf16.msra.mxu0 %v2203
        %2208 = vmatprep.subr.bf16.mxu0 0
        %2209 = vmatpush1.bf16.msra.mxu0 0
        %2210 = vmatprep.subr.bf16.mxu0 0
        %2211 = vmatpush1.bf16.msra.mxu0 0
        %2212 = vmatprep.subr.bf16.mxu0 0
        %2213 = vmatpush1.bf16.msra.mxu0 0
        %2214 = vmatprep.subr.bf16.mxu0 0
        %2215 = vmatpush1.bf16.msra.mxu0 0
        %2216 = vmatprep.subr.bf16.mxu0 0
        %2217 = vmatpush1.bf16.msra.mxu0 0
        %2218 = vmatprep.subr.bf16.mxu0 0
        %2219 = vmatpush1.bf16.msra.mxu0 0
        %2220 = vmatprep.subr.bf16.mxu0 0
        %2221 = vmatpush1.bf16.msra.mxu0 0
        %2222 = vmatprep.subr.bf16.mxu0 0
        %2223 = vmatpush1.bf16.msra.mxu0 0
        %2224 = vmatprep.subr.bf16.mxu0 0
        %2225 = vmatpush1.bf16.msra.mxu0 0
        %2226 = vmatprep.subr.bf16.mxu0 0
        %2227 = vmatpush1.bf16.msra.mxu0 0
        %2228 = vmatprep.subr.bf16.mxu0 0
        %2229 = vmatpush1.bf16.msra.mxu0 0
        %2230 = vmatprep.subr.bf16.mxu0 0
        %2231 = vmatpush1.bf16.msra.mxu0 0
        %2232 = vmatprep.subr.bf16.mxu0 0
        %2233 = vmatpush1.bf16.msra.mxu0 0
        %2234 = vmatprep.subr.bf16.mxu0 0
        %2235 = vmatpush1.bf16.msra.mxu0 0
        %2236 = vmatprep.mubr.bf16.mxu0 0
        %2237 = vmatmul.mubr.bf16.gmra.mrb[0].mxu0 %v956
        %v2238 = vpop.f32.mrb[0].mxu0
        %v2239 = vadd.f32 0.0, %v2238
        %v2240 = vpop.f32.mrb[0].mxu0
        %v2241 = vpop.f32.mrb[0].mxu0
        %v2242 = vadd.f32 0.0, %v2241
        %v2243 = vpop.f32.mrb[0].mxu0
        %2244 = vmatprep.mubr.bf16.mxu0 0
        %2245 = vmatmul.mubr.bf16.gmra.mrb[0].mxu0 %v959
        %v2246 = vpop.f32.mrb[0].mxu0
        %v2247 = vadd.f32 0.0, %v2246
        %v2248 = vpop.f32.mrb[0].mxu0
        %v2249 = vpop.f32.mrb[0].mxu0
        %v2250 = vadd.f32 0.0, %v2249
        %v2251 = vpop.f32.mrb[0].mxu0
        %2252 = vdwg.mxu0
        %s2253 = scalar_lea.vmem %s357, 64
        %2254 = vst.msk [vmem:[%s2253] sm:$0xff] %vm1010, %v2239
        %2255 = vst.msk [vmem:[%s2253 + $0x8] sm:$0xff] %vm1010, %v2242
        %2256 = vst.msk [vmem:[%s2253 + $0x10] sm:$0xff] %vm1010, %v2247
        %2257 = vst.msk [vmem:[%s2253 + $0x18] sm:$0xff] %vm1010, %v2250
        %v2258 = vpack.c.bf16 %v2242, %v2239
        %v2259 = vpack.c.bf16 %v2250, %v2247
        %v2260 = vpack.c.bf16 %v2028, %v2027
        %v2262 = vsel %vm1010, %v2258, 0
        %v2265 = vsel %vm1010, %v2259, 0
        %2267 = vmatprep.subr.bf16.mxu0 0
        %2268 = vmatpush1.bf16.msra.mxu0 %v2260
        %2269 = vmatprep.subr.bf16.mxu0 0
        %2270 = vmatpush1.bf16.msra.mxu0 0
        %2271 = vmatprep.subr.bf16.mxu0 0
        %2272 = vmatpush1.bf16.msra.mxu0 0
        %2273 = vmatprep.subr.bf16.mxu0 0
        %2274 = vmatpush1.bf16.msra.mxu0 0
        %2275 = vmatprep.subr.bf16.mxu0 0
        %2276 = vmatpush1.bf16.msra.mxu0 0
        %2277 = vmatprep.subr.bf16.mxu0 0
        %2278 = vmatpush1.bf16.msra.mxu0 0
        %2279 = vmatprep.subr.bf16.mxu0 0
        %2280 = vmatpush1.bf16.msra.mxu0 0
        %2281 = vmatprep.subr.bf16.mxu0 0
        %2282 = vmatpush1.bf16.msra.mxu0 0
        %2283 = vmatprep.subr.bf16.mxu0 0
        %2284 = vmatpush1.bf16.msra.mxu0 0
        %2285 = vmatprep.subr.bf16.mxu0 0
        %2286 = vmatpush1.bf16.msra.mxu0 0
        %2287 = vmatprep.subr.bf16.mxu0 0
        %2288 = vmatpush1.bf16.msra.mxu0 0
        %2289 = vmatprep.subr.bf16.mxu0 0
        %2290 = vmatpush1.bf16.msra.mxu0 0
        %2291 = vmatprep.subr.bf16.mxu0 0
        %2292 = vmatpush1.bf16.msra.mxu0 0
        %2293 = vmatprep.subr.bf16.mxu0 0
        %2294 = vmatpush1.bf16.msra.mxu0 0
        %2295 = vmatprep.subr.bf16.mxu0 0
        %2296 = vmatpush1.bf16.msra.mxu0 0
        %2297 = vmatprep.subr.bf16.mxu0 0
        %2298 = vmatpush1.bf16.msra.mxu0 0
        %2299 = vmatprep.mubr.bf16.mxu0 0
        %2300 = vmatmul.mubr.bf16.gmra.mrb[0].mxu0 %v2262
        %v2301 = vpop.f32.mrb[0].mxu0
        %v2302 = vadd.f32 0.0, %v2301
        %v2303 = vpop.f32.mrb[0].mxu0
        %v2304 = vpop.f32.mrb[0].mxu0
        %v2305 = vadd.f32 0.0, %v2304
        %v2306 = vpop.f32.mrb[0].mxu0
        %2307 = vmatprep.mubr.bf16.mxu0 0
        %2308 = vmatmul.mubr.bf16.gmra.mrb[0].mxu0 %v2265
        %v2309 = vpop.f32.mrb[0].mxu0
        %v2310 = vadd.f32 0.0, %v2309
        %v2311 = vpop.f32.mrb[0].mxu0
        %v2312 = vpop.f32.mrb[0].mxu0
        %v2313 = vadd.f32 0.0, %v2312
        %v2314 = vpop.f32.mrb[0].mxu0
        %2315 = vdwg.mxu0
        %v2316 = vpack.c.bf16 %v2305, %v2302
        %v2317 = vpack.c.bf16 %v2313, %v2310
        %v2320 = vunpack.c.l.b16 %v2316
        %v2321 = vunpack.c.h.b16 %v2316
        %v2322 = vunpack.c.l.b16 %v2317
        %v2323 = vunpack.c.h.b16 %v2317
        %v2324 = vpack.c.b16 %v2320, %v2320
        %v2325 = vpack.c.b16 %v2321, %v2321
        %v2326 = vpack.c.b16 %v2322, %v2322
        %v2327 = vpack.c.b16 %v2323, %v2323
        %s2332 = scalar_lea.vmem %s341, 32 [#allocation8]
        %2333 = vst [vmem:[%s2332] sm:$0xf] %v2324
        %2334 = vst [vmem:[%s2332 + $0x4] sm:$0xf] %v2325
        %2335 = vst [vmem:[%s2332 + $0x8] sm:$0xf] %v2326
        %2336 = vst [vmem:[%s2332 + $0xc] sm:$0xf] %v2327
        %s2337 = scalar_lea.vmem %s307, 96 [#allocation3]
        %v2338 = vld [vmem:[%s2337] sm:$0xff]
        %v2339 = vld [vmem:[%s2337 + $0x8] sm:$0xff]
        %v2340 = vld [vmem:[%s2337 + $0x10] sm:$0xff]
        %v2341 = vld [vmem:[%s2337 + $0x18] sm:$0xff]
        %v2342 = vpack.c.bf16 %v2339, %v2338
        %v2343 = vpack.c.bf16 %v2341, %v2340
        %2344 = vmatprep.subr.bf16.mxu0 0
        %2345 = vmatpush1.bf16.msra.mxu0 %v2342
        %2346 = vmatprep.subr.bf16.mxu0 0
        %2347 = vmatpush1.bf16.msra.mxu0 %v2343
        %2348 = vmatprep.subr.bf16.mxu0 0
        %2349 = vmatpush1.bf16.msra.mxu0 0
        %2350 = vmatprep.subr.bf16.mxu0 0
        %2351 = vmatpush1.bf16.msra.mxu0 0
        %2352 = vmatprep.subr.bf16.mxu0 0
        %2353 = vmatpush1.bf16.msra.mxu0 0
        %2354 = vmatprep.subr.bf16.mxu0 0
        %2355 = vmatpush1.bf16.msra.mxu0 0
        %2356 = vmatprep.subr.bf16.mxu0 0
        %2357 = vmatpush1.bf16.msra.mxu0 0
        %2358 = vmatprep.subr.bf16.mxu0 0
        %2359 = vmatpush1.bf16.msra.mxu0 0
        %2360 = vmatprep.subr.bf16.mxu0 0
        %2361 = vmatpush1.bf16.msra.mxu0 0
        %2362 = vmatprep.subr.bf16.mxu0 0
        %2363 = vmatpush1.bf16.msra.mxu0 0
        %2364 = vmatprep.subr.bf16.mxu0 0
        %2365 = vmatpush1.bf16.msra.mxu0 0
        %2366 = vmatprep.subr.bf16.mxu0 0
        %2367 = vmatpush1.bf16.msra.mxu0 0
        %2368 = vmatprep.subr.bf16.mxu0 0
        %2369 = vmatpush1.bf16.msra.mxu0 0
        %2370 = vmatprep.subr.bf16.mxu0 0
        %2371 = vmatpush1.bf16.msra.mxu0 0
        %2372 = vmatprep.subr.bf16.mxu0 0
        %2373 = vmatpush1.bf16.msra.mxu0 0
        %2374 = vmatprep.subr.bf16.mxu0 0
        %2375 = vmatpush1.bf16.msra.mxu0 0
        %2376 = vmatprep.mubr.bf16.mxu0 0
        %2377 = vmatmul.mubr.bf16.gmra.mrb[0].mxu0 %v404
        %v2378 = vpop.f32.mrb[0].mxu0
        %v2379 = vadd.f32 0.0, %v2378
        %v2380 = vpop.f32.mrb[0].mxu0
        %v2381 = vpop.f32.mrb[0].mxu0
        %v2382 = vadd.f32 0.0, %v2381
        %v2383 = vpop.f32.mrb[0].mxu0
        %2384 = vmatprep.mubr.bf16.mxu0 0
        %2385 = vmatmul.mubr.bf16.gmra.mrb[0].mxu0 %v407
        %v2386 = vpop.f32.mrb[0].mxu0
        %v2387 = vadd.f32 0.0, %v2386
        %v2388 = vpop.f32.mrb[0].mxu0
        %v2389 = vpop.f32.mrb[0].mxu0
        %v2390 = vadd.f32 0.0, %v2389
        %v2391 = vpop.f32.mrb[0].mxu0
        %2392 = vmatprep.mubr.bf16.mxu0 0
        %2393 = vmatmul.mubr.bf16.gmra.mrb[0].mxu0 %v410
        %v2394 = vpop.f32.mrb[0].mxu0
        %v2395 = vadd.f32 0.0, %v2394
        %v2396 = vpop.f32.mrb[0].mxu0
        %v2397 = vpop.f32.mrb[0].mxu0
        %v2398 = vadd.f32 0.0, %v2397
        %v2399 = vpop.f32.mrb[0].mxu0
        %2400 = vdwg.mxu0
        %v2401 = vld [vmem:[%s469] sm:$0xff]
        %v2402 = vld [vmem:[%s469 + $0x8] sm:$0xff]
        %v2403 = vld [vmem:[%s469 + $0x10] sm:$0xff]
        %v2404 = vld [vmem:[%s469 + $0x18] sm:$0xff]
        %v2405 = vld [vmem:[%s469 + $0x20] sm:$0xff]
        %v2406 = vld [vmem:[%s469 + $0x28] sm:$0xff]
        %v2407 = vmul.f32 %v2401, %v2379
        %v2408 = vmul.f32 %v2402, %v2382
        %v2409 = vmul.f32 %v2403, %v2387
        %v2410 = vmul.f32 %v2404, %v2390
        %v2411 = vmul.f32 %v2405, %v2395
        %v2412 = vmul.f32 %v2406, %v2398
        %2413 = vrot.lane.b32.xlu0 %v2379, 17
        %v2414 = vpop.permute.xlu0 %2413
        %2415 = vrot.lane.b32.xlu0 %v2382, 17
        %v2416 = vpop.permute.xlu0 %2415
        %2417 = vrot.lane.b32.xlu0 %v2387, 17
        %v2418 = vpop.permute.xlu0 %2417
        %2419 = vrot.lane.b32.xlu0 %v2390, 17
        %v2420 = vpop.permute.xlu0 %2419
        %2421 = vrot.lane.b32.xlu0 %v2395, 17
        %v2422 = vpop.permute.xlu0 %2421
        %2423 = vrot.lane.b32.xlu0 %v2398, 17
        %v2424 = vpop.permute.xlu0 %2423
        %v2425 = vld [vmem:[#allocation6] sm:$0xff]
        %v2426 = vld [vmem:[#allocation6 + $0x8] sm:$0xff]
        %v2427 = vld [vmem:[#allocation6 + $0x10] sm:$0xff]
        %v2428 = vld [vmem:[#allocation6 + $0x18] sm:$0xff]
        %v2429 = vld [vmem:[#allocation6 + $0x20] sm:$0xff]
        %v2430 = vld [vmem:[#allocation6 + $0x28] sm:$0xff]
        %v2431 = vmul.f32 %v2425, %v2414
        %v2432 = vmul.f32 %v2426, %v2416
        %v2433 = vmul.f32 %v2427, %v2418
        %v2434 = vmul.f32 %v2428, %v2420
        %v2435 = vmul.f32 %v2429, %v2422
        %v2436 = vmul.f32 %v2430, %v2424
        %v2437 = vadd.f32 %v2407, %v2431
        %v2438 = vadd.f32 %v2408, %v2432
        %v2439 = vadd.f32 %v2409, %v2433
        %v2440 = vadd.f32 %v2410, %v2434
        %v2441 = vadd.f32 %v2411, %v2435
        %v2442 = vadd.f32 %v2412, %v2436
        %2443 = vrot.lane.b32.xlu0 %v2379, 16
        %v2444 = vpop.permute.xlu0 %2443
        %2445 = vrot.lane.b32.xlu0 %v2382, 16
        %v2446 = vpop.permute.xlu0 %2445
        %2447 = vrot.lane.b32.xlu0 %v2387, 16
        %v2448 = vpop.permute.xlu0 %2447
        %2449 = vrot.lane.b32.xlu0 %v2390, 16
        %v2450 = vpop.permute.xlu0 %2449
        %2451 = vrot.lane.b32.xlu0 %v2395, 16
        %v2452 = vpop.permute.xlu0 %2451
        %2453 = vrot.lane.b32.xlu0 %v2398, 16
        %v2454 = vpop.permute.xlu0 %2453
        %v2455 = vld [vmem:[%s524] sm:$0xff]
        %v2456 = vld [vmem:[%s524 + $0x8] sm:$0xff]
        %v2457 = vld [vmem:[%s524 + $0x10] sm:$0xff]
        %v2458 = vld [vmem:[%s524 + $0x18] sm:$0xff]
        %v2459 = vld [vmem:[%s524 + $0x20] sm:$0xff]
        %v2460 = vld [vmem:[%s524 + $0x28] sm:$0xff]
        %v2461 = vmul.f32 %v2455, %v2444
        %v2462 = vmul.f32 %v2456, %v2446
        %v2463 = vmul.f32 %v2457, %v2448
        %v2464 = vmul.f32 %v2458, %v2450
        %v2465 = vmul.f32 %v2459, %v2452
        %v2466 = vmul.f32 %v2460, %v2454
        %v2467 = vadd.f32 %v2437, %v2461
        %v2468 = vadd.f32 %v2438, %v2462
        %v2469 = vadd.f32 %v2439, %v2463
        %v2470 = vadd.f32 %v2440, %v2464
        %v2471 = vadd.f32 %v2441, %v2465
        %v2472 = vadd.f32 %v2442, %v2466
        %2473 = vrot.lane.b32.xlu0 %v2379, 15
        %v2474 = vpop.permute.xlu0 %2473
        %2475 = vrot.lane.b32.xlu0 %v2382, 15
        %v2476 = vpop.permute.xlu0 %2475
        %2477 = vrot.lane.b32.xlu0 %v2387, 15
        %v2478 = vpop.permute.xlu0 %2477
        %2479 = vrot.lane.b32.xlu0 %v2390, 15
        %v2480 = vpop.permute.xlu0 %2479
        %2481 = vrot.lane.b32.xlu0 %v2395, 15
        %v2482 = vpop.permute.xlu0 %2481
        %2483 = vrot.lane.b32.xlu0 %v2398, 15
        %v2484 = vpop.permute.xlu0 %2483
        %v2485 = vld [vmem:[%s555] sm:$0xff]
        %v2486 = vld [vmem:[%s555 + $0x8] sm:$0xff]
        %v2487 = vld [vmem:[%s555 + $0x10] sm:$0xff]
        %v2488 = vld [vmem:[%s555 + $0x18] sm:$0xff]
        %v2489 = vld [vmem:[%s555 + $0x20] sm:$0xff]
        %v2490 = vld [vmem:[%s555 + $0x28] sm:$0xff]
        %v2491 = vmul.f32 %v2485, %v2474
        %v2492 = vmul.f32 %v2486, %v2476
        %v2493 = vmul.f32 %v2487, %v2478
        %v2494 = vmul.f32 %v2488, %v2480
        %v2495 = vmul.f32 %v2489, %v2482
        %v2496 = vmul.f32 %v2490, %v2484
        %v2497 = vadd.f32 %v2467, %v2491
        %v2498 = vadd.f32 %v2468, %v2492
        %v2499 = vadd.f32 %v2469, %v2493
        %v2500 = vadd.f32 %v2470, %v2494
        %v2501 = vadd.f32 %v2471, %v2495
        %v2502 = vadd.f32 %v2472, %v2496
        %2503 = vrot.lane.b32.xlu0 %v2379, 1
        %v2504 = vpop.permute.xlu0 %2503
        %2505 = vrot.lane.b32.xlu0 %v2382, 1
        %v2506 = vpop.permute.xlu0 %2505
        %2507 = vrot.lane.b32.xlu0 %v2387, 1
        %v2508 = vpop.permute.xlu0 %2507
        %2509 = vrot.lane.b32.xlu0 %v2390, 1
        %v2510 = vpop.permute.xlu0 %2509
        %2511 = vrot.lane.b32.xlu0 %v2395, 1
        %v2512 = vpop.permute.xlu0 %2511
        %2513 = vrot.lane.b32.xlu0 %v2398, 1
        %v2514 = vpop.permute.xlu0 %2513
        %v2515 = vld [vmem:[%s586] sm:$0xff]
        %v2516 = vld [vmem:[%s586 + $0x8] sm:$0xff]
        %v2517 = vld [vmem:[%s586 + $0x10] sm:$0xff]
        %v2518 = vld [vmem:[%s586 + $0x18] sm:$0xff]
        %v2519 = vld [vmem:[%s586 + $0x20] sm:$0xff]
        %v2520 = vld [vmem:[%s586 + $0x28] sm:$0xff]
        %v2521 = vmul.f32 %v2515, %v2504
        %v2522 = vmul.f32 %v2516, %v2506
        %v2523 = vmul.f32 %v2517, %v2508
        %v2524 = vmul.f32 %v2518, %v2510
        %v2525 = vmul.f32 %v2519, %v2512
        %v2526 = vmul.f32 %v2520, %v2514
        %v2527 = vadd.f32 %v2497, %v2521
        %v2528 = vadd.f32 %v2498, %v2522
        %v2529 = vadd.f32 %v2499, %v2523
        %v2530 = vadd.f32 %v2500, %v2524
        %v2531 = vadd.f32 %v2501, %v2525
        %v2532 = vadd.f32 %v2502, %v2526
        %2533 = vrot.lane.b32.xlu0 %v2379, 127
        %v2534 = vpop.permute.xlu0 %2533
        %2535 = vrot.lane.b32.xlu0 %v2382, 127
        %v2536 = vpop.permute.xlu0 %2535
        %2537 = vrot.lane.b32.xlu0 %v2387, 127
        %v2538 = vpop.permute.xlu0 %2537
        %2539 = vrot.lane.b32.xlu0 %v2390, 127
        %v2540 = vpop.permute.xlu0 %2539
        %2541 = vrot.lane.b32.xlu0 %v2395, 127
        %v2542 = vpop.permute.xlu0 %2541
        %2543 = vrot.lane.b32.xlu0 %v2398, 127
        %v2544 = vpop.permute.xlu0 %2543
        %v2545 = vld [vmem:[%s617] sm:$0xff]
        %v2546 = vld [vmem:[%s617 + $0x8] sm:$0xff]
        %v2547 = vld [vmem:[%s617 + $0x10] sm:$0xff]
        %v2548 = vld [vmem:[%s617 + $0x18] sm:$0xff]
        %v2549 = vld [vmem:[%s617 + $0x20] sm:$0xff]
        %v2550 = vld [vmem:[%s617 + $0x28] sm:$0xff]
        %v2551 = vmul.f32 %v2545, %v2534
        %v2552 = vmul.f32 %v2546, %v2536
        %v2553 = vmul.f32 %v2547, %v2538
        %v2554 = vmul.f32 %v2548, %v2540
        %v2555 = vmul.f32 %v2549, %v2542
        %v2556 = vmul.f32 %v2550, %v2544
        %v2557 = vadd.f32 %v2527, %v2551
        %v2558 = vadd.f32 %v2528, %v2552
        %v2559 = vadd.f32 %v2529, %v2553
        %v2560 = vadd.f32 %v2530, %v2554
        %v2561 = vadd.f32 %v2531, %v2555
        %v2562 = vadd.f32 %v2532, %v2556
        %2563 = vrot.lane.b32.xlu0 %v2379, 113
        %v2564 = vpop.permute.xlu0 %2563
        %2565 = vrot.lane.b32.xlu0 %v2382, 113
        %v2566 = vpop.permute.xlu0 %2565
        %2567 = vrot.lane.b32.xlu0 %v2387, 113
        %v2568 = vpop.permute.xlu0 %2567
        %2569 = vrot.lane.b32.xlu0 %v2390, 113
        %v2570 = vpop.permute.xlu0 %2569
        %2571 = vrot.lane.b32.xlu0 %v2395, 113
        %v2572 = vpop.permute.xlu0 %2571
        %2573 = vrot.lane.b32.xlu0 %v2398, 113
        %v2574 = vpop.permute.xlu0 %2573
        %v2575 = vld [vmem:[%s648] sm:$0xff]
        %v2576 = vld [vmem:[%s648 + $0x8] sm:$0xff]
        %v2577 = vld [vmem:[%s648 + $0x10] sm:$0xff]
        %v2578 = vld [vmem:[%s648 + $0x18] sm:$0xff]
        %v2579 = vld [vmem:[%s648 + $0x20] sm:$0xff]
        %v2580 = vld [vmem:[%s648 + $0x28] sm:$0xff]
        %v2581 = vmul.f32 %v2575, %v2564
        %v2582 = vmul.f32 %v2576, %v2566
        %v2583 = vmul.f32 %v2577, %v2568
        %v2584 = vmul.f32 %v2578, %v2570
        %v2585 = vmul.f32 %v2579, %v2572
        %v2586 = vmul.f32 %v2580, %v2574
        %v2587 = vadd.f32 %v2557, %v2581
        %v2588 = vadd.f32 %v2558, %v2582
        %v2589 = vadd.f32 %v2559, %v2583
        %v2590 = vadd.f32 %v2560, %v2584
        %v2591 = vadd.f32 %v2561, %v2585
        %v2592 = vadd.f32 %v2562, %v2586
        %2593 = vrot.lane.b32.xlu0 %v2379, 112
        %v2594 = vpop.permute.xlu0 %2593
        %2595 = vrot.lane.b32.xlu0 %v2382, 112
        %v2596 = vpop.permute.xlu0 %2595
        %2597 = vrot.lane.b32.xlu0 %v2387, 112
        %v2598 = vpop.permute.xlu0 %2597
        %2599 = vrot.lane.b32.xlu0 %v2390, 112
        %v2600 = vpop.permute.xlu0 %2599
        %2601 = vrot.lane.b32.xlu0 %v2395, 112
        %v2602 = vpop.permute.xlu0 %2601
        %2603 = vrot.lane.b32.xlu0 %v2398, 112
        %v2604 = vpop.permute.xlu0 %2603
        %v2605 = vld [vmem:[%s679] sm:$0xff]
        %v2606 = vld [vmem:[%s679 + $0x8] sm:$0xff]
        %v2607 = vld [vmem:[%s679 + $0x10] sm:$0xff]
        %v2608 = vld [vmem:[%s679 + $0x18] sm:$0xff]
        %v2609 = vld [vmem:[%s679 + $0x20] sm:$0xff]
        %v2610 = vld [vmem:[%s679 + $0x28] sm:$0xff]
        %v2611 = vmul.f32 %v2605, %v2594
        %v2612 = vmul.f32 %v2606, %v2596
        %v2613 = vmul.f32 %v2607, %v2598
        %v2614 = vmul.f32 %v2608, %v2600
        %v2615 = vmul.f32 %v2609, %v2602
        %v2616 = vmul.f32 %v2610, %v2604
        %v2617 = vadd.f32 %v2587, %v2611
        %v2618 = vadd.f32 %v2588, %v2612
        %v2619 = vadd.f32 %v2589, %v2613
        %v2620 = vadd.f32 %v2590, %v2614
        %v2621 = vadd.f32 %v2591, %v2615
        %v2622 = vadd.f32 %v2592, %v2616
        %2623 = vrot.lane.b32.xlu0 %v2379, 111
        %v2624 = vpop.permute.xlu0 %2623
        %2625 = vrot.lane.b32.xlu0 %v2382, 111
        %v2626 = vpop.permute.xlu0 %2625
        %2627 = vrot.lane.b32.xlu0 %v2387, 111
        %v2628 = vpop.permute.xlu0 %2627
        %2629 = vrot.lane.b32.xlu0 %v2390, 111
        %v2630 = vpop.permute.xlu0 %2629
        %2631 = vrot.lane.b32.xlu0 %v2395, 111
        %v2632 = vpop.permute.xlu0 %2631
        %2633 = vrot.lane.b32.xlu0 %v2398, 111
        %v2634 = vpop.permute.xlu0 %2633
        %v2635 = vld [vmem:[%s710] sm:$0xff]
        %v2636 = vld [vmem:[%s710 + $0x8] sm:$0xff]
        %v2637 = vld [vmem:[%s710 + $0x10] sm:$0xff]
        %v2638 = vld [vmem:[%s710 + $0x18] sm:$0xff]
        %v2639 = vld [vmem:[%s710 + $0x20] sm:$0xff]
        %v2640 = vld [vmem:[%s710 + $0x28] sm:$0xff]
        %v2641 = vmul.f32 %v2635, %v2624
        %v2642 = vmul.f32 %v2636, %v2626
        %v2643 = vmul.f32 %v2637, %v2628
        %v2644 = vmul.f32 %v2638, %v2630
        %v2645 = vmul.f32 %v2639, %v2632
        %v2646 = vmul.f32 %v2640, %v2634
        %v2647 = vadd.f32 %v2617, %v2641
        %v2648 = vadd.f32 %v2618, %v2642
        %v2649 = vadd.f32 %v2619, %v2643
        %v2650 = vadd.f32 %v2620, %v2644
        %v2651 = vadd.f32 %v2621, %v2645
        %v2652 = vadd.f32 %v2622, %v2646
        %v2653 = vadd.f32 %v2651, %v732
        %v2654 = vadd.f32 %v2652, %v737
        %2655 = vmax.xlane.f32.xlu0 %v2653
        %v2656 = vpop.xlane.xlu0 %2655
        %2657 = vmax.xlane.f32.xlu0 %v2654
        %v2658 = vpop.xlane.xlu0 %2657
        %v2659 = vsub.f32 %v2653, %v2656
        %v2660 = vsub.f32 %v2654, %v2658
        %v2661 = vmul.f32 %v2659, 1.442695
        %v2662 = vpow.pop %v2661
        %v2663 = vmul.f32 %v2660, 1.442695
        %v2664 = vpow.pop %v2663
        %2665 = vadd.xlane.f32.xlu0 %v2662
        %v2666 = vpop.xlane.xlu0 %2665
        %2667 = vadd.xlane.f32.xlu0 %v2664
        %v2668 = vpop.xlane.xlu0 %2667
        %v2669 = vrcp.pop %v2666
        %v2670 = vrcp.pop %v2668
        %v2671 = vmul.f32 %v2662, %v2669
        %v2672 = vmul.f32 %v2664, %v2670
        %v2673 = vmul.f32 %v2671, %v2647
        %v2674 = vmul.f32 %v2672, %v2648
        %v2675 = vpack.c.bf16 %v2674, %v2673
        %2676 = vmatprep.subr.bf16.mxu0 0
        %2677 = vmatpush1.bf16.xpose.msra.mxu0 %v2675
        %2678 = vmatprep.subr.bf16.mxu0 0
        %2679 = vmatpush1.bf16.xpose.msra.mxu0 0
        %2680 = vmatprep.subr.bf16.mxu0 0
        %2681 = vmatpush1.bf16.xpose.msra.mxu0 0
        %2682 = vmatprep.subr.bf16.mxu0 0
        %2683 = vmatpush1.bf16.xpose.msra.mxu0 0
        %2684 = vmatprep.subr.bf16.mxu0 0
        %2685 = vmatpush1.bf16.xpose.msra.mxu0 0
        %2686 = vmatprep.subr.bf16.mxu0 0
        %2687 = vmatpush1.bf16.xpose.msra.mxu0 0
        %2688 = vmatprep.subr.bf16.mxu0 0
        %2689 = vmatpush1.bf16.xpose.msra.mxu0 0
        %2690 = vmatprep.subr.bf16.mxu0 0
        %2691 = vmatpush1.bf16.xpose.msra.mxu0 0
        %2692 = vmatprep.subr.bf16.mxu0 0
        %2693 = vmatpush1.bf16.xpose.msra.mxu0 0
        %2694 = vmatprep.subr.bf16.mxu0 0
        %2695 = vmatpush1.bf16.xpose.msra.mxu0 0
        %2696 = vmatprep.subr.bf16.mxu0 0
        %2697 = vmatpush1.bf16.xpose.msra.mxu0 0
        %2698 = vmatprep.subr.bf16.mxu0 0
        %2699 = vmatpush1.bf16.xpose.msra.mxu0 0
        %2700 = vmatprep.subr.bf16.mxu0 0
        %2701 = vmatpush1.bf16.xpose.msra.mxu0 0
        %2702 = vmatprep.subr.bf16.mxu0 0
        %2703 = vmatpush1.bf16.xpose.msra.mxu0 0
        %2704 = vmatprep.subr.bf16.mxu0 0
        %2705 = vmatpush1.bf16.xpose.msra.mxu0 0
        %2706 = vmatprep.subr.bf16.mxu0 0
        %2707 = vmatpush1.bf16.xpose.msra.mxu0 0
        %2708 = vmatprep.mubr.bf16.mxu0 0
        %2709 = vmatmul.mubr.bf16.gmra.mrb[0].mxu0 %v2342
        %v2710 = vpop.f32.mrb[0].mxu0
        %v2711 = vadd.f32 0.0, %v2710
        %v2712 = vpop.f32.mrb[0].mxu0
        %v2713 = vpop.f32.mrb[0].mxu0
        %v2714 = vadd.f32 0.0, %v2713
        %v2715 = vpop.f32.mrb[0].mxu0
        %2716 = vmatprep.mubr.bf16.mxu0 0
        %2717 = vmatmul.mubr.bf16.gmra.mrb[0].mxu0 %v2343
        %v2718 = vpop.f32.mrb[0].mxu0
        %v2719 = vadd.f32 0.0, %v2718
        %v2720 = vpop.f32.mrb[0].mxu0
        %v2721 = vpop.f32.mrb[0].mxu0
        %v2722 = vadd.f32 0.0, %v2721
        %v2723 = vpop.f32.mrb[0].mxu0
        %2724 = vdwg.mxu0
        %v2725 = vpack.c.bf16 %v2714, %v2711
        %v2726 = vpack.c.bf16 %v2722, %v2719
        %2727 = vmatprep.subr.bf16.mxu0 0
        %2728 = vmatpush1.bf16.msra.mxu0 %v2725
        %2729 = vmatprep.subr.bf16.mxu0 0
        %2730 = vmatpush1.bf16.msra.mxu0 %v2726
        %2731 = vmatprep.subr.bf16.mxu0 0
        %2732 = vmatpush1.bf16.msra.mxu0 0
        %2733 = vmatprep.subr.bf16.mxu0 0
        %2734 = vmatpush1.bf16.msra.mxu0 0
        %2735 = vmatprep.subr.bf16.mxu0 0
        %2736 = vmatpush1.bf16.msra.mxu0 0
        %2737 = vmatprep.subr.bf16.mxu0 0
        %2738 = vmatpush1.bf16.msra.mxu0 0
        %2739 = vmatprep.subr.bf16.mxu0 0
        %2740 = vmatpush1.bf16.msra.mxu0 0
        %2741 = vmatprep.subr.bf16.mxu0 0
        %2742 = vmatpush1.bf16.msra.mxu0 0
        %2743 = vmatprep.subr.bf16.mxu0 0
        %2744 = vmatpush1.bf16.msra.mxu0 0
        %2745 = vmatprep.subr.bf16.mxu0 0
        %2746 = vmatpush1.bf16.msra.mxu0 0
        %2747 = vmatprep.subr.bf16.mxu0 0
        %2748 = vmatpush1.bf16.msra.mxu0 0
        %2749 = vmatprep.subr.bf16.mxu0 0
        %2750 = vmatpush1.bf16.msra.mxu0 0
        %2751 = vmatprep.subr.bf16.mxu0 0
        %2752 = vmatpush1.bf16.msra.mxu0 0
        %2753 = vmatprep.subr.bf16.mxu0 0
        %2754 = vmatpush1.bf16.msra.mxu0 0
        %2755 = vmatprep.subr.bf16.mxu0 0
        %2756 = vmatpush1.bf16.msra.mxu0 0
        %2757 = vmatprep.subr.bf16.mxu0 0
        %2758 = vmatpush1.bf16.msra.mxu0 0
        %2759 = vmatprep.mubr.bf16.mxu0 0
        %2760 = vmatmul.mubr.bf16.gmra.mrb[0].mxu0 %v834
        %v2761 = vpop.f32.mrb[0].mxu0
        %v2762 = vadd.f32 0.0, %v2761
        %v2763 = vpop.f32.mrb[0].mxu0
        %v2764 = vpop.f32.mrb[0].mxu0
        %v2765 = vadd.f32 0.0, %v2764
        %v2766 = vpop.f32.mrb[0].mxu0
        %2767 = vmatprep.mubr.bf16.mxu0 0
        %2768 = vmatmul.mubr.bf16.gmra.mrb[0].mxu0 %v837
        %v2769 = vpop.f32.mrb[0].mxu0
        %v2770 = vadd.f32 0.0, %v2769
        %v2771 = vpop.f32.mrb[0].mxu0
        %v2772 = vpop.f32.mrb[0].mxu0
        %v2773 = vadd.f32 0.0, %v2772
        %v2774 = vpop.f32.mrb[0].mxu0
        %2775 = vmatprep.mubr.bf16.mxu0 0
        %2776 = vmatmul.mubr.bf16.gmra.mrb[0].mxu0 %v840
        %v2777 = vpop.f32.mrb[0].mxu0
        %v2778 = vadd.f32 0.0, %v2777
        %v2779 = vpop.f32.mrb[0].mxu0
        %v2780 = vpop.f32.mrb[0].mxu0
        %v2781 = vadd.f32 0.0, %v2780
        %v2782 = vpop.f32.mrb[0].mxu0
        %2783 = vmatprep.mubr.bf16.mxu0 0
        %2784 = vmatmul.mubr.bf16.gmra.mrb[0].mxu0 %v843
        %v2785 = vpop.f32.mrb[0].mxu0
        %v2786 = vadd.f32 0.0, %v2785
        %v2787 = vpop.f32.mrb[0].mxu0
        %v2788 = vpop.f32.mrb[0].mxu0
        %v2789 = vadd.f32 0.0, %v2788
        %v2790 = vpop.f32.mrb[0].mxu0
        %2791 = vdwg.mxu0
        %v2792 = vsub.f32 0.0, %v2778
        %v2793 = vsub.f32 0.0, %v2781
        %v2794 = vsub.f32 0.0, %v2786
        %v2795 = vsub.f32 0.0, %v2789
        %v2796 = vmul.f32 %v2792, 1.442695
        %v2797 = vpow.pop %v2796
        %v2798 = vmul.f32 %v2793, 1.442695
        %v2799 = vpow.pop %v2798
        %v2800 = vmul.f32 %v2794, 1.442695
        %v2801 = vpow.pop %v2800
        %v2802 = vmul.f32 %v2795, 1.442695
        %v2803 = vpow.pop %v2802
        %v2804 = vadd.f32 %v2797, 1.0
        %v2805 = vadd.f32 %v2799, 1.0
        %v2806 = vadd.f32 %v2801, 1.0
        %v2807 = vadd.f32 %v2803, 1.0
        %v2808 = vrcp.pop %v2804
        %v2809 = vrcp.pop %v2805
        %v2810 = vrcp.pop %v2806
        %v2811 = vrcp.pop %v2807
        %v2812 = vmul.f32 %v2778, %v2808
        %v2813 = vmul.f32 %v2781, %v2809
        %v2814 = vmul.f32 %v2786, %v2810
        %v2815 = vmul.f32 %v2789, %v2811
        %v2816 = vadd.f32 %v2812, %v934
        %v2817 = vadd.f32 %v2813, %v934
        %v2818 = vadd.f32 %v2814, %v934
        %v2819 = vadd.f32 %v2815, %v934
        %v2820 = vmul.f32 %v2762, %v2816
        %v2821 = vmul.f32 %v2765, %v2817
        %v2822 = vmul.f32 %v2770, %v2818
        %v2823 = vmul.f32 %v2773, %v2819
        %v2824 = vpack.c.bf16 %v2821, %v2820
        %v2825 = vpack.c.bf16 %v2823, %v2822
        %2826 = vmatprep.subr.bf16.mxu0 0
        %2827 = vmatpush1.bf16.msra.mxu0 %v2824
        %2828 = vmatprep.subr.bf16.mxu0 0
        %2829 = vmatpush1.bf16.msra.mxu0 %v2825
        %2830 = vmatprep.subr.bf16.mxu0 0
        %2831 = vmatpush1.bf16.msra.mxu0 0
        %2832 = vmatprep.subr.bf16.mxu0 0
        %2833 = vmatpush1.bf16.msra.mxu0 0
        %2834 = vmatprep.subr.bf16.mxu0 0
        %2835 = vmatpush1.bf16.msra.mxu0 0
        %2836 = vmatprep.subr.bf16.mxu0 0
        %2837 = vmatpush1.bf16.msra.mxu0 0
        %2838 = vmatprep.subr.bf16.mxu0 0
        %2839 = vmatpush1.bf16.msra.mxu0 0
        %2840 = vmatprep.subr.bf16.mxu0 0
        %2841 = vmatpush1.bf16.msra.mxu0 0
        %2842 = vmatprep.subr.bf16.mxu0 0
        %2843 = vmatpush1.bf16.msra.mxu0 0
        %2844 = vmatprep.subr.bf16.mxu0 0
        %2845 = vmatpush1.bf16.msra.mxu0 0
        %2846 = vmatprep.subr.bf16.mxu0 0
        %2847 = vmatpush1.bf16.msra.mxu0 0
        %2848 = vmatprep.subr.bf16.mxu0 0
        %2849 = vmatpush1.bf16.msra.mxu0 0
        %2850 = vmatprep.subr.bf16.mxu0 0
        %2851 = vmatpush1.bf16.msra.mxu0 0
        %2852 = vmatprep.subr.bf16.mxu0 0
        %2853 = vmatpush1.bf16.msra.mxu0 0
        %2854 = vmatprep.subr.bf16.mxu0 0
        %2855 = vmatpush1.bf16.msra.mxu0 0
        %2856 = vmatprep.subr.bf16.mxu0 0
        %2857 = vmatpush1.bf16.msra.mxu0 0
        %2858 = vmatprep.mubr.bf16.mxu0 0
        %2859 = vmatmul.mubr.bf16.gmra.mrb[0].mxu0 %v956
        %v2860 = vpop.f32.mrb[0].mxu0
        %v2861 = vadd.f32 0.0, %v2860
        %v2862 = vpop.f32.mrb[0].mxu0
        %v2863 = vpop.f32.mrb[0].mxu0
        %v2864 = vadd.f32 0.0, %v2863
        %v2865 = vpop.f32.mrb[0].mxu0
        %2866 = vmatprep.mubr.bf16.mxu0 0
        %2867 = vmatmul.mubr.bf16.gmra.mrb[0].mxu0 %v959
        %v2868 = vpop.f32.mrb[0].mxu0
        %v2869 = vadd.f32 0.0, %v2868
        %v2870 = vpop.f32.mrb[0].mxu0
        %v2871 = vpop.f32.mrb[0].mxu0
        %v2872 = vadd.f32 0.0, %v2871
        %v2873 = vpop.f32.mrb[0].mxu0
        %2874 = vdwg.mxu0
        %s2875 = scalar_lea.vmem %s357, 96
        %2876 = vst.msk [vmem:[%s2875] sm:$0xff] %vm1010, %v2861
        %2877 = vst.msk [vmem:[%s2875 + $0x8] sm:$0xff] %vm1010, %v2864
        %2878 = vst.msk [vmem:[%s2875 + $0x10] sm:$0xff] %vm1010, %v2869
        %2879 = vst.msk [vmem:[%s2875 + $0x18] sm:$0xff] %vm1010, %v2872
        %v2880 = vpack.c.bf16 %v2864, %v2861
        %v2881 = vpack.c.bf16 %v2872, %v2869
        %v2882 = vpack.c.bf16 %v2650, %v2649
        %v2884 = vsel %vm1010, %v2880, 0
        %v2887 = vsel %vm1010, %v2881, 0
        %2889 = vmatprep.subr.bf16.mxu0 0
        %2890 = vmatpush1.bf16.msra.mxu0 %v2882
        %2891 = vmatprep.subr.bf16.mxu0 0
        %2892 = vmatpush1.bf16.msra.mxu0 0
        %2893 = vmatprep.subr.bf16.mxu0 0
        %2894 = vmatpush1.bf16.msra.mxu0 0
        %2895 = vmatprep.subr.bf16.mxu0 0
        %2896 = vmatpush1.bf16.msra.mxu0 0
        %2897 = vmatprep.subr.bf16.mxu0 0
        %2898 = vmatpush1.bf16.msra.mxu0 0
        %2899 = vmatprep.subr.bf16.mxu0 0
        %2900 = vmatpush1.bf16.msra.mxu0 0
        %2901 = vmatprep.subr.bf16.mxu0 0
        %2902 = vmatpush1.bf16.msra.mxu0 0
        %2903 = vmatprep.subr.bf16.mxu0 0
        %2904 = vmatpush1.bf16.msra.mxu0 0
        %2905 = vmatprep.subr.bf16.mxu0 0
        %2906 = vmatpush1.bf16.msra.mxu0 0
        %2907 = vmatprep.subr.bf16.mxu0 0
        %2908 = vmatpush1.bf16.msra.mxu0 0
        %2909 = vmatprep.subr.bf16.mxu0 0
        %2910 = vmatpush1.bf16.msra.mxu0 0
        %2911 = vmatprep.subr.bf16.mxu0 0
        %2912 = vmatpush1.bf16.msra.mxu0 0
        %2913 = vmatprep.subr.bf16.mxu0 0
        %2914 = vmatpush1.bf16.msra.mxu0 0
        %2915 = vmatprep.subr.bf16.mxu0 0
        %2916 = vmatpush1.bf16.msra.mxu0 0
        %2917 = vmatprep.subr.bf16.mxu0 0
        %2918 = vmatpush1.bf16.msra.mxu0 0
        %2919 = vmatprep.subr.bf16.mxu0 0
        %2920 = vmatpush1.bf16.msra.mxu0 0
        %2921 = vmatprep.mubr.bf16.mxu0 0
        %2922 = vmatmul.mubr.bf16.gmra.mrb[0].mxu0 %v2884
        %v2923 = vpop.f32.mrb[0].mxu0
        %v2924 = vadd.f32 0.0, %v2923
        %v2925 = vpop.f32.mrb[0].mxu0
        %v2926 = vpop.f32.mrb[0].mxu0
        %v2927 = vadd.f32 0.0, %v2926
        %v2928 = vpop.f32.mrb[0].mxu0
        %2929 = vmatprep.mubr.bf16.mxu0 0
        %2930 = vmatmul.mubr.bf16.gmra.mrb[0].mxu0 %v2887
        %v2931 = vpop.f32.mrb[0].mxu0
        %v2932 = vadd.f32 0.0, %v2931
        %v2933 = vpop.f32.mrb[0].mxu0
        %v2934 = vpop.f32.mrb[0].mxu0
        %v2935 = vadd.f32 0.0, %v2934
        %v2936 = vpop.f32.mrb[0].mxu0
        %2937 = vdwg.mxu0
        %v2938 = vpack.c.bf16 %v2927, %v2924
        %v2939 = vpack.c.bf16 %v2935, %v2932
        %v2942 = vunpack.c.l.b16 %v2938
        %v2943 = vunpack.c.h.b16 %v2938
        %v2944 = vunpack.c.l.b16 %v2939
        %v2945 = vunpack.c.h.b16 %v2939
        %v2946 = vpack.c.b16 %v2942, %v2942
        %v2947 = vpack.c.b16 %v2943, %v2943
        %v2948 = vpack.c.b16 %v2944, %v2944
        %v2949 = vpack.c.b16 %v2945, %v2945
        %s2954 = scalar_lea.vmem %s341, 48 [#allocation8]
        %2955 = vst [vmem:[%s2954] sm:$0xf] %v2946
        %2956 = vst [vmem:[%s2954 + $0x4] sm:$0xf] %v2947
        %2957 = vst [vmem:[%s2954 + $0x8] sm:$0xf] %v2948
        %2958 = vst [vmem:[%s2954 + $0xc] sm:$0xf] %v2949
        %s2959 = sand.u32 %s188, 1
        %s2960 = scalar_lea.sflag [#allocation5], %s2959
        %s2961 = sand.u32 %s188, 1
        %s2962 = smul.addr %s2961, 64
        %s2963 = scalar_lea.vmem [#allocation8], %s2962
        %s2964 = smul.u32 4, %s28
        %p2965 = scmp.lt.s32.totalorder %s2964, 15
        %s2966 = scalar_select %p2965, %s2964, 15
        %s2967 = smul.addr %s2966, 4
        %s2968 = smul.addr %s2967, 8
        %s2969 = scalar_lea.vmem %s8, %s2968
        // Predicated region
        $region57: #{tpu_custom_call.1} parent=47 // pred_check
          %p2970 = pneg %p198
        $region58: #{tpu_custom_call.1} parent=47 // pred_check_branch
          %2972 = sbr.rel (%p2970) target = $region60
        $region59: #{tpu_custom_call.1} parent=47 // pred_region
          %s2973 = smul.u32 4, %s28
          %s2975 = ssub.s32 1024, 1024
          %2976 = vsyncadd %s2960, %s2975
          %s2977 = smul.addr %s2973, 4
          %s2978 = smul.addr %s2977, 64
          %s2979 = scalar_lea.hbm %s7, %s2978
          %s2980 = sshll.u32 %s2963, 4
          %s2981 = int_to_ptr.vmem [resolvable:$true] %s2980
          %2986 = dma.vmem_to_hbm [thread:$0]  %s2981, 1024, %s2979, %s2960, 64, 64, 4
        $region60: #{tpu_custom_call.1} parent=47 // pred_fallthru
          _
        // Predicated region
        $region61: #{tpu_custom_call.1} parent=47 // pred_check
          %p2987 = pneg %p224
        $region62: #{tpu_custom_call.1} parent=47 // pred_check_branch
          %2989 = sbr.rel (%p2987) target = $region64
        $region63: #{tpu_custom_call.1} parent=47 // pred_region
          %s2990 = smul.u32 4, %s28
        $region64: #{tpu_custom_call.1} parent=47 // pred_fallthru
          _
      $region48: #{tpu_custom_call.1} parent=5 // pred_fallthru
        _
      %p2991 = scmp.le.s32.totalorder 2, %s23
      // Predicated region
      $region65: #{tpu_custom_call.1} parent=5 // pred_check
        %p2992 = pneg %p2991
      $region66: #{tpu_custom_call.1} parent=5 // pred_check_branch
        %2994 = sbr.rel (%p2992) target = $region68
      $region67: #{tpu_custom_call.1} parent=5 // pred_region
        %s2995 = ssub.s32 %s23, 2
        // Predicated region
        $region69: #{tpu_custom_call.1} parent=67 // pred_check
          %p2996 = pneg %p204
        $region70: #{tpu_custom_call.1} parent=67 // pred_check_branch
          %2998 = sbr.rel (%p2996) target = $region72
        $region71: #{tpu_custom_call.1} parent=67 // pred_region
          %s2999 = sand.u32 %s189, 1
          %s3000 = scalar_lea.sflag [#allocation5], %s2999
          %s3001 = sand.u32 %s189, 1
          %s3002 = smul.addr %s3001, 64
          %s3003 = scalar_lea.vmem [#allocation8], %s3002
          %3004 = dma.done %s3000, 1024
        $region72: #{tpu_custom_call.1} parent=67 // pred_fallthru
          _
        // Predicated region
        $region73: #{tpu_custom_call.1} parent=67 // pred_check
          %p3005 = pneg %p230
        $region74: #{tpu_custom_call.1} parent=67 // pred_check_branch
          %3007 = sbr.rel (%p3005) target = $region76
        $region75: #{tpu_custom_call.1} parent=67 // pred_region
          %s3008 = smul.u32 4, %s29
          %p3009 = scmp.lt.s32.totalorder %s3008, 15
          %s3010 = scalar_select %p3009, %s3008, 15
          %s3011 = smul.addr %s3010, 4
          %s3012 = smul.addr %s3011, 8
          %s3013 = scalar_lea.vmem %s8, %s3012
        $region76: #{tpu_custom_call.1} parent=67 // pred_fallthru
          _
      $region68: #{tpu_custom_call.1} parent=5 // pred_fallthru
        _
    $region6: #{tpu_custom_call.1} parent=1 // loop_footer
      %s27 = sadd.s32 1, %s23
    $region7: #{tpu_custom_call.1} parent=1 // loop_footer_branch
      %22 = sbr.rel target = $region3
    $region8: #{tpu_custom_call.1} parent=1 // loop_exit
      _
    %3014 = vsyncpa [#allocation4], 1
    %s3015 = scalar_lea.sflag [#allocation4], 1
    %3016 = vsyncpa %s3015, 1
    %3017 = vsyncpa [#allocation7], 1
    %3018 = vsyncpa [#allocation5], 1
    %s3019 = scalar_lea.sflag [#allocation5], 1
    %3020 = vsyncpa %s3019, 1

</llo_original>
